<compile_context>
chip_gen: v7x
topology: tpu7x:2x2x1
jax: 0.10.0
libtpu: 0.0.40
codegen_flags: <defaults>
</compile_context>

<pallas_src>
import functools
import math

import numpy as np
import jax
import jax.numpy as jnp
from jax.experimental import pallas as pl
from jax.experimental.pallas import tpu as pltpu

# ---------------- module hyper-parameters (defaults of KANLinear) ------------
GRID_SIZE = 5
SPLINE_ORDER = 3
GRID_RANGE = (-1.0, 1.0)
N_COEF = GRID_SIZE + SPLINE_ORDER            # 8  final B-spline bases / feature
N_KNOTS = GRID_SIZE + 2 * SPLINE_ORDER + 1   # 12 knots / feature
N0 = GRID_SIZE + 2 * SPLINE_ORDER            # 11 order-0 indicator bases


def _round_up(x, m):
    return (x + m - 1) // m * m


# ------------------------------- Pallas kernel -------------------------------
def kan_linear_kernel(x_ref, coef_ref, w_ref, o_ref, slab_ref, xrep_ref, *,
                      in_features, grid_size, spline_order, mxu_dtype):
    """One batch tile of KANLinear.forward.

    x_ref    : (TB, In)                 input tile
    coef_ref : (rows, n0*In)            per-lane knot constants & reciprocals
    w_ref    : ((n0+2)*In, Out)         packed [spline | zeros | base] weight
    o_ref    : (TB, Out)                output tile
    slab_ref : (TB, (n0+2)*In) f32      packed matmul operand / recursion state
    xrep_ref : (TB, n0*In)     f32      x replicated across all basis slots
    """
    In = in_features
    n0 = grid_size + 2 * spline_order
    L = n0 * In                                  # width of the basis-slot region
    f32 = jnp.float32

    x = x_ref[...].astype(f32)                   # (TB, In)

    # --- base path: SiLU(x) occupies the last In lanes of the packed slab ----
    slab_ref[:, L + In:L + 2 * In] = x * jax.nn.sigmoid(x)
    # Permanent zero slot: the "slot j+1" shifted reads below see zeros here.
    slab_ref[:, L:L + In] = jnp.zeros_like(x)

    # --- replicate x across all n0 lane slots once; lane-dense thereafter ----
    for j in range(n0):
        xrep_ref[:, j * In:(j + 1) * In] = x

    # --- order-0 indicators for every (slot j, feature i) at once ------------
    xr = xrep_ref[...]                           # (TB, L)
    t_lo = coef_ref[0:1, :]
    t_hi = coef_ref[1:2, :]
    slab_ref[:, 0:L] = ((xr >= t_lo) & (xr < t_hi)).astype(f32)

    # --- Cox-de Boor recursion, lane-dense and in place -----------------------
    # All knot-derived constants (including reciprocal denominators) live in
    # coef_ref -> no divides in the kernel.  Invalid slots have zero coeffs.
    for k in range(1, spline_order + 1):
        r = 2 + 4 * (k - 1)
        t_a = coef_ref[r + 0:r + 1, :]
        inv_a = coef_ref[r + 1:r + 2, :]
        t_b = coef_ref[r + 2:r + 3, :]
        inv_b = coef_ref[r + 3:r + 4, :]
        xr = xrep_ref[...]
        p = slab_ref[:, 0:L]                     # B_j^{k-1}      (slot j)
        pn = slab_ref[:, In:L + In]              # B_{j+1}^{k-1}  (shifted view)
        slab_ref[:, 0:L] = (xr - t_a) * inv_a * p + (t_b - xr) * inv_b * pn

    # --- single fused MXU matmul over the whole packed slab -------------------
    acc = jnp.dot(slab_ref[...].astype(mxu_dtype), w_ref[...],
                  preferred_element_type=jnp.float32)
    o_ref[...] = acc.astype(o_ref.dtype)


# ----------------------- constant table for the recursion --------------------
def _coef_table(knots, in_features, grid_size, spline_order):
    """Per-lane constants (knot values + reciprocal denominators)."""
    t = np.asarray(knots, dtype=np.float64).reshape(-1)
    n0 = grid_size + 2 * spline_order
    assert t.shape[0] == n0 + 1
    L = n0 * in_features
    rows = _round_up(2 + 4 * spline_order, 8)
    tab = np.zeros((rows, L), dtype=np.float32)
    for j in range(n0):
        sl = slice(j * in_features, (j + 1) * in_features)
        tab[0, sl] = t[j]                        # order-0 lower knot
        tab[1, sl] = t[j + 1]                    # order-0 upper knot
        for k in range(1, spline_order + 1):
            r = 2 + 4 * (k - 1)
            if j + k + 1 <= n0:                  # valid order-k basis index
                tab[r + 0, sl] = t[j]
                tab[r + 1, sl] = 1.0 / (t[j + k] - t[j])
                tab[r + 2, sl] = t[j + k + 1]
                tab[r + 3, sl] = 1.0 / (t[j + k + 1] - t[j + 1])
            # invalid slots: all-zero coefficients -> the slot stays 0.
    return jnp.asarray(tab)


# --------------------------------- wrapper -----------------------------------
def kan_linear_forward(x, grid_knots, base_weight, spline_weight, spline_scaler,
                       *, tile_b=256, mxu_dtype=jnp.bfloat16,
                       grid_size=GRID_SIZE, spline_order=SPLINE_ORDER):
    """x: (B, In).  Returns (B, Out), matching KANLinear.forward."""
    B, In = x.shape
    Out = base_weight.shape[0]
    n0 = grid_size + 2 * spline_order
    n_coef = grid_size + spline_order
    L = n0 * In
    slab_w = (n0 + 2) * In                       # [basis slots | zero | silu]

    # ---- parameter glue (plain JAX, done once): one packed 2-D MXU weight ----
    scaled = spline_weight * spline_scaler[..., None]            # (Out, In, C)
    w_spline = jnp.transpose(scaled, (2, 1, 0)).reshape(n_coef * In, Out)
    w_zero = jnp.zeros((L + In - n_coef * In, Out), scaled.dtype)
    w_base = base_weight.T                                       # (In, Out)
    w_packed = jnp.concatenate([w_spline, w_zero, w_base], 0).astype(mxu_dtype)

    coef = _coef_table(grid_knots, In, grid_size, spline_order)  # (rows, L)

    # ---- batch tiling: pad ragged batches; keep >=2 parallel steps on v7x ----
    assert tile_b % 8 == 0
    tile_b = min(tile_b, _round_up(B, 8))
    Bp = _round_up(B, tile_b)
    xp = jnp.pad(x, ((0, Bp - B), (0, 0))) if Bp != B else x
    nb = Bp // tile_b

    kernel = functools.partial(
        kan_linear_kernel, in_features=In, grid_size=grid_size,
        spline_order=spline_order, mxu_dtype=mxu_dtype)

    cost = pl.CostEstimate(
        flops=2 * Bp * slab_w * Out + 40 * Bp * L,
        transcendentals=Bp * In,
        bytes_accessed=(xp.size * xp.dtype.itemsize
                        + w_packed.size * w_packed.dtype.itemsize
                        + coef.size * 4
                        + Bp * Out * x.dtype.itemsize))

    out = pl.pallas_call(
        kernel,
        out_shape=jax.ShapeDtypeStruct((Bp, Out), x.dtype),
        grid_spec=pltpu.PrefetchScalarGridSpec(
            num_scalar_prefetch=0,
            grid=(nb,),
            in_specs=[
                pl.BlockSpec((tile_b, In), lambda i: (i, 0)),     # x tile
                pl.BlockSpec(coef.shape, lambda i: (0, 0)),       # knot constants
                pl.BlockSpec((slab_w, Out), lambda i: (0, 0)),    # packed weight
            ],
            out_specs=pl.BlockSpec((tile_b, Out), lambda i: (i, 0)),
            scratch_shapes=[
                pltpu.VMEM((tile_b, slab_w), jnp.float32),        # packed slab
                pltpu.VMEM((tile_b, L), jnp.float32),             # replicated x
            ]),
        compiler_params=pltpu.CompilerParams(
            dimension_semantics=("parallel",)),
        cost_estimate=cost,
    )(xp, coef, w_packed)
    return out[:B]


# --------------------------- pure-JAX reference ------------------------------
def kan_linear_reference(x, grid_knots, base_weight, spline_weight,
                         spline_scaler):
    In = x.shape[1]
    knots = jnp.asarray(grid_knots, jnp.float32)
    grid = jnp.broadcast_to(knots, (In, N_KNOTS))                 # (In, K)
    xx = x[..., None]                                             # (B, In, 1)
    bases = ((xx >= grid[:, :-1]) & (xx < grid[:, 1:])).astype(x.dtype)
    for k in range(1, SPLINE_ORDER + 1):
        bases = ((xx - grid[:, :-(k + 1)])
                 / (grid[:, k:-1] - grid[:, :-(k + 1)]) * bases[..., :-1]
                 + (grid[:, k + 1:] - xx)
                 / (grid[:, k + 1:] - grid[:, 1:-k]) * bases[..., 1:])
    hi = jax.lax.Precision.HIGHEST
    base_out = jnp.dot(jax.nn.silu(x), base_weight.T, precision=hi)
    scaled = spline_weight * spline_scaler[..., None]
    spline_out = jnp.dot(bases.reshape(x.shape[0], -1),
                         scaled.reshape(base_weight.shape[0], -1).T,
                         precision=hi)
    return base_out + spline_out


# ----------------------------------- main ------------------------------------
if __name__ == "__main__":
    B, IN_FEATURES, OUT_FEATURES = 512, 16, 32   # 512 rows -> 2 parallel tiles

    key = jax.random.PRNGKey(0)
    kx, kb, ks, kc = jax.random.split(key, 4)

    # deterministic synthetic parameters (shapes match KANLinear.__init__)
    h = (GRID_RANGE[1] - GRID_RANGE[0]) / GRID_SIZE
    grid_knots = (np.arange(-SPLINE_ORDER, GRID_SIZE + SPLINE_ORDER + 1,
                            dtype=np.float32) * h + GRID_RANGE[0])    # (12,)

    bound = 1.0 / math.sqrt(IN_FEATURES)
    base_weight = jax.random.uniform(
        kb, (OUT_FEATURES, IN_FEATURES), jnp.float32, -bound, bound)
    spline_weight = jax.random.uniform(
        ks, (OUT_FEATURES, IN_FEATURES, N_COEF), jnp.float32, -0.1, 0.1)
    spline_scaler = jax.random.uniform(
        kc, (OUT_FEATURES, IN_FEATURES), jnp.float32, -bound, bound)
    # TODO(synk): curve2coeff-based init uses torch.linalg.lstsq; synthetic
    # random spline_weight is used instead (forward semantics are unchanged).

    x = jax.random.uniform(kx, (B, IN_FEATURES), jnp.float32, -1.0, 1.0)

    ref = kan_linear_reference(x, grid_knots, base_weight, spline_weight,
                               spline_scaler)

    # f32 MXU operands: tight semantics check against the reference.
    out_f32 = kan_linear_forward(x, grid_knots, base_weight, spline_weight,
                                 spline_scaler, mxu_dtype=jnp.float32)
    out_f32 = jax.block_until_ready(out_f32)
    assert out_f32.shape == (B, OUT_FEATURES)
    assert jnp.allclose(out_f32, ref, atol=5e-4, rtol=5e-4)

    # bf16 MXU operands (default fast path; f32 accumulation) - looser tol.
    out_bf16 = kan_linear_forward(x, grid_knots, base_weight, spline_weight,
                                  spline_scaler)
    out_bf16 = jax.block_until_ready(out_bf16)
    assert out_bf16.shape == (B, OUT_FEATURES)
    assert jnp.allclose(out_bf16, ref, atol=3e-2, rtol=3e-2)

    print("KERNEL_OK")
</pallas_src>

<mosaic_0001>
module attributes {stable_mosaic.version = 11 : i64} {
  func.func @kan_linear_kernel(%arg0: i32, %arg1: memref<256x16xf32, #tpu.memory_space<vmem>>, %arg2: memref<16x176xf32, #tpu.memory_space<vmem>>, %arg3: memref<208x32xf32, #tpu.memory_space<vmem>>, %arg4: memref<256x32xf32, #tpu.memory_space<vmem>>, %arg5: memref<256x208xf32, #tpu.memory_space<vmem>>, %arg6: memref<256x176xf32, #tpu.memory_space<vmem>>) attributes {dimension_semantics = [#tpu.dimension_semantics<parallel>], iteration_bounds = array<i64: 2>, scalar_prefetch = 0 : i64, scratch_operands = 2 : i64, tpu.core_type = #tpu.core_type<tc>, window_params = [{transform_indices = @transform_0, window_bounds = array<i64: 256, 16>}, {pipeline_mode = #tpu.pipeline_mode<synchronous>, transform_indices = @transform_1, window_bounds = array<i64: 16, 176>}, {pipeline_mode = #tpu.pipeline_mode<synchronous>, transform_indices = @transform_2, window_bounds = array<i64: 208, 32>}, {transform_indices = @transform_3, window_bounds = array<i64: 256, 32>}]} {
    %c0 = arith.constant 0 : index
    %c0_0 = arith.constant 0 : index
    %0 = vector.load %arg1[%c0, %c0_0] : memref<256x16xf32, #tpu.memory_space<vmem>>, vector<256x16xf32>
    %1 = arith.negf %0 : vector<256x16xf32>
    %2 = math.exp %1 : vector<256x16xf32>
    %cst = arith.constant 1.000000e+00 : f32
    %3 = vector.broadcast %cst : f32 to vector<256x16xf32>
    %4 = arith.addf %3, %2 : vector<256x16xf32>
    %5 = arith.divf %3, %4 : vector<256x16xf32>
    %6 = arith.mulf %0, %5 : vector<256x16xf32>
    %c0_1 = arith.constant 0 : index
    %c192 = arith.constant 192 : index
    %7 = vector.load %arg5[%c0_1, %c192] : memref<256x208xf32, #tpu.memory_space<vmem>>, vector<256x16xf32>
    tpu.vector_store %arg5[%c0_1, %c192], %6 {strides = array<i32>} : memref<256x208xf32, #tpu.memory_space<vmem>>, vector<256x16xf32>,
    %cst_2 = arith.constant 0.000000e+00 : f32
    %8 = vector.broadcast %cst_2 : f32 to vector<256x16xf32>
    %c0_3 = arith.constant 0 : index
    %c176 = arith.constant 176 : index
    %9 = vector.load %arg5[%c0_3, %c176] : memref<256x208xf32, #tpu.memory_space<vmem>>, vector<256x16xf32>
    tpu.vector_store %arg5[%c0_3, %c176], %8 {strides = array<i32>} : memref<256x208xf32, #tpu.memory_space<vmem>>, vector<256x16xf32>,
    %c0_4 = arith.constant 0 : index
    %c0_5 = arith.constant 0 : index
    %10 = vector.load %arg6[%c0_4, %c0_5] : memref<256x176xf32, #tpu.memory_space<vmem>>, vector<256x16xf32>
    tpu.vector_store %arg6[%c0_4, %c0_5], %0 {strides = array<i32>} : memref<256x176xf32, #tpu.memory_space<vmem>>, vector<256x16xf32>,
    %c0_6 = arith.constant 0 : index
    %c16 = arith.constant 16 : index
    %11 = vector.load %arg6[%c0_6, %c16] : memref<256x176xf32, #tpu.memory_space<vmem>>, vector<256x16xf32>
    tpu.vector_store %arg6[%c0_6, %c16], %0 {strides = array<i32>} : memref<256x176xf32, #tpu.memory_space<vmem>>, vector<256x16xf32>,
    %c0_7 = arith.constant 0 : index
    %c32 = arith.constant 32 : index
    %12 = vector.load %arg6[%c0_7, %c32] : memref<256x176xf32, #tpu.memory_space<vmem>>, vector<256x16xf32>
    tpu.vector_store %arg6[%c0_7, %c32], %0 {strides = array<i32>} : memref<256x176xf32, #tpu.memory_space<vmem>>, vector<256x16xf32>,
    %c0_8 = arith.constant 0 : index
    %c48 = arith.constant 48 : index
    %13 = vector.load %arg6[%c0_8, %c48] : memref<256x176xf32, #tpu.memory_space<vmem>>, vector<256x16xf32>
    tpu.vector_store %arg6[%c0_8, %c48], %0 {strides = array<i32>} : memref<256x176xf32, #tpu.memory_space<vmem>>, vector<256x16xf32>,
    %c0_9 = arith.constant 0 : index
    %c64 = arith.constant 64 : index
    %14 = vector.load %arg6[%c0_9, %c64] : memref<256x176xf32, #tpu.memory_space<vmem>>, vector<256x16xf32>
    tpu.vector_store %arg6[%c0_9, %c64], %0 {strides = array<i32>} : memref<256x176xf32, #tpu.memory_space<vmem>>, vector<256x16xf32>,
    %c0_10 = arith.constant 0 : index
    %c80 = arith.constant 80 : index
    %15 = vector.load %arg6[%c0_10, %c80] : memref<256x176xf32, #tpu.memory_space<vmem>>, vector<256x16xf32>
    tpu.vector_store %arg6[%c0_10, %c80], %0 {strides = array<i32>} : memref<256x176xf32, #tpu.memory_space<vmem>>, vector<256x16xf32>,
    %c0_11 = arith.constant 0 : index
    %c96 = arith.constant 96 : index
    %16 = vector.load %arg6[%c0_11, %c96] : memref<256x176xf32, #tpu.memory_space<vmem>>, vector<256x16xf32>
    tpu.vector_store %arg6[%c0_11, %c96], %0 {strides = array<i32>} : memref<256x176xf32, #tpu.memory_space<vmem>>, vector<256x16xf32>,
    %c0_12 = arith.constant 0 : index
    %c112 = arith.constant 112 : index
    %17 = vector.load %arg6[%c0_12, %c112] : memref<256x176xf32, #tpu.memory_space<vmem>>, vector<256x16xf32>
    tpu.vector_store %arg6[%c0_12, %c112], %0 {strides = array<i32>} : memref<256x176xf32, #tpu.memory_space<vmem>>, vector<256x16xf32>,
    %c0_13 = arith.constant 0 : index
    %c128 = arith.constant 128 : index
    %18 = vector.load %arg6[%c0_13, %c128] : memref<256x176xf32, #tpu.memory_space<vmem>>, vector<256x16xf32>
    tpu.vector_store %arg6[%c0_13, %c128], %0 {strides = array<i32>} : memref<256x176xf32, #tpu.memory_space<vmem>>, vector<256x16xf32>,
    %c0_14 = arith.constant 0 : index
    %c144 = arith.constant 144 : index
    %19 = vector.load %arg6[%c0_14, %c144] : memref<256x176xf32, #tpu.memory_space<vmem>>, vector<256x16xf32>
    tpu.vector_store %arg6[%c0_14, %c144], %0 {strides = array<i32>} : memref<256x176xf32, #tpu.memory_space<vmem>>, vector<256x16xf32>,
    %c0_15 = arith.constant 0 : index
    %c160 = arith.constant 160 : index
    %20 = vector.load %arg6[%c0_15, %c160] : memref<256x176xf32, #tpu.memory_space<vmem>>, vector<256x16xf32>
    tpu.vector_store %arg6[%c0_15, %c160], %0 {strides = array<i32>} : memref<256x176xf32, #tpu.memory_space<vmem>>, vector<256x16xf32>,
    %c0_16 = arith.constant 0 : index
    %c0_17 = arith.constant 0 : index
    %21 = vector.load %arg6[%c0_16, %c0_17] : memref<256x176xf32, #tpu.memory_space<vmem>>, vector<256x176xf32>
    %c0_18 = arith.constant 0 : index
    %c0_19 = arith.constant 0 : index
    %22 = vector.load %arg2[%c0_18, %c0_19] : memref<16x176xf32, #tpu.memory_space<vmem>>, vector<1x176xf32>
    %c1 = arith.constant 1 : index
    %c0_20 = arith.constant 0 : index
    %23 = vector.load %arg2[%c1, %c0_20] : memref<16x176xf32, #tpu.memory_space<vmem>>, vector<1x176xf32>
    %24 = vector.broadcast %22 : vector<1x176xf32> to vector<256x176xf32>
    %25 = arith.cmpf oge, %21, %24 : vector<256x176xf32>
    %26 = vector.broadcast %23 : vector<1x176xf32> to vector<256x176xf32>
    %27 = arith.cmpf olt, %21, %26 : vector<256x176xf32>
    %28 = arith.andi %25, %27 : vector<256x176xi1>
    %29 = arith.extui %28 : vector<256x176xi1> to vector<256x176xi32>
    %30 = arith.sitofp %29 : vector<256x176xi32> to vector<256x176xf32>
    %c0_21 = arith.constant 0 : index
    %c0_22 = arith.constant 0 : index
    %31 = vector.load %arg5[%c0_21, %c0_22] : memref<256x208xf32, #tpu.memory_space<vmem>>, vector<256x176xf32>
    tpu.vector_store %arg5[%c0_21, %c0_22], %30 {strides = array<i32>} : memref<256x208xf32, #tpu.memory_space<vmem>>, vector<256x176xf32>,
    %c2 = arith.constant 2 : index
    %c0_23 = arith.constant 0 : index
    %32 = vector.load %arg2[%c2, %c0_23] : memref<16x176xf32, #tpu.memory_space<vmem>>, vector<1x176xf32>
    %c3 = arith.constant 3 : index
    %c0_24 = arith.constant 0 : index
    %33 = vector.load %arg2[%c3, %c0_24] : memref<16x176xf32, #tpu.memory_space<vmem>>, vector<1x176xf32>
    %c4 = arith.constant 4 : index
    %c0_25 = arith.constant 0 : index
    %34 = vector.load %arg2[%c4, %c0_25] : memref<16x176xf32, #tpu.memory_space<vmem>>, vector<1x176xf32>
    %c5 = arith.constant 5 : index
    %c0_26 = arith.constant 0 : index
    %35 = vector.load %arg2[%c5, %c0_26] : memref<16x176xf32, #tpu.memory_space<vmem>>, vector<1x176xf32>
    %c0_27 = arith.constant 0 : index
    %c0_28 = arith.constant 0 : index
    %36 = vector.load %arg6[%c0_27, %c0_28] : memref<256x176xf32, #tpu.memory_space<vmem>>, vector<256x176xf32>
    %c0_29 = arith.constant 0 : index
    %c0_30 = arith.constant 0 : index
    %37 = vector.load %arg5[%c0_29, %c0_30] : memref<256x208xf32, #tpu.memory_space<vmem>>, vector<256x176xf32>
    %c0_31 = arith.constant 0 : index
    %c16_32 = arith.constant 16 : index
    %38 = vector.load %arg5[%c0_31, %c16_32] : memref<256x208xf32, #tpu.memory_space<vmem>>, vector<256x176xf32>
    %39 = vector.broadcast %32 : vector<1x176xf32> to vector<256x176xf32>
    %40 = arith.subf %36, %39 : vector<256x176xf32>
    %41 = vector.broadcast %33 : vector<1x176xf32> to vector<256x176xf32>
    %42 = arith.mulf %40, %41 : vector<256x176xf32>
    %43 = arith.mulf %42, %37 : vector<256x176xf32>
    %44 = vector.broadcast %34 : vector<1x176xf32> to vector<256x176xf32>
    %45 = arith.subf %44, %36 : vector<256x176xf32>
    %46 = vector.broadcast %35 : vector<1x176xf32> to vector<256x176xf32>
    %47 = arith.mulf %45, %46 : vector<256x176xf32>
    %48 = arith.mulf %47, %38 : vector<256x176xf32>
    %49 = arith.addf %43, %48 : vector<256x176xf32>
    %c0_33 = arith.constant 0 : index
    %c0_34 = arith.constant 0 : index
    %50 = vector.load %arg5[%c0_33, %c0_34] : memref<256x208xf32, #tpu.memory_space<vmem>>, vector<256x176xf32>
    tpu.vector_store %arg5[%c0_33, %c0_34], %49 {strides = array<i32>} : memref<256x208xf32, #tpu.memory_space<vmem>>, vector<256x176xf32>,
    %c6 = arith.constant 6 : index
    %c0_35 = arith.constant 0 : index
    %51 = vector.load %arg2[%c6, %c0_35] : memref<16x176xf32, #tpu.memory_space<vmem>>, vector<1x176xf32>
    %c7 = arith.constant 7 : index
    %c0_36 = arith.constant 0 : index
    %52 = vector.load %arg2[%c7, %c0_36] : memref<16x176xf32, #tpu.memory_space<vmem>>, vector<1x176xf32>
    %c8 = arith.constant 8 : index
    %c0_37 = arith.constant 0 : index
    %53 = vector.load %arg2[%c8, %c0_37] : memref<16x176xf32, #tpu.memory_space<vmem>>, vector<1x176xf32>
    %c9 = arith.constant 9 : index
    %c0_38 = arith.constant 0 : index
    %54 = vector.load %arg2[%c9, %c0_38] : memref<16x176xf32, #tpu.memory_space<vmem>>, vector<1x176xf32>
    %c0_39 = arith.constant 0 : index
    %c0_40 = arith.constant 0 : index
    %55 = vector.load %arg6[%c0_39, %c0_40] : memref<256x176xf32, #tpu.memory_space<vmem>>, vector<256x176xf32>
    %c0_41 = arith.constant 0 : index
    %c0_42 = arith.constant 0 : index
    %56 = vector.load %arg5[%c0_41, %c0_42] : memref<256x208xf32, #tpu.memory_space<vmem>>, vector<256x176xf32>
    %c0_43 = arith.constant 0 : index
    %c16_44 = arith.constant 16 : index
    %57 = vector.load %arg5[%c0_43, %c16_44] : memref<256x208xf32, #tpu.memory_space<vmem>>, vector<256x176xf32>
    %58 = vector.broadcast %51 : vector<1x176xf32> to vector<256x176xf32>
    %59 = arith.subf %55, %58 : vector<256x176xf32>
    %60 = vector.broadcast %52 : vector<1x176xf32> to vector<256x176xf32>
    %61 = arith.mulf %59, %60 : vector<256x176xf32>
    %62 = arith.mulf %61, %56 : vector<256x176xf32>
    %63 = vector.broadcast %53 : vector<1x176xf32> to vector<256x176xf32>
    %64 = arith.subf %63, %55 : vector<256x176xf32>
    %65 = vector.broadcast %54 : vector<1x176xf32> to vector<256x176xf32>
    %66 = arith.mulf %64, %65 : vector<256x176xf32>
    %67 = arith.mulf %66, %57 : vector<256x176xf32>
    %68 = arith.addf %62, %67 : vector<256x176xf32>
    %c0_45 = arith.constant 0 : index
    %c0_46 = arith.constant 0 : index
    %69 = vector.load %arg5[%c0_45, %c0_46] : memref<256x208xf32, #tpu.memory_space<vmem>>, vector<256x176xf32>
    tpu.vector_store %arg5[%c0_45, %c0_46], %68 {strides = array<i32>} : memref<256x208xf32, #tpu.memory_space<vmem>>, vector<256x176xf32>,
    %c10 = arith.constant 10 : index
    %c0_47 = arith.constant 0 : index
    %70 = vector.load %arg2[%c10, %c0_47] : memref<16x176xf32, #tpu.memory_space<vmem>>, vector<1x176xf32>
    %c11 = arith.constant 11 : index
    %c0_48 = arith.constant 0 : index
    %71 = vector.load %arg2[%c11, %c0_48] : memref<16x176xf32, #tpu.memory_space<vmem>>, vector<1x176xf32>
    %c12 = arith.constant 12 : index
    %c0_49 = arith.constant 0 : index
    %72 = vector.load %arg2[%c12, %c0_49] : memref<16x176xf32, #tpu.memory_space<vmem>>, vector<1x176xf32>
    %c13 = arith.constant 13 : index
    %c0_50 = arith.constant 0 : index
    %73 = vector.load %arg2[%c13, %c0_50] : memref<16x176xf32, #tpu.memory_space<vmem>>, vector<1x176xf32>
    %c0_51 = arith.constant 0 : index
    %c0_52 = arith.constant 0 : index
    %74 = vector.load %arg6[%c0_51, %c0_52] : memref<256x176xf32, #tpu.memory_space<vmem>>, vector<256x176xf32>
    %c0_53 = arith.constant 0 : index
    %c0_54 = arith.constant 0 : index
    %75 = vector.load %arg5[%c0_53, %c0_54] : memref<256x208xf32, #tpu.memory_space<vmem>>, vector<256x176xf32>
    %c0_55 = arith.constant 0 : index
    %c16_56 = arith.constant 16 : index
    %76 = vector.load %arg5[%c0_55, %c16_56] : memref<256x208xf32, #tpu.memory_space<vmem>>, vector<256x176xf32>
    %77 = vector.broadcast %70 : vector<1x176xf32> to vector<256x176xf32>
    %78 = arith.subf %74, %77 : vector<256x176xf32>
    %79 = vector.broadcast %71 : vector<1x176xf32> to vector<256x176xf32>
    %80 = arith.mulf %78, %79 : vector<256x176xf32>
    %81 = arith.mulf %80, %75 : vector<256x176xf32>
    %82 = vector.broadcast %72 : vector<1x176xf32> to vector<256x176xf32>
    %83 = arith.subf %82, %74 : vector<256x176xf32>
    %84 = vector.broadcast %73 : vector<1x176xf32> to vector<256x176xf32>
    %85 = arith.mulf %83, %84 : vector<256x176xf32>
    %86 = arith.mulf %85, %76 : vector<256x176xf32>
    %87 = arith.addf %81, %86 : vector<256x176xf32>
    %c0_57 = arith.constant 0 : index
    %c0_58 = arith.constant 0 : index
    %88 = vector.load %arg5[%c0_57, %c0_58] : memref<256x208xf32, #tpu.memory_space<vmem>>, vector<256x176xf32>
    tpu.vector_store %arg5[%c0_57, %c0_58], %87 {strides = array<i32>} : memref<256x208xf32, #tpu.memory_space<vmem>>, vector<256x176xf32>,
    %c0_59 = arith.constant 0 : index
    %c0_60 = arith.constant 0 : index
    %89 = vector.load %arg5[%c0_59, %c0_60] : memref<256x208xf32, #tpu.memory_space<vmem>>, vector<256x208xf32>
    %c0_61 = arith.constant 0 : index
    %c0_62 = arith.constant 0 : index
    %90 = vector.load %arg3[%c0_61, %c0_62] : memref<208x32xf32, #tpu.memory_space<vmem>>, vector<208x32xf32>
    %cst_63 = arith.constant dense<0.000000e+00> : vector<256x32xf32>
    %91 = tpu.matmul %89, %90, %cst_63 {dimension_numbers = #tpu.dot_dimension_numbers<[1], [0], [0], [1], [0, 0, 1, 1], [], []>} : vector<256x208xf32>, vector<208x32xf32>, vector<256x32xf32> -> vector<256x32xf32>
    %c0_64 = arith.constant 0 : index
    %c0_65 = arith.constant 0 : index
    %92 = vector.load %arg4[%c0_64, %c0_65] : memref<256x32xf32, #tpu.memory_space<vmem>>, vector<256x32xf32>
    tpu.vector_store %arg4[%c0_64, %c0_65], %91 {strides = array<i32>} : memref<256x32xf32, #tpu.memory_space<vmem>>, vector<256x32xf32>,
    return
  }
  func.func @transform_0(%arg0: i32) -> (i32, i32) {
    %c0_i32 = arith.constant 0 : i32
    %c0_i32_0 = arith.constant 0 : i32
    return %arg0, %c0_i32 : i32, i32
  }
  func.func @transform_1(%arg0: i32) -> (i32, i32) {
    %c0_i32 = arith.constant 0 : i32
    %c0_i32_0 = arith.constant 0 : i32
    %c0_i32_1 = arith.constant 0 : i32
    return %c0_i32, %c0_i32_0 : i32, i32
  }
  func.func @transform_2(%arg0: i32) -> (i32, i32) {
    %c0_i32 = arith.constant 0 : i32
    %c0_i32_0 = arith.constant 0 : i32
    %c0_i32_1 = arith.constant 0 : i32
    return %c0_i32, %c0_i32_0 : i32, i32
  }
  func.func @transform_3(%arg0: i32) -> (i32, i32) {
    %c0_i32 = arith.constant 0 : i32
    %c0_i32_0 = arith.constant 0 : i32
    return %arg0, %c0_i32 : i32, i32
  }
}

</mosaic_0001>

<llo_original>
// kernel: tpu_custom_call.1
$region0: #{tpu_custom_call.1}
  #allocation0 [shape = 'u32[]', space=smem, size = 0x4, offset = 0x4, fixed_abs, tag = 'smem constant byte address 0x4 - core index']
  #allocation1 [shape = 'u32[144,128]{1,0:T(1,128)}', space=vmem, size = 0x12000, scoped, tag = 'internal scratch']
  #allocation2 [shape = 'f32[256,208]{1,0:T(8,128)}', space=vmem, size = 0x40000, scoped, tag = 'scratch operand']
  #allocation3 [shape = 'f32[256,176]{1,0:T(8,128)}', space=vmem, size = 0x40000, scoped, tag = 'scratch operand']
  %s0 = inlined_call_operand.vmem [shape: f32[512,16], index: 0, kind: input, shape index: {}]
  %s1 = inlined_call_operand.vmem [shape: f32[16,176], index: 1, kind: input, shape index: {}]
  %s2 = inlined_call_operand.vmem [shape: f32[208,32], index: 2, kind: input, shape index: {}]
  %s3 = inlined_call_operand.vmem [shape: f32[512,32], index: 3, kind: output, shape index: {}]
  %s4 = sld [smem:[#allocation0]]
  $region45: #{tpu_custom_call.1} parent=0
    _
  %s6 = ssub.s32 1, %s4
  %s7 = scalar_select 0, %s6, %s4
  loop: start=0, step=1, limit=4
  $region2: #{tpu_custom_call.1} parent=0 // loop_pre_header
    _
  $region3: #{tpu_custom_call.1} parent=0 // loop_header
    %s9 = sphi 0, %s13
    %p10 = scmp.ge.s32.totalorder %s9, 4
    %s19 = sphi 0, %s21
    %s22 = sphi 0, %s19
    %s23 = sphi 0, %s22
    %s39 = sphi 0, %s23
    %s43 = sphi 0, %s43
    %s45 = sphi 0, %s43
    %s46 = sphi 0, %s45
    %s60 = sphi 0, %s46
    %s64 = sphi 0, %s64
    %s66 = sphi 0, %s64
    %s67 = sphi 0, %s66
    %s81 = sphi 0, %s67
    %s87 = sphi 0, %s89
    %s90 = sphi 0, %s87
    %s91 = sphi 0, %s90
    %s107 = sphi 0, %s91
  $region4: #{tpu_custom_call.1} parent=0 // loop_header_branch
    %12 = sbr.rel (%p10) target = $region8
  $region5: #{tpu_custom_call.1} parent=0 // loop_body
    %s14 = ssub.s32 %s9, 1
    %s15 = ssub.s32 %s9, 2
    %s16 = sadd.s32 %s9, 1
    %s17 = ssub.s32 %s9, %s16
    %p18 = scmp.eq.s32.totalorder %s17, 0
    %s20 = sadd.s32 %s19, 1
    %s21 = scalar_select %p18, %s19, %s20
    %p24 = pneg %p18
    %p25 = scmp.eq.s32.totalorder %s9, 1
    %p26 = por %p24, %p25
    %p27 = scmp.ne.s32.totalorder %s19, %s22
    %p28 = scmp.eq.s32.totalorder %s9, 0
    %p29 = por %p27, %p28
    %p30 = scmp.ne.s32.totalorder %s19, %s22
    %p31 = scmp.eq.s32.totalorder %s14, 1
    %p32 = por %p30, %p31
    %p33 = scmp.ne.s32.totalorder %s22, %s23
    %p34 = scmp.eq.s32.totalorder %s14, 0
    %p35 = por %p33, %p34
    %p36 = scmp.ne.s32.totalorder %s22, %s23
    %p37 = scmp.eq.s32.totalorder %s15, 1
    %p38 = por %p36, %p37
    %p40 = scmp.ne.s32.totalorder %s23, %s39
    %p41 = scmp.eq.s32.totalorder %s15, 0
    %p42 = por %p40, %p41
    %s44 = sadd.s32 %s43, 1
    %p47 = scmp.eq.s32.totalorder %s9, 1
    %p48 = scmp.ne.s32.totalorder %s43, %s45
    %p49 = scmp.eq.s32.totalorder %s9, 0
    %p50 = por %p48, %p49
    %p51 = scmp.ne.s32.totalorder %s43, %s45
    %p52 = scmp.eq.s32.totalorder %s14, 1
    %p53 = por %p51, %p52
    %p54 = scmp.ne.s32.totalorder %s45, %s46
    %p55 = scmp.eq.s32.totalorder %s14, 0
    %p56 = por %p54, %p55
    %p57 = scmp.ne.s32.totalorder %s45, %s46
    %p58 = scmp.eq.s32.totalorder %s15, 1
    %p59 = por %p57, %p58
    %p61 = scmp.ne.s32.totalorder %s46, %s60
    %p62 = scmp.eq.s32.totalorder %s15, 0
    %p63 = por %p61, %p62
    %s65 = sadd.s32 %s64, 1
    %p68 = scmp.eq.s32.totalorder %s9, 1
    %p69 = scmp.ne.s32.totalorder %s64, %s66
    %p70 = scmp.eq.s32.totalorder %s9, 0
    %p71 = por %p69, %p70
    %p72 = scmp.ne.s32.totalorder %s64, %s66
    %p73 = scmp.eq.s32.totalorder %s14, 1
    %p74 = por %p72, %p73
    %p75 = scmp.ne.s32.totalorder %s66, %s67
    %p76 = scmp.eq.s32.totalorder %s14, 0
    %p77 = por %p75, %p76
    %p78 = scmp.ne.s32.totalorder %s66, %s67
    %p79 = scmp.eq.s32.totalorder %s15, 1
    %p80 = por %p78, %p79
    %p82 = scmp.ne.s32.totalorder %s67, %s81
    %p83 = scmp.eq.s32.totalorder %s15, 0
    %p84 = por %p82, %p83
    %s85 = ssub.s32 %s9, %s16
    %p86 = scmp.eq.s32.totalorder %s85, 0
    %s88 = sadd.s32 %s87, 1
    %s89 = scalar_select %p86, %s87, %s88
    %p92 = pneg %p86
    %p93 = scmp.eq.s32.totalorder %s9, 1
    %p94 = por %p92, %p93
    %p95 = scmp.ne.s32.totalorder %s87, %s90
    %p96 = scmp.eq.s32.totalorder %s9, 0
    %p97 = por %p95, %p96
    %p98 = scmp.ne.s32.totalorder %s87, %s90
    %p99 = scmp.eq.s32.totalorder %s14, 1
    %p100 = por %p98, %p99
    %p101 = scmp.ne.s32.totalorder %s90, %s91
    %p102 = scmp.eq.s32.totalorder %s14, 0
    %p103 = por %p101, %p102
    %p104 = scmp.ne.s32.totalorder %s90, %s91
    %p105 = scmp.eq.s32.totalorder %s15, 1
    %p106 = por %p104, %p105
    %p108 = scmp.ne.s32.totalorder %s91, %s107
    %p109 = scmp.eq.s32.totalorder %s15, 0
    %p110 = por %p108, %p109
    %p111 = scmp.le.s32.totalorder 1, %s9
    %p112 = scmp.lt.s32.totalorder %s9, 3
    %p113 = pnand %p111, %p112
    %p114 = pneg %p113
    // Predicated region
    $region9: #{tpu_custom_call.1} parent=5 // pred_check
      _
    $region10: #{tpu_custom_call.1} parent=5 // pred_check_branch
      %116 = sbr.rel (%p113) target = $region12
    $region11: #{tpu_custom_call.1} parent=5 // pred_region
      %s117 = ssub.s32 %s9, 1
      // Predicated region
      $region13: #{tpu_custom_call.1} parent=11 // pred_check
        %p118 = pneg %p56
      $region14: #{tpu_custom_call.1} parent=11 // pred_check_branch
        %120 = sbr.rel (%p118) target = $region16
      $region15: #{tpu_custom_call.1} parent=11 // pred_region
        _
      $region16: #{tpu_custom_call.1} parent=11 // pred_fallthru
        _
      // Predicated region
      $region17: #{tpu_custom_call.1} parent=11 // pred_check
        %p121 = pneg %p77
      $region18: #{tpu_custom_call.1} parent=11 // pred_check_branch
        %123 = sbr.rel (%p121) target = $region20
      $region19: #{tpu_custom_call.1} parent=11 // pred_region
        _
      $region20: #{tpu_custom_call.1} parent=11 // pred_fallthru
        _
    $region12: #{tpu_custom_call.1} parent=5 // pred_fallthru
      _
    %p124 = scmp.lt.s32.totalorder %s9, 2
    // Predicated region
    $region21: #{tpu_custom_call.1} parent=5 // pred_check
      %p125 = pneg %p124
    $region22: #{tpu_custom_call.1} parent=5 // pred_check_branch
      %127 = sbr.rel (%p125) target = $region24
    $region23: #{tpu_custom_call.1} parent=5 // pred_region
      // Predicated region
      $region25: #{tpu_custom_call.1} parent=23 // pred_check
        %p128 = pneg %p29
      $region26: #{tpu_custom_call.1} parent=23 // pred_check_branch
        %130 = sbr.rel (%p128) target = $region28
      $region27: #{tpu_custom_call.1} parent=23 // pred_region
        %s131 = smul.u32 32, %s9
        %p132 = scmp.lt.s32.totalorder %s131, 63
        %s133 = scalar_select %p132, %s131, 63
        %s134 = smul.addr %s133, 8
        %s135 = scalar_lea.vmem %s0, %s134
        %s136 = smul.u32 32, %s9
      $region28: #{tpu_custom_call.1} parent=23 // pred_fallthru
        _
    $region24: #{tpu_custom_call.1} parent=5 // pred_fallthru
      _
    %p137 = scmp.le.s32.totalorder 1, %s9
    %p138 = scmp.lt.s32.totalorder %s9, 3
    %p139 = pnand %p137, %p138
    %p140 = pneg %p139
    // Predicated region
    $region29: #{tpu_custom_call.1} parent=5 // pred_check
      _
    $region30: #{tpu_custom_call.1} parent=5 // pred_check_branch
      %142 = sbr.rel (%p139) target = $region32
    $region31: #{tpu_custom_call.1} parent=5 // pred_region
      %s143 = ssub.s32 %s9, 1
      %s144 = smul.u32 32, %s14
      %p145 = scmp.lt.s32.totalorder %s144, 63
      %s146 = scalar_select %p145, %s144, 63
      %s147 = smul.addr %s146, 8
      %s148 = scalar_lea.vmem %s0, %s147
      %p149 = pneg %p35
      %p150 = pneg %p32
      %p151 = pneg %p56
      %p152 = pneg %p53
      %p153 = pneg %p77
      %p154 = pneg %p74
      %p155 = pneg %p103
      %p156 = pneg %p100
      %s157 = smul.u32 32, %s14
      %p158 = scmp.lt.s32.totalorder %s157, 63
      %s159 = scalar_select %p158, %s157, 63
      %s160 = smul.addr %s159, 8
      %s161 = scalar_lea.vmem %s3, %s160
      %s162 = smul.u32 32, %s14
      %p163 = scmp.lt.s32.totalorder %s162, 63
      %s164 = scalar_select %p163, %s162, 63
      %s165 = smul.addr %s164, 8
      %s166 = scalar_lea.vmem %s0, %s165
      %s167 = smul.u32 32, %s14
      %s168 = smul.u32 32, %s14
      %p169 = scmp.lt.s32.totalorder %s168, 63
      %s170 = scalar_select %p169, %s168, 63
      %s171 = smul.addr %s170, 8
      %s172 = scalar_lea.vmem %s3, %s171
      %s173 = smul.u32 32, %s14
      %v174 = vld [vmem:[%s166] sm:$0xff]
      %v175 = vld [vmem:[%s166 + $0x8] sm:$0xff]
      %v176 = vld [vmem:[%s166 + $0x10] sm:$0xff]
      %v177 = vld [vmem:[%s166 + $0x18] sm:$0xff]
      %v178 = vld [vmem:[%s166 + $0x20] sm:$0xff]
      %v179 = vld [vmem:[%s166 + $0x28] sm:$0xff]
      %v180 = vld [vmem:[%s166 + $0x30] sm:$0xff]
      %v181 = vld [vmem:[%s166 + $0x38] sm:$0xff]
      %v182 = vld [vmem:[%s166 + $0x40] sm:$0xff]
      %v183 = vld [vmem:[%s166 + $0x48] sm:$0xff]
      %v184 = vld [vmem:[%s166 + $0x50] sm:$0xff]
      %v185 = vld [vmem:[%s166 + $0x58] sm:$0xff]
      %v186 = vld [vmem:[%s166 + $0x60] sm:$0xff]
      %v187 = vld [vmem:[%s166 + $0x68] sm:$0xff]
      %v188 = vld [vmem:[%s166 + $0x70] sm:$0xff]
      %v189 = vld [vmem:[%s166 + $0x78] sm:$0xff]
      %v190 = vld [vmem:[%s166 + $0x80] sm:$0xff]
      %v191 = vld [vmem:[%s166 + $0x88] sm:$0xff]
      %v192 = vld [vmem:[%s166 + $0x90] sm:$0xff]
      %v193 = vld [vmem:[%s166 + $0x98] sm:$0xff]
      %v194 = vld [vmem:[%s166 + $0xa0] sm:$0xff]
      %v195 = vld [vmem:[%s166 + $0xa8] sm:$0xff]
      %v196 = vld [vmem:[%s166 + $0xb0] sm:$0xff]
      %v197 = vld [vmem:[%s166 + $0xb8] sm:$0xff]
      %v198 = vld [vmem:[%s166 + $0xc0] sm:$0xff]
      %v199 = vld [vmem:[%s166 + $0xc8] sm:$0xff]
      %v200 = vld [vmem:[%s166 + $0xd0] sm:$0xff]
      %v201 = vld [vmem:[%s166 + $0xd8] sm:$0xff]
      %v202 = vld [vmem:[%s166 + $0xe0] sm:$0xff]
      %v203 = vld [vmem:[%s166 + $0xe8] sm:$0xff]
      %v204 = vld [vmem:[%s166 + $0xf0] sm:$0xff]
      %v205 = vld [vmem:[%s166 + $0xf8] sm:$0xff]
      %v206 = vxor.u32 %v174, 2147483648
      %v207 = vxor.u32 %v175, 2147483648
      %v208 = vxor.u32 %v176, 2147483648
      %v209 = vxor.u32 %v177, 2147483648
      %v210 = vxor.u32 %v178, 2147483648
      %v211 = vxor.u32 %v179, 2147483648
      %v212 = vxor.u32 %v180, 2147483648
      %v213 = vxor.u32 %v181, 2147483648
      %v214 = vxor.u32 %v182, 2147483648
      %v215 = vxor.u32 %v183, 2147483648
      %v216 = vxor.u32 %v184, 2147483648
      %v217 = vxor.u32 %v185, 2147483648
      %v218 = vxor.u32 %v186, 2147483648
      %v219 = vxor.u32 %v187, 2147483648
      %v220 = vxor.u32 %v188, 2147483648
      %v221 = vxor.u32 %v189, 2147483648
      %v222 = vxor.u32 %v190, 2147483648
      %v223 = vxor.u32 %v191, 2147483648
      %v224 = vxor.u32 %v192, 2147483648
      %v225 = vxor.u32 %v193, 2147483648
      %v226 = vxor.u32 %v194, 2147483648
      %v227 = vxor.u32 %v195, 2147483648
      %v228 = vxor.u32 %v196, 2147483648
      %v229 = vxor.u32 %v197, 2147483648
      %v230 = vxor.u32 %v198, 2147483648
      %v231 = vxor.u32 %v199, 2147483648
      %v232 = vxor.u32 %v200, 2147483648
      %v233 = vxor.u32 %v201, 2147483648
      %v234 = vxor.u32 %v202, 2147483648
      %v235 = vxor.u32 %v203, 2147483648
      %v236 = vxor.u32 %v204, 2147483648
      %v237 = vxor.u32 %v205, 2147483648
      %v238 = vmul.f32 %v206, 1.442695
      %v239 = vpow.pop %v238
      %v240 = vmul.f32 %v207, 1.442695
      %v241 = vpow.pop %v240
      %v242 = vmul.f32 %v208, 1.442695
      %v243 = vpow.pop %v242
      %v244 = vmul.f32 %v209, 1.442695
      %v245 = vpow.pop %v244
      %v246 = vmul.f32 %v210, 1.442695
      %v247 = vpow.pop %v246
      %v248 = vmul.f32 %v211, 1.442695
      %v249 = vpow.pop %v248
      %v250 = vmul.f32 %v212, 1.442695
      %v251 = vpow.pop %v250
      %v252 = vmul.f32 %v213, 1.442695
      %v253 = vpow.pop %v252
      %v254 = vmul.f32 %v214, 1.442695
      %v255 = vpow.pop %v254
      %v256 = vmul.f32 %v215, 1.442695
      %v257 = vpow.pop %v256
      %v258 = vmul.f32 %v216, 1.442695
      %v259 = vpow.pop %v258
      %v260 = vmul.f32 %v217, 1.442695
      %v261 = vpow.pop %v260
      %v262 = vmul.f32 %v218, 1.442695
      %v263 = vpow.pop %v262
      %v264 = vmul.f32 %v219, 1.442695
      %v265 = vpow.pop %v264
      %v266 = vmul.f32 %v220, 1.442695
      %v267 = vpow.pop %v266
      %v268 = vmul.f32 %v221, 1.442695
      %v269 = vpow.pop %v268
      %v270 = vmul.f32 %v222, 1.442695
      %v271 = vpow.pop %v270
      %v272 = vmul.f32 %v223, 1.442695
      %v273 = vpow.pop %v272
      %v274 = vmul.f32 %v224, 1.442695
      %v275 = vpow.pop %v274
      %v276 = vmul.f32 %v225, 1.442695
      %v277 = vpow.pop %v276
      %v278 = vmul.f32 %v226, 1.442695
      %v279 = vpow.pop %v278
      %v280 = vmul.f32 %v227, 1.442695
      %v281 = vpow.pop %v280
      %v282 = vmul.f32 %v228, 1.442695
      %v283 = vpow.pop %v282
      %v284 = vmul.f32 %v229, 1.442695
      %v285 = vpow.pop %v284
      %v286 = vmul.f32 %v230, 1.442695
      %v287 = vpow.pop %v286
      %v288 = vmul.f32 %v231, 1.442695
      %v289 = vpow.pop %v288
      %v290 = vmul.f32 %v232, 1.442695
      %v291 = vpow.pop %v290
      %v292 = vmul.f32 %v233, 1.442695
      %v293 = vpow.pop %v292
      %v294 = vmul.f32 %v234, 1.442695
      %v295 = vpow.pop %v294
      %v296 = vmul.f32 %v235, 1.442695
      %v297 = vpow.pop %v296
      %v298 = vmul.f32 %v236, 1.442695
      %v299 = vpow.pop %v298
      %v300 = vmul.f32 %v237, 1.442695
      %v301 = vpow.pop %v300
      %v302 = vadd.f32 %v239, 1.0
      %v303 = vadd.f32 %v241, 1.0
      %v304 = vadd.f32 %v243, 1.0
      %v305 = vadd.f32 %v245, 1.0
      %v306 = vadd.f32 %v247, 1.0
      %v307 = vadd.f32 %v249, 1.0
      %v308 = vadd.f32 %v251, 1.0
      %v309 = vadd.f32 %v253, 1.0
      %v310 = vadd.f32 %v255, 1.0
      %v311 = vadd.f32 %v257, 1.0
      %v312 = vadd.f32 %v259, 1.0
      %v313 = vadd.f32 %v261, 1.0
      %v314 = vadd.f32 %v263, 1.0
      %v315 = vadd.f32 %v265, 1.0
      %v316 = vadd.f32 %v267, 1.0
      %v317 = vadd.f32 %v269, 1.0
      %v318 = vadd.f32 %v271, 1.0
      %v319 = vadd.f32 %v273, 1.0
      %v320 = vadd.f32 %v275, 1.0
      %v321 = vadd.f32 %v277, 1.0
      %v322 = vadd.f32 %v279, 1.0
      %v323 = vadd.f32 %v281, 1.0
      %v324 = vadd.f32 %v283, 1.0
      %v325 = vadd.f32 %v285, 1.0
      %v326 = vadd.f32 %v287, 1.0
      %v327 = vadd.f32 %v289, 1.0
      %v328 = vadd.f32 %v291, 1.0
      %v329 = vadd.f32 %v293, 1.0
      %v330 = vadd.f32 %v295, 1.0
      %v331 = vadd.f32 %v297, 1.0
      %v332 = vadd.f32 %v299, 1.0
      %v333 = vadd.f32 %v301, 1.0
      %v334 = vrcp.pop %v302
      %v335 = vmul.f32 1.0, %v334
      %v336 = vrcp.pop %v303
      %v337 = vmul.f32 1.0, %v336
      %v338 = vrcp.pop %v304
      %v339 = vmul.f32 1.0, %v338
      %v340 = vrcp.pop %v305
      %v341 = vmul.f32 1.0, %v340
      %v342 = vrcp.pop %v306
      %v343 = vmul.f32 1.0, %v342
      %v344 = vrcp.pop %v307
      %v345 = vmul.f32 1.0, %v344
      %v346 = vrcp.pop %v308
      %v347 = vmul.f32 1.0, %v346
      %v348 = vrcp.pop %v309
      %v349 = vmul.f32 1.0, %v348
      %v350 = vrcp.pop %v310
      %v351 = vmul.f32 1.0, %v350
      %v352 = vrcp.pop %v311
      %v353 = vmul.f32 1.0, %v352
      %v354 = vrcp.pop %v312
      %v355 = vmul.f32 1.0, %v354
      %v356 = vrcp.pop %v313
      %v357 = vmul.f32 1.0, %v356
      %v358 = vrcp.pop %v314
      %v359 = vmul.f32 1.0, %v358
      %v360 = vrcp.pop %v315
      %v361 = vmul.f32 1.0, %v360
      %v362 = vrcp.pop %v316
      %v363 = vmul.f32 1.0, %v362
      %v364 = vrcp.pop %v317
      %v365 = vmul.f32 1.0, %v364
      %v366 = vrcp.pop %v318
      %v367 = vmul.f32 1.0, %v366
      %v368 = vrcp.pop %v319
      %v369 = vmul.f32 1.0, %v368
      %v370 = vrcp.pop %v320
      %v371 = vmul.f32 1.0, %v370
      %v372 = vrcp.pop %v321
      %v373 = vmul.f32 1.0, %v372
      %v374 = vrcp.pop %v322
      %v375 = vmul.f32 1.0, %v374
      %v376 = vrcp.pop %v323
      %v377 = vmul.f32 1.0, %v376
      %v378 = vrcp.pop %v324
      %v379 = vmul.f32 1.0, %v378
      %v380 = vrcp.pop %v325
      %v381 = vmul.f32 1.0, %v380
      %v382 = vrcp.pop %v326
      %v383 = vmul.f32 1.0, %v382
      %v384 = vrcp.pop %v327
      %v385 = vmul.f32 1.0, %v384
      %v386 = vrcp.pop %v328
      %v387 = vmul.f32 1.0, %v386
      %v388 = vrcp.pop %v329
      %v389 = vmul.f32 1.0, %v388
      %v390 = vrcp.pop %v330
      %v391 = vmul.f32 1.0, %v390
      %v392 = vrcp.pop %v331
      %v393 = vmul.f32 1.0, %v392
      %v394 = vrcp.pop %v332
      %v395 = vmul.f32 1.0, %v394
      %v396 = vrcp.pop %v333
      %v397 = vmul.f32 1.0, %v396
      %v398 = vmul.f32 %v174, %v335
      %v399 = vmul.f32 %v175, %v337
      %v400 = vmul.f32 %v176, %v339
      %v401 = vmul.f32 %v177, %v341
      %v402 = vmul.f32 %v178, %v343
      %v403 = vmul.f32 %v179, %v345
      %v404 = vmul.f32 %v180, %v347
      %v405 = vmul.f32 %v181, %v349
      %v406 = vmul.f32 %v182, %v351
      %v407 = vmul.f32 %v183, %v353
      %v408 = vmul.f32 %v184, %v355
      %v409 = vmul.f32 %v185, %v357
      %v410 = vmul.f32 %v186, %v359
      %v411 = vmul.f32 %v187, %v361
      %v412 = vmul.f32 %v188, %v363
      %v413 = vmul.f32 %v189, %v365
      %v414 = vmul.f32 %v190, %v367
      %v415 = vmul.f32 %v191, %v369
      %v416 = vmul.f32 %v192, %v371
      %v417 = vmul.f32 %v193, %v373
      %v418 = vmul.f32 %v194, %v375
      %v419 = vmul.f32 %v195, %v377
      %v420 = vmul.f32 %v196, %v379
      %v421 = vmul.f32 %v197, %v381
      %v422 = vmul.f32 %v198, %v383
      %v423 = vmul.f32 %v199, %v385
      %v424 = vmul.f32 %v200, %v387
      %v425 = vmul.f32 %v201, %v389
      %v426 = vmul.f32 %v202, %v391
      %v427 = vmul.f32 %v203, %v393
      %v428 = vmul.f32 %v204, %v395
      %v429 = vmul.f32 %v205, %v397
      %462 = vrot.lane.b32.xlu0 %v398, 64
      %v463 = vpop.permute.xlu0 %462
      %464 = vrot.lane.b32.xlu0 %v399, 64
      %v465 = vpop.permute.xlu0 %464
      %466 = vrot.lane.b32.xlu0 %v400, 64
      %v467 = vpop.permute.xlu0 %466
      %468 = vrot.lane.b32.xlu0 %v401, 64
      %v469 = vpop.permute.xlu0 %468
      %470 = vrot.lane.b32.xlu0 %v402, 64
      %v471 = vpop.permute.xlu0 %470
      %472 = vrot.lane.b32.xlu0 %v403, 64
      %v473 = vpop.permute.xlu0 %472
      %474 = vrot.lane.b32.xlu0 %v404, 64
      %v475 = vpop.permute.xlu0 %474
      %476 = vrot.lane.b32.xlu0 %v405, 64
      %v477 = vpop.permute.xlu0 %476
      %478 = vrot.lane.b32.xlu0 %v406, 64
      %v479 = vpop.permute.xlu0 %478
      %480 = vrot.lane.b32.xlu0 %v407, 64
      %v481 = vpop.permute.xlu0 %480
      %482 = vrot.lane.b32.xlu0 %v408, 64
      %v483 = vpop.permute.xlu0 %482
      %484 = vrot.lane.b32.xlu0 %v409, 64
      %v485 = vpop.permute.xlu0 %484
      %486 = vrot.lane.b32.xlu0 %v410, 64
      %v487 = vpop.permute.xlu0 %486
      %488 = vrot.lane.b32.xlu0 %v411, 64
      %v489 = vpop.permute.xlu0 %488
      %490 = vrot.lane.b32.xlu0 %v412, 64
      %v491 = vpop.permute.xlu0 %490
      %492 = vrot.lane.b32.xlu0 %v413, 64
      %v493 = vpop.permute.xlu0 %492
      %494 = vrot.lane.b32.xlu0 %v414, 64
      %v495 = vpop.permute.xlu0 %494
      %496 = vrot.lane.b32.xlu0 %v415, 64
      %v497 = vpop.permute.xlu0 %496
      %498 = vrot.lane.b32.xlu0 %v416, 64
      %v499 = vpop.permute.xlu0 %498
      %500 = vrot.lane.b32.xlu0 %v417, 64
      %v501 = vpop.permute.xlu0 %500
      %502 = vrot.lane.b32.xlu0 %v418, 64
      %v503 = vpop.permute.xlu0 %502
      %504 = vrot.lane.b32.xlu0 %v419, 64
      %v505 = vpop.permute.xlu0 %504
      %506 = vrot.lane.b32.xlu0 %v420, 64
      %v507 = vpop.permute.xlu0 %506
      %508 = vrot.lane.b32.xlu0 %v421, 64
      %v509 = vpop.permute.xlu0 %508
      %510 = vrot.lane.b32.xlu0 %v422, 64
      %v511 = vpop.permute.xlu0 %510
      %512 = vrot.lane.b32.xlu0 %v423, 64
      %v513 = vpop.permute.xlu0 %512
      %514 = vrot.lane.b32.xlu0 %v424, 64
      %v515 = vpop.permute.xlu0 %514
      %516 = vrot.lane.b32.xlu0 %v425, 64
      %v517 = vpop.permute.xlu0 %516
      %518 = vrot.lane.b32.xlu0 %v426, 64
      %v519 = vpop.permute.xlu0 %518
      %520 = vrot.lane.b32.xlu0 %v427, 64
      %v521 = vpop.permute.xlu0 %520
      %522 = vrot.lane.b32.xlu0 %v428, 64
      %v523 = vpop.permute.xlu0 %522
      %524 = vrot.lane.b32.xlu0 %v429, 64
      %v525 = vpop.permute.xlu0 %524
      %vm558 = vcmask 654848
      %559 = vst.msk [vmem:[#allocation2 + $0x8] sm:$0xff] %vm558, %v463
      %560 = vst.msk [vmem:[#allocation2 + $0x18] sm:$0xff] %vm558, %v465
      %561 = vst.msk [vmem:[#allocation2 + $0x28] sm:$0xff] %vm558, %v467
      %562 = vst.msk [vmem:[#allocation2 + $0x38] sm:$0xff] %vm558, %v469
      %563 = vst.msk [vmem:[#allocation2 + $0x48] sm:$0xff] %vm558, %v471
      %564 = vst.msk [vmem:[#allocation2 + $0x58] sm:$0xff] %vm558, %v473
      %565 = vst.msk [vmem:[#allocation2 + $0x68] sm:$0xff] %vm558, %v475
      %566 = vst.msk [vmem:[#allocation2 + $0x78] sm:$0xff] %vm558, %v477
      %567 = vst.msk [vmem:[#allocation2 + $0x88] sm:$0xff] %vm558, %v479
      %568 = vst.msk [vmem:[#allocation2 + $0x98] sm:$0xff] %vm558, %v481
      %569 = vst.msk [vmem:[#allocation2 + $0xa8] sm:$0xff] %vm558, %v483
      %570 = vst.msk [vmem:[#allocation2 + $0xb8] sm:$0xff] %vm558, %v485
      %571 = vst.msk [vmem:[#allocation2 + $0xc8] sm:$0xff] %vm558, %v487
      %572 = vst.msk [vmem:[#allocation2 + $0xd8] sm:$0xff] %vm558, %v489
      %573 = vst.msk [vmem:[#allocation2 + $0xe8] sm:$0xff] %vm558, %v491
      %574 = vst.msk [vmem:[#allocation2 + $0xf8] sm:$0xff] %vm558, %v493
      %575 = vst.msk [vmem:[#allocation2 + $0x108] sm:$0xff] %vm558, %v495
      %576 = vst.msk [vmem:[#allocation2 + $0x118] sm:$0xff] %vm558, %v497
      %577 = vst.msk [vmem:[#allocation2 + $0x128] sm:$0xff] %vm558, %v499
      %578 = vst.msk [vmem:[#allocation2 + $0x138] sm:$0xff] %vm558, %v501
      %579 = vst.msk [vmem:[#allocation2 + $0x148] sm:$0xff] %vm558, %v503
      %580 = vst.msk [vmem:[#allocation2 + $0x158] sm:$0xff] %vm558, %v505
      %581 = vst.msk [vmem:[#allocation2 + $0x168] sm:$0xff] %vm558, %v507
      %582 = vst.msk [vmem:[#allocation2 + $0x178] sm:$0xff] %vm558, %v509
      %583 = vst.msk [vmem:[#allocation2 + $0x188] sm:$0xff] %vm558, %v511
      %584 = vst.msk [vmem:[#allocation2 + $0x198] sm:$0xff] %vm558, %v513
      %585 = vst.msk [vmem:[#allocation2 + $0x1a8] sm:$0xff] %vm558, %v515
      %586 = vst.msk [vmem:[#allocation2 + $0x1b8] sm:$0xff] %vm558, %v517
      %587 = vst.msk [vmem:[#allocation2 + $0x1c8] sm:$0xff] %vm558, %v519
      %588 = vst.msk [vmem:[#allocation2 + $0x1d8] sm:$0xff] %vm558, %v521
      %589 = vst.msk [vmem:[#allocation2 + $0x1e8] sm:$0xff] %vm558, %v523
      %590 = vst.msk [vmem:[#allocation2 + $0x1f8] sm:$0xff] %vm558, %v525
      %vm591 = vcmask 523648
      %592 = vst.msk [vmem:[#allocation2 + $0x8] sm:$0xff] %vm591, 0.0
      %593 = vst.msk [vmem:[#allocation2 + $0x18] sm:$0xff] %vm591, 0.0
      %594 = vst.msk [vmem:[#allocation2 + $0x28] sm:$0xff] %vm591, 0.0
      %595 = vst.msk [vmem:[#allocation2 + $0x38] sm:$0xff] %vm591, 0.0
      %596 = vst.msk [vmem:[#allocation2 + $0x48] sm:$0xff] %vm591, 0.0
      %597 = vst.msk [vmem:[#allocation2 + $0x58] sm:$0xff] %vm591, 0.0
      %598 = vst.msk [vmem:[#allocation2 + $0x68] sm:$0xff] %vm591, 0.0
      %599 = vst.msk [vmem:[#allocation2 + $0x78] sm:$0xff] %vm591, 0.0
      %600 = vst.msk [vmem:[#allocation2 + $0x88] sm:$0xff] %vm591, 0.0
      %601 = vst.msk [vmem:[#allocation2 + $0x98] sm:$0xff] %vm591, 0.0
      %602 = vst.msk [vmem:[#allocation2 + $0xa8] sm:$0xff] %vm591, 0.0
      %603 = vst.msk [vmem:[#allocation2 + $0xb8] sm:$0xff] %vm591, 0.0
      %604 = vst.msk [vmem:[#allocation2 + $0xc8] sm:$0xff] %vm591, 0.0
      %605 = vst.msk [vmem:[#allocation2 + $0xd8] sm:$0xff] %vm591, 0.0
      %606 = vst.msk [vmem:[#allocation2 + $0xe8] sm:$0xff] %vm591, 0.0
      %607 = vst.msk [vmem:[#allocation2 + $0xf8] sm:$0xff] %vm591, 0.0
      %608 = vst.msk [vmem:[#allocation2 + $0x108] sm:$0xff] %vm591, 0.0
      %609 = vst.msk [vmem:[#allocation2 + $0x118] sm:$0xff] %vm591, 0.0
      %610 = vst.msk [vmem:[#allocation2 + $0x128] sm:$0xff] %vm591, 0.0
      %611 = vst.msk [vmem:[#allocation2 + $0x138] sm:$0xff] %vm591, 0.0
      %612 = vst.msk [vmem:[#allocation2 + $0x148] sm:$0xff] %vm591, 0.0
      %613 = vst.msk [vmem:[#allocation2 + $0x158] sm:$0xff] %vm591, 0.0
      %614 = vst.msk [vmem:[#allocation2 + $0x168] sm:$0xff] %vm591, 0.0
      %615 = vst.msk [vmem:[#allocation2 + $0x178] sm:$0xff] %vm591, 0.0
      %616 = vst.msk [vmem:[#allocation2 + $0x188] sm:$0xff] %vm591, 0.0
      %617 = vst.msk [vmem:[#allocation2 + $0x198] sm:$0xff] %vm591, 0.0
      %618 = vst.msk [vmem:[#allocation2 + $0x1a8] sm:$0xff] %vm591, 0.0
      %619 = vst.msk [vmem:[#allocation2 + $0x1b8] sm:$0xff] %vm591, 0.0
      %620 = vst.msk [vmem:[#allocation2 + $0x1c8] sm:$0xff] %vm591, 0.0
      %621 = vst.msk [vmem:[#allocation2 + $0x1d8] sm:$0xff] %vm591, 0.0
      %622 = vst.msk [vmem:[#allocation2 + $0x1e8] sm:$0xff] %vm591, 0.0
      %623 = vst.msk [vmem:[#allocation2 + $0x1f8] sm:$0xff] %vm591, 0.0
      %vm624 = vcmask 130048
      %625 = vst.msk [vmem:[#allocation3] sm:$0xff] %vm624, %v174
      %626 = vst.msk [vmem:[#allocation3 + $0x10] sm:$0xff] %vm624, %v175
      %627 = vst.msk [vmem:[#allocation3 + $0x20] sm:$0xff] %vm624, %v176
      %628 = vst.msk [vmem:[#allocation3 + $0x30] sm:$0xff] %vm624, %v177
      %629 = vst.msk [vmem:[#allocation3 + $0x40] sm:$0xff] %vm624, %v178
      %630 = vst.msk [vmem:[#allocation3 + $0x50] sm:$0xff] %vm624, %v179
      %631 = vst.msk [vmem:[#allocation3 + $0x60] sm:$0xff] %vm624, %v180
      %632 = vst.msk [vmem:[#allocation3 + $0x70] sm:$0xff] %vm624, %v181
      %633 = vst.msk [vmem:[#allocation3 + $0x80] sm:$0xff] %vm624, %v182
      %634 = vst.msk [vmem:[#allocation3 + $0x90] sm:$0xff] %vm624, %v183
      %635 = vst.msk [vmem:[#allocation3 + $0xa0] sm:$0xff] %vm624, %v184
      %636 = vst.msk [vmem:[#allocation3 + $0xb0] sm:$0xff] %vm624, %v185
      %637 = vst.msk [vmem:[#allocation3 + $0xc0] sm:$0xff] %vm624, %v186
      %638 = vst.msk [vmem:[#allocation3 + $0xd0] sm:$0xff] %vm624, %v187
      %639 = vst.msk [vmem:[#allocation3 + $0xe0] sm:$0xff] %vm624, %v188
      %640 = vst.msk [vmem:[#allocation3 + $0xf0] sm:$0xff] %vm624, %v189
      %641 = vst.msk [vmem:[#allocation3 + $0x100] sm:$0xff] %vm624, %v190
      %642 = vst.msk [vmem:[#allocation3 + $0x110] sm:$0xff] %vm624, %v191
      %643 = vst.msk [vmem:[#allocation3 + $0x120] sm:$0xff] %vm624, %v192
      %644 = vst.msk [vmem:[#allocation3 + $0x130] sm:$0xff] %vm624, %v193
      %645 = vst.msk [vmem:[#allocation3 + $0x140] sm:$0xff] %vm624, %v194
      %646 = vst.msk [vmem:[#allocation3 + $0x150] sm:$0xff] %vm624, %v195
      %647 = vst.msk [vmem:[#allocation3 + $0x160] sm:$0xff] %vm624, %v196
      %648 = vst.msk [vmem:[#allocation3 + $0x170] sm:$0xff] %vm624, %v197
      %649 = vst.msk [vmem:[#allocation3 + $0x180] sm:$0xff] %vm624, %v198
      %650 = vst.msk [vmem:[#allocation3 + $0x190] sm:$0xff] %vm624, %v199
      %651 = vst.msk [vmem:[#allocation3 + $0x1a0] sm:$0xff] %vm624, %v200
      %652 = vst.msk [vmem:[#allocation3 + $0x1b0] sm:$0xff] %vm624, %v201
      %653 = vst.msk [vmem:[#allocation3 + $0x1c0] sm:$0xff] %vm624, %v202
      %654 = vst.msk [vmem:[#allocation3 + $0x1d0] sm:$0xff] %vm624, %v203
      %655 = vst.msk [vmem:[#allocation3 + $0x1e0] sm:$0xff] %vm624, %v204
      %656 = vst.msk [vmem:[#allocation3 + $0x1f0] sm:$0xff] %vm624, %v205
      %689 = vrot.lane.b32.xlu0 %v174, 16
      %v690 = vpop.permute.xlu0 %689
      %691 = vrot.lane.b32.xlu0 %v175, 16
      %v692 = vpop.permute.xlu0 %691
      %693 = vrot.lane.b32.xlu0 %v176, 16
      %v694 = vpop.permute.xlu0 %693
      %695 = vrot.lane.b32.xlu0 %v177, 16
      %v696 = vpop.permute.xlu0 %695
      %697 = vrot.lane.b32.xlu0 %v178, 16
      %v698 = vpop.permute.xlu0 %697
      %699 = vrot.lane.b32.xlu0 %v179, 16
      %v700 = vpop.permute.xlu0 %699
      %701 = vrot.lane.b32.xlu0 %v180, 16
      %v702 = vpop.permute.xlu0 %701
      %703 = vrot.lane.b32.xlu0 %v181, 16
      %v704 = vpop.permute.xlu0 %703
      %705 = vrot.lane.b32.xlu0 %v182, 16
      %v706 = vpop.permute.xlu0 %705
      %707 = vrot.lane.b32.xlu0 %v183, 16
      %v708 = vpop.permute.xlu0 %707
      %709 = vrot.lane.b32.xlu0 %v184, 16
      %v710 = vpop.permute.xlu0 %709
      %711 = vrot.lane.b32.xlu0 %v185, 16
      %v712 = vpop.permute.xlu0 %711
      %713 = vrot.lane.b32.xlu0 %v186, 16
      %v714 = vpop.permute.xlu0 %713
      %715 = vrot.lane.b32.xlu0 %v187, 16
      %v716 = vpop.permute.xlu0 %715
      %717 = vrot.lane.b32.xlu0 %v188, 16
      %v718 = vpop.permute.xlu0 %717
      %719 = vrot.lane.b32.xlu0 %v189, 16
      %v720 = vpop.permute.xlu0 %719
      %721 = vrot.lane.b32.xlu0 %v190, 16
      %v722 = vpop.permute.xlu0 %721
      %723 = vrot.lane.b32.xlu0 %v191, 16
      %v724 = vpop.permute.xlu0 %723
      %725 = vrot.lane.b32.xlu0 %v192, 16
      %v726 = vpop.permute.xlu0 %725
      %727 = vrot.lane.b32.xlu0 %v193, 16
      %v728 = vpop.permute.xlu0 %727
      %729 = vrot.lane.b32.xlu0 %v194, 16
      %v730 = vpop.permute.xlu0 %729
      %731 = vrot.lane.b32.xlu0 %v195, 16
      %v732 = vpop.permute.xlu0 %731
      %733 = vrot.lane.b32.xlu0 %v196, 16
      %v734 = vpop.permute.xlu0 %733
      %735 = vrot.lane.b32.xlu0 %v197, 16
      %v736 = vpop.permute.xlu0 %735
      %737 = vrot.lane.b32.xlu0 %v198, 16
      %v738 = vpop.permute.xlu0 %737
      %739 = vrot.lane.b32.xlu0 %v199, 16
      %v740 = vpop.permute.xlu0 %739
      %741 = vrot.lane.b32.xlu0 %v200, 16
      %v742 = vpop.permute.xlu0 %741
      %743 = vrot.lane.b32.xlu0 %v201, 16
      %v744 = vpop.permute.xlu0 %743
      %745 = vrot.lane.b32.xlu0 %v202, 16
      %v746 = vpop.permute.xlu0 %745
      %747 = vrot.lane.b32.xlu0 %v203, 16
      %v748 = vpop.permute.xlu0 %747
      %749 = vrot.lane.b32.xlu0 %v204, 16
      %v750 = vpop.permute.xlu0 %749
      %751 = vrot.lane.b32.xlu0 %v205, 16
      %v752 = vpop.permute.xlu0 %751
      %vm785 = vcmask 261248
      %786 = vst.msk [vmem:[#allocation3] sm:$0xff] %vm785, %v690
      %787 = vst.msk [vmem:[#allocation3 + $0x10] sm:$0xff] %vm785, %v692
      %788 = vst.msk [vmem:[#allocation3 + $0x20] sm:$0xff] %vm785, %v694
      %789 = vst.msk [vmem:[#allocation3 + $0x30] sm:$0xff] %vm785, %v696
      %790 = vst.msk [vmem:[#allocation3 + $0x40] sm:$0xff] %vm785, %v698
      %791 = vst.msk [vmem:[#allocation3 + $0x50] sm:$0xff] %vm785, %v700
      %792 = vst.msk [vmem:[#allocation3 + $0x60] sm:$0xff] %vm785, %v702
      %793 = vst.msk [vmem:[#allocation3 + $0x70] sm:$0xff] %vm785, %v704
      %794 = vst.msk [vmem:[#allocation3 + $0x80] sm:$0xff] %vm785, %v706
      %795 = vst.msk [vmem:[#allocation3 + $0x90] sm:$0xff] %vm785, %v708
      %796 = vst.msk [vmem:[#allocation3 + $0xa0] sm:$0xff] %vm785, %v710
      %797 = vst.msk [vmem:[#allocation3 + $0xb0] sm:$0xff] %vm785, %v712
      %798 = vst.msk [vmem:[#allocation3 + $0xc0] sm:$0xff] %vm785, %v714
      %799 = vst.msk [vmem:[#allocation3 + $0xd0] sm:$0xff] %vm785, %v716
      %800 = vst.msk [vmem:[#allocation3 + $0xe0] sm:$0xff] %vm785, %v718
      %801 = vst.msk [vmem:[#allocation3 + $0xf0] sm:$0xff] %vm785, %v720
      %802 = vst.msk [vmem:[#allocation3 + $0x100] sm:$0xff] %vm785, %v722
      %803 = vst.msk [vmem:[#allocation3 + $0x110] sm:$0xff] %vm785, %v724
      %804 = vst.msk [vmem:[#allocation3 + $0x120] sm:$0xff] %vm785, %v726
      %805 = vst.msk [vmem:[#allocation3 + $0x130] sm:$0xff] %vm785, %v728
      %806 = vst.msk [vmem:[#allocation3 + $0x140] sm:$0xff] %vm785, %v730
      %807 = vst.msk [vmem:[#allocation3 + $0x150] sm:$0xff] %vm785, %v732
      %808 = vst.msk [vmem:[#allocation3 + $0x160] sm:$0xff] %vm785, %v734
      %809 = vst.msk [vmem:[#allocation3 + $0x170] sm:$0xff] %vm785, %v736
      %810 = vst.msk [vmem:[#allocation3 + $0x180] sm:$0xff] %vm785, %v738
      %811 = vst.msk [vmem:[#allocation3 + $0x190] sm:$0xff] %vm785, %v740
      %812 = vst.msk [vmem:[#allocation3 + $0x1a0] sm:$0xff] %vm785, %v742
      %813 = vst.msk [vmem:[#allocation3 + $0x1b0] sm:$0xff] %vm785, %v744
      %814 = vst.msk [vmem:[#allocation3 + $0x1c0] sm:$0xff] %vm785, %v746
      %815 = vst.msk [vmem:[#allocation3 + $0x1d0] sm:$0xff] %vm785, %v748
      %816 = vst.msk [vmem:[#allocation3 + $0x1e0] sm:$0xff] %vm785, %v750
      %817 = vst.msk [vmem:[#allocation3 + $0x1f0] sm:$0xff] %vm785, %v752
      %818 = vrot.lane.b32.xlu0 %v174, 32
      %v819 = vpop.permute.xlu0 %818
      %820 = vrot.lane.b32.xlu0 %v175, 32
      %v821 = vpop.permute.xlu0 %820
      %822 = vrot.lane.b32.xlu0 %v176, 32
      %v823 = vpop.permute.xlu0 %822
      %824 = vrot.lane.b32.xlu0 %v177, 32
      %v825 = vpop.permute.xlu0 %824
      %826 = vrot.lane.b32.xlu0 %v178, 32
      %v827 = vpop.permute.xlu0 %826
      %828 = vrot.lane.b32.xlu0 %v179, 32
      %v829 = vpop.permute.xlu0 %828
      %830 = vrot.lane.b32.xlu0 %v180, 32
      %v831 = vpop.permute.xlu0 %830
      %832 = vrot.lane.b32.xlu0 %v181, 32
      %v833 = vpop.permute.xlu0 %832
      %834 = vrot.lane.b32.xlu0 %v182, 32
      %v835 = vpop.permute.xlu0 %834
      %836 = vrot.lane.b32.xlu0 %v183, 32
      %v837 = vpop.permute.xlu0 %836
      %838 = vrot.lane.b32.xlu0 %v184, 32
      %v839 = vpop.permute.xlu0 %838
      %840 = vrot.lane.b32.xlu0 %v185, 32
      %v841 = vpop.permute.xlu0 %840
      %842 = vrot.lane.b32.xlu0 %v186, 32
      %v843 = vpop.permute.xlu0 %842
      %844 = vrot.lane.b32.xlu0 %v187, 32
      %v845 = vpop.permute.xlu0 %844
      %846 = vrot.lane.b32.xlu0 %v188, 32
      %v847 = vpop.permute.xlu0 %846
      %848 = vrot.lane.b32.xlu0 %v189, 32
      %v849 = vpop.permute.xlu0 %848
      %850 = vrot.lane.b32.xlu0 %v190, 32
      %v851 = vpop.permute.xlu0 %850
      %852 = vrot.lane.b32.xlu0 %v191, 32
      %v853 = vpop.permute.xlu0 %852
      %854 = vrot.lane.b32.xlu0 %v192, 32
      %v855 = vpop.permute.xlu0 %854
      %856 = vrot.lane.b32.xlu0 %v193, 32
      %v857 = vpop.permute.xlu0 %856
      %858 = vrot.lane.b32.xlu0 %v194, 32
      %v859 = vpop.permute.xlu0 %858
      %860 = vrot.lane.b32.xlu0 %v195, 32
      %v861 = vpop.permute.xlu0 %860
      %862 = vrot.lane.b32.xlu0 %v196, 32
      %v863 = vpop.permute.xlu0 %862
      %864 = vrot.lane.b32.xlu0 %v197, 32
      %v865 = vpop.permute.xlu0 %864
      %866 = vrot.lane.b32.xlu0 %v198, 32
      %v867 = vpop.permute.xlu0 %866
      %868 = vrot.lane.b32.xlu0 %v199, 32
      %v869 = vpop.permute.xlu0 %868
      %870 = vrot.lane.b32.xlu0 %v200, 32
      %v871 = vpop.permute.xlu0 %870
      %872 = vrot.lane.b32.xlu0 %v201, 32
      %v873 = vpop.permute.xlu0 %872
      %874 = vrot.lane.b32.xlu0 %v202, 32
      %v875 = vpop.permute.xlu0 %874
      %876 = vrot.lane.b32.xlu0 %v203, 32
      %v877 = vpop.permute.xlu0 %876
      %878 = vrot.lane.b32.xlu0 %v204, 32
      %v879 = vpop.permute.xlu0 %878
      %880 = vrot.lane.b32.xlu0 %v205, 32
      %v881 = vpop.permute.xlu0 %880
      %vm914 = vcmask 392448
      %915 = vst.msk [vmem:[#allocation3] sm:$0xff] %vm914, %v819
      %916 = vst.msk [vmem:[#allocation3 + $0x10] sm:$0xff] %vm914, %v821
      %917 = vst.msk [vmem:[#allocation3 + $0x20] sm:$0xff] %vm914, %v823
      %918 = vst.msk [vmem:[#allocation3 + $0x30] sm:$0xff] %vm914, %v825
      %919 = vst.msk [vmem:[#allocation3 + $0x40] sm:$0xff] %vm914, %v827
      %920 = vst.msk [vmem:[#allocation3 + $0x50] sm:$0xff] %vm914, %v829
      %921 = vst.msk [vmem:[#allocation3 + $0x60] sm:$0xff] %vm914, %v831
      %922 = vst.msk [vmem:[#allocation3 + $0x70] sm:$0xff] %vm914, %v833
      %923 = vst.msk [vmem:[#allocation3 + $0x80] sm:$0xff] %vm914, %v835
      %924 = vst.msk [vmem:[#allocation3 + $0x90] sm:$0xff] %vm914, %v837
      %925 = vst.msk [vmem:[#allocation3 + $0xa0] sm:$0xff] %vm914, %v839
      %926 = vst.msk [vmem:[#allocation3 + $0xb0] sm:$0xff] %vm914, %v841
      %927 = vst.msk [vmem:[#allocation3 + $0xc0] sm:$0xff] %vm914, %v843
      %928 = vst.msk [vmem:[#allocation3 + $0xd0] sm:$0xff] %vm914, %v845
      %929 = vst.msk [vmem:[#allocation3 + $0xe0] sm:$0xff] %vm914, %v847
      %930 = vst.msk [vmem:[#allocation3 + $0xf0] sm:$0xff] %vm914, %v849
      %931 = vst.msk [vmem:[#allocation3 + $0x100] sm:$0xff] %vm914, %v851
      %932 = vst.msk [vmem:[#allocation3 + $0x110] sm:$0xff] %vm914, %v853
      %933 = vst.msk [vmem:[#allocation3 + $0x120] sm:$0xff] %vm914, %v855
      %934 = vst.msk [vmem:[#allocation3 + $0x130] sm:$0xff] %vm914, %v857
      %935 = vst.msk [vmem:[#allocation3 + $0x140] sm:$0xff] %vm914, %v859
      %936 = vst.msk [vmem:[#allocation3 + $0x150] sm:$0xff] %vm914, %v861
      %937 = vst.msk [vmem:[#allocation3 + $0x160] sm:$0xff] %vm914, %v863
      %938 = vst.msk [vmem:[#allocation3 + $0x170] sm:$0xff] %vm914, %v865
      %939 = vst.msk [vmem:[#allocation3 + $0x180] sm:$0xff] %vm914, %v867
      %940 = vst.msk [vmem:[#allocation3 + $0x190] sm:$0xff] %vm914, %v869
      %941 = vst.msk [vmem:[#allocation3 + $0x1a0] sm:$0xff] %vm914, %v871
      %942 = vst.msk [vmem:[#allocation3 + $0x1b0] sm:$0xff] %vm914, %v873
      %943 = vst.msk [vmem:[#allocation3 + $0x1c0] sm:$0xff] %vm914, %v875
      %944 = vst.msk [vmem:[#allocation3 + $0x1d0] sm:$0xff] %vm914, %v877
      %945 = vst.msk [vmem:[#allocation3 + $0x1e0] sm:$0xff] %vm914, %v879
      %946 = vst.msk [vmem:[#allocation3 + $0x1f0] sm:$0xff] %vm914, %v881
      %947 = vrot.lane.b32.xlu0 %v174, 48
      %v948 = vpop.permute.xlu0 %947
      %949 = vrot.lane.b32.xlu0 %v175, 48
      %v950 = vpop.permute.xlu0 %949
      %951 = vrot.lane.b32.xlu0 %v176, 48
      %v952 = vpop.permute.xlu0 %951
      %953 = vrot.lane.b32.xlu0 %v177, 48
      %v954 = vpop.permute.xlu0 %953
      %955 = vrot.lane.b32.xlu0 %v178, 48
      %v956 = vpop.permute.xlu0 %955
      %957 = vrot.lane.b32.xlu0 %v179, 48
      %v958 = vpop.permute.xlu0 %957
      %959 = vrot.lane.b32.xlu0 %v180, 48
      %v960 = vpop.permute.xlu0 %959
      %961 = vrot.lane.b32.xlu0 %v181, 48
      %v962 = vpop.permute.xlu0 %961
      %963 = vrot.lane.b32.xlu0 %v182, 48
      %v964 = vpop.permute.xlu0 %963
      %965 = vrot.lane.b32.xlu0 %v183, 48
      %v966 = vpop.permute.xlu0 %965
      %967 = vrot.lane.b32.xlu0 %v184, 48
      %v968 = vpop.permute.xlu0 %967
      %969 = vrot.lane.b32.xlu0 %v185, 48
      %v970 = vpop.permute.xlu0 %969
      %971 = vrot.lane.b32.xlu0 %v186, 48
      %v972 = vpop.permute.xlu0 %971
      %973 = vrot.lane.b32.xlu0 %v187, 48
      %v974 = vpop.permute.xlu0 %973
      %975 = vrot.lane.b32.xlu0 %v188, 48
      %v976 = vpop.permute.xlu0 %975
      %977 = vrot.lane.b32.xlu0 %v189, 48
      %v978 = vpop.permute.xlu0 %977
      %979 = vrot.lane.b32.xlu0 %v190, 48
      %v980 = vpop.permute.xlu0 %979
      %981 = vrot.lane.b32.xlu0 %v191, 48
      %v982 = vpop.permute.xlu0 %981
      %983 = vrot.lane.b32.xlu0 %v192, 48
      %v984 = vpop.permute.xlu0 %983
      %985 = vrot.lane.b32.xlu0 %v193, 48
      %v986 = vpop.permute.xlu0 %985
      %987 = vrot.lane.b32.xlu0 %v194, 48
      %v988 = vpop.permute.xlu0 %987
      %989 = vrot.lane.b32.xlu0 %v195, 48
      %v990 = vpop.permute.xlu0 %989
      %991 = vrot.lane.b32.xlu0 %v196, 48
      %v992 = vpop.permute.xlu0 %991
      %993 = vrot.lane.b32.xlu0 %v197, 48
      %v994 = vpop.permute.xlu0 %993
      %995 = vrot.lane.b32.xlu0 %v198, 48
      %v996 = vpop.permute.xlu0 %995
      %997 = vrot.lane.b32.xlu0 %v199, 48
      %v998 = vpop.permute.xlu0 %997
      %999 = vrot.lane.b32.xlu0 %v200, 48
      %v1000 = vpop.permute.xlu0 %999
      %1001 = vrot.lane.b32.xlu0 %v201, 48
      %v1002 = vpop.permute.xlu0 %1001
      %1003 = vrot.lane.b32.xlu0 %v202, 48
      %v1004 = vpop.permute.xlu0 %1003
      %1005 = vrot.lane.b32.xlu0 %v203, 48
      %v1006 = vpop.permute.xlu0 %1005
      %1007 = vrot.lane.b32.xlu0 %v204, 48
      %v1008 = vpop.permute.xlu0 %1007
      %1009 = vrot.lane.b32.xlu0 %v205, 48
      %v1010 = vpop.permute.xlu0 %1009
      %1043 = vst.msk [vmem:[#allocation3] sm:$0xff] %vm591, %v948
      %1044 = vst.msk [vmem:[#allocation3 + $0x10] sm:$0xff] %vm591, %v950
      %1045 = vst.msk [vmem:[#allocation3 + $0x20] sm:$0xff] %vm591, %v952
      %1046 = vst.msk [vmem:[#allocation3 + $0x30] sm:$0xff] %vm591, %v954
      %1047 = vst.msk [vmem:[#allocation3 + $0x40] sm:$0xff] %vm591, %v956
      %1048 = vst.msk [vmem:[#allocation3 + $0x50] sm:$0xff] %vm591, %v958
      %1049 = vst.msk [vmem:[#allocation3 + $0x60] sm:$0xff] %vm591, %v960
      %1050 = vst.msk [vmem:[#allocation3 + $0x70] sm:$0xff] %vm591, %v962
      %1051 = vst.msk [vmem:[#allocation3 + $0x80] sm:$0xff] %vm591, %v964
      %1052 = vst.msk [vmem:[#allocation3 + $0x90] sm:$0xff] %vm591, %v966
      %1053 = vst.msk [vmem:[#allocation3 + $0xa0] sm:$0xff] %vm591, %v968
      %1054 = vst.msk [vmem:[#allocation3 + $0xb0] sm:$0xff] %vm591, %v970
      %1055 = vst.msk [vmem:[#allocation3 + $0xc0] sm:$0xff] %vm591, %v972
      %1056 = vst.msk [vmem:[#allocation3 + $0xd0] sm:$0xff] %vm591, %v974
      %1057 = vst.msk [vmem:[#allocation3 + $0xe0] sm:$0xff] %vm591, %v976
      %1058 = vst.msk [vmem:[#allocation3 + $0xf0] sm:$0xff] %vm591, %v978
      %1059 = vst.msk [vmem:[#allocation3 + $0x100] sm:$0xff] %vm591, %v980
      %1060 = vst.msk [vmem:[#allocation3 + $0x110] sm:$0xff] %vm591, %v982
      %1061 = vst.msk [vmem:[#allocation3 + $0x120] sm:$0xff] %vm591, %v984
      %1062 = vst.msk [vmem:[#allocation3 + $0x130] sm:$0xff] %vm591, %v986
      %1063 = vst.msk [vmem:[#allocation3 + $0x140] sm:$0xff] %vm591, %v988
      %1064 = vst.msk [vmem:[#allocation3 + $0x150] sm:$0xff] %vm591, %v990
      %1065 = vst.msk [vmem:[#allocation3 + $0x160] sm:$0xff] %vm591, %v992
      %1066 = vst.msk [vmem:[#allocation3 + $0x170] sm:$0xff] %vm591, %v994
      %1067 = vst.msk [vmem:[#allocation3 + $0x180] sm:$0xff] %vm591, %v996
      %1068 = vst.msk [vmem:[#allocation3 + $0x190] sm:$0xff] %vm591, %v998
      %1069 = vst.msk [vmem:[#allocation3 + $0x1a0] sm:$0xff] %vm591, %v1000
      %1070 = vst.msk [vmem:[#allocation3 + $0x1b0] sm:$0xff] %vm591, %v1002
      %1071 = vst.msk [vmem:[#allocation3 + $0x1c0] sm:$0xff] %vm591, %v1004
      %1072 = vst.msk [vmem:[#allocation3 + $0x1d0] sm:$0xff] %vm591, %v1006
      %1073 = vst.msk [vmem:[#allocation3 + $0x1e0] sm:$0xff] %vm591, %v1008
      %1074 = vst.msk [vmem:[#allocation3 + $0x1f0] sm:$0xff] %vm591, %v1010
      %1075 = vrot.lane.b32.xlu0 %v174, 64
      %v1076 = vpop.permute.xlu0 %1075
      %1077 = vrot.lane.b32.xlu0 %v175, 64
      %v1078 = vpop.permute.xlu0 %1077
      %1079 = vrot.lane.b32.xlu0 %v176, 64
      %v1080 = vpop.permute.xlu0 %1079
      %1081 = vrot.lane.b32.xlu0 %v177, 64
      %v1082 = vpop.permute.xlu0 %1081
      %1083 = vrot.lane.b32.xlu0 %v178, 64
      %v1084 = vpop.permute.xlu0 %1083
      %1085 = vrot.lane.b32.xlu0 %v179, 64
      %v1086 = vpop.permute.xlu0 %1085
      %1087 = vrot.lane.b32.xlu0 %v180, 64
      %v1088 = vpop.permute.xlu0 %1087
      %1089 = vrot.lane.b32.xlu0 %v181, 64
      %v1090 = vpop.permute.xlu0 %1089
      %1091 = vrot.lane.b32.xlu0 %v182, 64
      %v1092 = vpop.permute.xlu0 %1091
      %1093 = vrot.lane.b32.xlu0 %v183, 64
      %v1094 = vpop.permute.xlu0 %1093
      %1095 = vrot.lane.b32.xlu0 %v184, 64
      %v1096 = vpop.permute.xlu0 %1095
      %1097 = vrot.lane.b32.xlu0 %v185, 64
      %v1098 = vpop.permute.xlu0 %1097
      %1099 = vrot.lane.b32.xlu0 %v186, 64
      %v1100 = vpop.permute.xlu0 %1099
      %1101 = vrot.lane.b32.xlu0 %v187, 64
      %v1102 = vpop.permute.xlu0 %1101
      %1103 = vrot.lane.b32.xlu0 %v188, 64
      %v1104 = vpop.permute.xlu0 %1103
      %1105 = vrot.lane.b32.xlu0 %v189, 64
      %v1106 = vpop.permute.xlu0 %1105
      %1107 = vrot.lane.b32.xlu0 %v190, 64
      %v1108 = vpop.permute.xlu0 %1107
      %1109 = vrot.lane.b32.xlu0 %v191, 64
      %v1110 = vpop.permute.xlu0 %1109
      %1111 = vrot.lane.b32.xlu0 %v192, 64
      %v1112 = vpop.permute.xlu0 %1111
      %1113 = vrot.lane.b32.xlu0 %v193, 64
      %v1114 = vpop.permute.xlu0 %1113
      %1115 = vrot.lane.b32.xlu0 %v194, 64
      %v1116 = vpop.permute.xlu0 %1115
      %1117 = vrot.lane.b32.xlu0 %v195, 64
      %v1118 = vpop.permute.xlu0 %1117
      %1119 = vrot.lane.b32.xlu0 %v196, 64
      %v1120 = vpop.permute.xlu0 %1119
      %1121 = vrot.lane.b32.xlu0 %v197, 64
      %v1122 = vpop.permute.xlu0 %1121
      %1123 = vrot.lane.b32.xlu0 %v198, 64
      %v1124 = vpop.permute.xlu0 %1123
      %1125 = vrot.lane.b32.xlu0 %v199, 64
      %v1126 = vpop.permute.xlu0 %1125
      %1127 = vrot.lane.b32.xlu0 %v200, 64
      %v1128 = vpop.permute.xlu0 %1127
      %1129 = vrot.lane.b32.xlu0 %v201, 64
      %v1130 = vpop.permute.xlu0 %1129
      %1131 = vrot.lane.b32.xlu0 %v202, 64
      %v1132 = vpop.permute.xlu0 %1131
      %1133 = vrot.lane.b32.xlu0 %v203, 64
      %v1134 = vpop.permute.xlu0 %1133
      %1135 = vrot.lane.b32.xlu0 %v204, 64
      %v1136 = vpop.permute.xlu0 %1135
      %1137 = vrot.lane.b32.xlu0 %v205, 64
      %v1138 = vpop.permute.xlu0 %1137
      %1171 = vst.msk [vmem:[#allocation3] sm:$0xff] %vm558, %v1076
      %1172 = vst.msk [vmem:[#allocation3 + $0x10] sm:$0xff] %vm558, %v1078
      %1173 = vst.msk [vmem:[#allocation3 + $0x20] sm:$0xff] %vm558, %v1080
      %1174 = vst.msk [vmem:[#allocation3 + $0x30] sm:$0xff] %vm558, %v1082
      %1175 = vst.msk [vmem:[#allocation3 + $0x40] sm:$0xff] %vm558, %v1084
      %1176 = vst.msk [vmem:[#allocation3 + $0x50] sm:$0xff] %vm558, %v1086
      %1177 = vst.msk [vmem:[#allocation3 + $0x60] sm:$0xff] %vm558, %v1088
      %1178 = vst.msk [vmem:[#allocation3 + $0x70] sm:$0xff] %vm558, %v1090
      %1179 = vst.msk [vmem:[#allocation3 + $0x80] sm:$0xff] %vm558, %v1092
      %1180 = vst.msk [vmem:[#allocation3 + $0x90] sm:$0xff] %vm558, %v1094
      %1181 = vst.msk [vmem:[#allocation3 + $0xa0] sm:$0xff] %vm558, %v1096
      %1182 = vst.msk [vmem:[#allocation3 + $0xb0] sm:$0xff] %vm558, %v1098
      %1183 = vst.msk [vmem:[#allocation3 + $0xc0] sm:$0xff] %vm558, %v1100
      %1184 = vst.msk [vmem:[#allocation3 + $0xd0] sm:$0xff] %vm558, %v1102
      %1185 = vst.msk [vmem:[#allocation3 + $0xe0] sm:$0xff] %vm558, %v1104
      %1186 = vst.msk [vmem:[#allocation3 + $0xf0] sm:$0xff] %vm558, %v1106
      %1187 = vst.msk [vmem:[#allocation3 + $0x100] sm:$0xff] %vm558, %v1108
      %1188 = vst.msk [vmem:[#allocation3 + $0x110] sm:$0xff] %vm558, %v1110
      %1189 = vst.msk [vmem:[#allocation3 + $0x120] sm:$0xff] %vm558, %v1112
      %1190 = vst.msk [vmem:[#allocation3 + $0x130] sm:$0xff] %vm558, %v1114
      %1191 = vst.msk [vmem:[#allocation3 + $0x140] sm:$0xff] %vm558, %v1116
      %1192 = vst.msk [vmem:[#allocation3 + $0x150] sm:$0xff] %vm558, %v1118
      %1193 = vst.msk [vmem:[#allocation3 + $0x160] sm:$0xff] %vm558, %v1120
      %1194 = vst.msk [vmem:[#allocation3 + $0x170] sm:$0xff] %vm558, %v1122
      %1195 = vst.msk [vmem:[#allocation3 + $0x180] sm:$0xff] %vm558, %v1124
      %1196 = vst.msk [vmem:[#allocation3 + $0x190] sm:$0xff] %vm558, %v1126
      %1197 = vst.msk [vmem:[#allocation3 + $0x1a0] sm:$0xff] %vm558, %v1128
      %1198 = vst.msk [vmem:[#allocation3 + $0x1b0] sm:$0xff] %vm558, %v1130
      %1199 = vst.msk [vmem:[#allocation3 + $0x1c0] sm:$0xff] %vm558, %v1132
      %1200 = vst.msk [vmem:[#allocation3 + $0x1d0] sm:$0xff] %vm558, %v1134
      %1201 = vst.msk [vmem:[#allocation3 + $0x1e0] sm:$0xff] %vm558, %v1136
      %1202 = vst.msk [vmem:[#allocation3 + $0x1f0] sm:$0xff] %vm558, %v1138
      %1203 = vrot.lane.b32.xlu0 %v174, 80
      %v1204 = vpop.permute.xlu0 %1203
      %1205 = vrot.lane.b32.xlu0 %v175, 80
      %v1206 = vpop.permute.xlu0 %1205
      %1207 = vrot.lane.b32.xlu0 %v176, 80
      %v1208 = vpop.permute.xlu0 %1207
      %1209 = vrot.lane.b32.xlu0 %v177, 80
      %v1210 = vpop.permute.xlu0 %1209
      %1211 = vrot.lane.b32.xlu0 %v178, 80
      %v1212 = vpop.permute.xlu0 %1211
      %1213 = vrot.lane.b32.xlu0 %v179, 80
      %v1214 = vpop.permute.xlu0 %1213
      %1215 = vrot.lane.b32.xlu0 %v180, 80
      %v1216 = vpop.permute.xlu0 %1215
      %1217 = vrot.lane.b32.xlu0 %v181, 80
      %v1218 = vpop.permute.xlu0 %1217
      %1219 = vrot.lane.b32.xlu0 %v182, 80
      %v1220 = vpop.permute.xlu0 %1219
      %1221 = vrot.lane.b32.xlu0 %v183, 80
      %v1222 = vpop.permute.xlu0 %1221
      %1223 = vrot.lane.b32.xlu0 %v184, 80
      %v1224 = vpop.permute.xlu0 %1223
      %1225 = vrot.lane.b32.xlu0 %v185, 80
      %v1226 = vpop.permute.xlu0 %1225
      %1227 = vrot.lane.b32.xlu0 %v186, 80
      %v1228 = vpop.permute.xlu0 %1227
      %1229 = vrot.lane.b32.xlu0 %v187, 80
      %v1230 = vpop.permute.xlu0 %1229
      %1231 = vrot.lane.b32.xlu0 %v188, 80
      %v1232 = vpop.permute.xlu0 %1231
      %1233 = vrot.lane.b32.xlu0 %v189, 80
      %v1234 = vpop.permute.xlu0 %1233
      %1235 = vrot.lane.b32.xlu0 %v190, 80
      %v1236 = vpop.permute.xlu0 %1235
      %1237 = vrot.lane.b32.xlu0 %v191, 80
      %v1238 = vpop.permute.xlu0 %1237
      %1239 = vrot.lane.b32.xlu0 %v192, 80
      %v1240 = vpop.permute.xlu0 %1239
      %1241 = vrot.lane.b32.xlu0 %v193, 80
      %v1242 = vpop.permute.xlu0 %1241
      %1243 = vrot.lane.b32.xlu0 %v194, 80
      %v1244 = vpop.permute.xlu0 %1243
      %1245 = vrot.lane.b32.xlu0 %v195, 80
      %v1246 = vpop.permute.xlu0 %1245
      %1247 = vrot.lane.b32.xlu0 %v196, 80
      %v1248 = vpop.permute.xlu0 %1247
      %1249 = vrot.lane.b32.xlu0 %v197, 80
      %v1250 = vpop.permute.xlu0 %1249
      %1251 = vrot.lane.b32.xlu0 %v198, 80
      %v1252 = vpop.permute.xlu0 %1251
      %1253 = vrot.lane.b32.xlu0 %v199, 80
      %v1254 = vpop.permute.xlu0 %1253
      %1255 = vrot.lane.b32.xlu0 %v200, 80
      %v1256 = vpop.permute.xlu0 %1255
      %1257 = vrot.lane.b32.xlu0 %v201, 80
      %v1258 = vpop.permute.xlu0 %1257
      %1259 = vrot.lane.b32.xlu0 %v202, 80
      %v1260 = vpop.permute.xlu0 %1259
      %1261 = vrot.lane.b32.xlu0 %v203, 80
      %v1262 = vpop.permute.xlu0 %1261
      %1263 = vrot.lane.b32.xlu0 %v204, 80
      %v1264 = vpop.permute.xlu0 %1263
      %1265 = vrot.lane.b32.xlu0 %v205, 80
      %v1266 = vpop.permute.xlu0 %1265
      %vm1299 = vcmask 786048
      %1300 = vst.msk [vmem:[#allocation3] sm:$0xff] %vm1299, %v1204
      %1301 = vst.msk [vmem:[#allocation3 + $0x10] sm:$0xff] %vm1299, %v1206
      %1302 = vst.msk [vmem:[#allocation3 + $0x20] sm:$0xff] %vm1299, %v1208
      %1303 = vst.msk [vmem:[#allocation3 + $0x30] sm:$0xff] %vm1299, %v1210
      %1304 = vst.msk [vmem:[#allocation3 + $0x40] sm:$0xff] %vm1299, %v1212
      %1305 = vst.msk [vmem:[#allocation3 + $0x50] sm:$0xff] %vm1299, %v1214
      %1306 = vst.msk [vmem:[#allocation3 + $0x60] sm:$0xff] %vm1299, %v1216
      %1307 = vst.msk [vmem:[#allocation3 + $0x70] sm:$0xff] %vm1299, %v1218
      %1308 = vst.msk [vmem:[#allocation3 + $0x80] sm:$0xff] %vm1299, %v1220
      %1309 = vst.msk [vmem:[#allocation3 + $0x90] sm:$0xff] %vm1299, %v1222
      %1310 = vst.msk [vmem:[#allocation3 + $0xa0] sm:$0xff] %vm1299, %v1224
      %1311 = vst.msk [vmem:[#allocation3 + $0xb0] sm:$0xff] %vm1299, %v1226
      %1312 = vst.msk [vmem:[#allocation3 + $0xc0] sm:$0xff] %vm1299, %v1228
      %1313 = vst.msk [vmem:[#allocation3 + $0xd0] sm:$0xff] %vm1299, %v1230
      %1314 = vst.msk [vmem:[#allocation3 + $0xe0] sm:$0xff] %vm1299, %v1232
      %1315 = vst.msk [vmem:[#allocation3 + $0xf0] sm:$0xff] %vm1299, %v1234
      %1316 = vst.msk [vmem:[#allocation3 + $0x100] sm:$0xff] %vm1299, %v1236
      %1317 = vst.msk [vmem:[#allocation3 + $0x110] sm:$0xff] %vm1299, %v1238
      %1318 = vst.msk [vmem:[#allocation3 + $0x120] sm:$0xff] %vm1299, %v1240
      %1319 = vst.msk [vmem:[#allocation3 + $0x130] sm:$0xff] %vm1299, %v1242
      %1320 = vst.msk [vmem:[#allocation3 + $0x140] sm:$0xff] %vm1299, %v1244
      %1321 = vst.msk [vmem:[#allocation3 + $0x150] sm:$0xff] %vm1299, %v1246
      %1322 = vst.msk [vmem:[#allocation3 + $0x160] sm:$0xff] %vm1299, %v1248
      %1323 = vst.msk [vmem:[#allocation3 + $0x170] sm:$0xff] %vm1299, %v1250
      %1324 = vst.msk [vmem:[#allocation3 + $0x180] sm:$0xff] %vm1299, %v1252
      %1325 = vst.msk [vmem:[#allocation3 + $0x190] sm:$0xff] %vm1299, %v1254
      %1326 = vst.msk [vmem:[#allocation3 + $0x1a0] sm:$0xff] %vm1299, %v1256
      %1327 = vst.msk [vmem:[#allocation3 + $0x1b0] sm:$0xff] %vm1299, %v1258
      %1328 = vst.msk [vmem:[#allocation3 + $0x1c0] sm:$0xff] %vm1299, %v1260
      %1329 = vst.msk [vmem:[#allocation3 + $0x1d0] sm:$0xff] %vm1299, %v1262
      %1330 = vst.msk [vmem:[#allocation3 + $0x1e0] sm:$0xff] %vm1299, %v1264
      %1331 = vst.msk [vmem:[#allocation3 + $0x1f0] sm:$0xff] %vm1299, %v1266
      %1332 = vrot.lane.b32.xlu0 %v174, 96
      %v1333 = vpop.permute.xlu0 %1332
      %1334 = vrot.lane.b32.xlu0 %v175, 96
      %v1335 = vpop.permute.xlu0 %1334
      %1336 = vrot.lane.b32.xlu0 %v176, 96
      %v1337 = vpop.permute.xlu0 %1336
      %1338 = vrot.lane.b32.xlu0 %v177, 96
      %v1339 = vpop.permute.xlu0 %1338
      %1340 = vrot.lane.b32.xlu0 %v178, 96
      %v1341 = vpop.permute.xlu0 %1340
      %1342 = vrot.lane.b32.xlu0 %v179, 96
      %v1343 = vpop.permute.xlu0 %1342
      %1344 = vrot.lane.b32.xlu0 %v180, 96
      %v1345 = vpop.permute.xlu0 %1344
      %1346 = vrot.lane.b32.xlu0 %v181, 96
      %v1347 = vpop.permute.xlu0 %1346
      %1348 = vrot.lane.b32.xlu0 %v182, 96
      %v1349 = vpop.permute.xlu0 %1348
      %1350 = vrot.lane.b32.xlu0 %v183, 96
      %v1351 = vpop.permute.xlu0 %1350
      %1352 = vrot.lane.b32.xlu0 %v184, 96
      %v1353 = vpop.permute.xlu0 %1352
      %1354 = vrot.lane.b32.xlu0 %v185, 96
      %v1355 = vpop.permute.xlu0 %1354
      %1356 = vrot.lane.b32.xlu0 %v186, 96
      %v1357 = vpop.permute.xlu0 %1356
      %1358 = vrot.lane.b32.xlu0 %v187, 96
      %v1359 = vpop.permute.xlu0 %1358
      %1360 = vrot.lane.b32.xlu0 %v188, 96
      %v1361 = vpop.permute.xlu0 %1360
      %1362 = vrot.lane.b32.xlu0 %v189, 96
      %v1363 = vpop.permute.xlu0 %1362
      %1364 = vrot.lane.b32.xlu0 %v190, 96
      %v1365 = vpop.permute.xlu0 %1364
      %1366 = vrot.lane.b32.xlu0 %v191, 96
      %v1367 = vpop.permute.xlu0 %1366
      %1368 = vrot.lane.b32.xlu0 %v192, 96
      %v1369 = vpop.permute.xlu0 %1368
      %1370 = vrot.lane.b32.xlu0 %v193, 96
      %v1371 = vpop.permute.xlu0 %1370
      %1372 = vrot.lane.b32.xlu0 %v194, 96
      %v1373 = vpop.permute.xlu0 %1372
      %1374 = vrot.lane.b32.xlu0 %v195, 96
      %v1375 = vpop.permute.xlu0 %1374
      %1376 = vrot.lane.b32.xlu0 %v196, 96
      %v1377 = vpop.permute.xlu0 %1376
      %1378 = vrot.lane.b32.xlu0 %v197, 96
      %v1379 = vpop.permute.xlu0 %1378
      %1380 = vrot.lane.b32.xlu0 %v198, 96
      %v1381 = vpop.permute.xlu0 %1380
      %1382 = vrot.lane.b32.xlu0 %v199, 96
      %v1383 = vpop.permute.xlu0 %1382
      %1384 = vrot.lane.b32.xlu0 %v200, 96
      %v1385 = vpop.permute.xlu0 %1384
      %1386 = vrot.lane.b32.xlu0 %v201, 96
      %v1387 = vpop.permute.xlu0 %1386
      %1388 = vrot.lane.b32.xlu0 %v202, 96
      %v1389 = vpop.permute.xlu0 %1388
      %1390 = vrot.lane.b32.xlu0 %v203, 96
      %v1391 = vpop.permute.xlu0 %1390
      %1392 = vrot.lane.b32.xlu0 %v204, 96
      %v1393 = vpop.permute.xlu0 %1392
      %1394 = vrot.lane.b32.xlu0 %v205, 96
      %v1395 = vpop.permute.xlu0 %1394
      %vm1428 = vcmask 917248
      %1429 = vst.msk [vmem:[#allocation3] sm:$0xff] %vm1428, %v1333
      %1430 = vst.msk [vmem:[#allocation3 + $0x10] sm:$0xff] %vm1428, %v1335
      %1431 = vst.msk [vmem:[#allocation3 + $0x20] sm:$0xff] %vm1428, %v1337
      %1432 = vst.msk [vmem:[#allocation3 + $0x30] sm:$0xff] %vm1428, %v1339
      %1433 = vst.msk [vmem:[#allocation3 + $0x40] sm:$0xff] %vm1428, %v1341
      %1434 = vst.msk [vmem:[#allocation3 + $0x50] sm:$0xff] %vm1428, %v1343
      %1435 = vst.msk [vmem:[#allocation3 + $0x60] sm:$0xff] %vm1428, %v1345
      %1436 = vst.msk [vmem:[#allocation3 + $0x70] sm:$0xff] %vm1428, %v1347
      %1437 = vst.msk [vmem:[#allocation3 + $0x80] sm:$0xff] %vm1428, %v1349
      %1438 = vst.msk [vmem:[#allocation3 + $0x90] sm:$0xff] %vm1428, %v1351
      %1439 = vst.msk [vmem:[#allocation3 + $0xa0] sm:$0xff] %vm1428, %v1353
      %1440 = vst.msk [vmem:[#allocation3 + $0xb0] sm:$0xff] %vm1428, %v1355
      %1441 = vst.msk [vmem:[#allocation3 + $0xc0] sm:$0xff] %vm1428, %v1357
      %1442 = vst.msk [vmem:[#allocation3 + $0xd0] sm:$0xff] %vm1428, %v1359
      %1443 = vst.msk [vmem:[#allocation3 + $0xe0] sm:$0xff] %vm1428, %v1361
      %1444 = vst.msk [vmem:[#allocation3 + $0xf0] sm:$0xff] %vm1428, %v1363
      %1445 = vst.msk [vmem:[#allocation3 + $0x100] sm:$0xff] %vm1428, %v1365
      %1446 = vst.msk [vmem:[#allocation3 + $0x110] sm:$0xff] %vm1428, %v1367
      %1447 = vst.msk [vmem:[#allocation3 + $0x120] sm:$0xff] %vm1428, %v1369
      %1448 = vst.msk [vmem:[#allocation3 + $0x130] sm:$0xff] %vm1428, %v1371
      %1449 = vst.msk [vmem:[#allocation3 + $0x140] sm:$0xff] %vm1428, %v1373
      %1450 = vst.msk [vmem:[#allocation3 + $0x150] sm:$0xff] %vm1428, %v1375
      %1451 = vst.msk [vmem:[#allocation3 + $0x160] sm:$0xff] %vm1428, %v1377
      %1452 = vst.msk [vmem:[#allocation3 + $0x170] sm:$0xff] %vm1428, %v1379
      %1453 = vst.msk [vmem:[#allocation3 + $0x180] sm:$0xff] %vm1428, %v1381
      %1454 = vst.msk [vmem:[#allocation3 + $0x190] sm:$0xff] %vm1428, %v1383
      %1455 = vst.msk [vmem:[#allocation3 + $0x1a0] sm:$0xff] %vm1428, %v1385
      %1456 = vst.msk [vmem:[#allocation3 + $0x1b0] sm:$0xff] %vm1428, %v1387
      %1457 = vst.msk [vmem:[#allocation3 + $0x1c0] sm:$0xff] %vm1428, %v1389
      %1458 = vst.msk [vmem:[#allocation3 + $0x1d0] sm:$0xff] %vm1428, %v1391
      %1459 = vst.msk [vmem:[#allocation3 + $0x1e0] sm:$0xff] %vm1428, %v1393
      %1460 = vst.msk [vmem:[#allocation3 + $0x1f0] sm:$0xff] %vm1428, %v1395
      %1461 = vrot.lane.b32.xlu0 %v174, 112
      %v1462 = vpop.permute.xlu0 %1461
      %1463 = vrot.lane.b32.xlu0 %v175, 112
      %v1464 = vpop.permute.xlu0 %1463
      %1465 = vrot.lane.b32.xlu0 %v176, 112
      %v1466 = vpop.permute.xlu0 %1465
      %1467 = vrot.lane.b32.xlu0 %v177, 112
      %v1468 = vpop.permute.xlu0 %1467
      %1469 = vrot.lane.b32.xlu0 %v178, 112
      %v1470 = vpop.permute.xlu0 %1469
      %1471 = vrot.lane.b32.xlu0 %v179, 112
      %v1472 = vpop.permute.xlu0 %1471
      %1473 = vrot.lane.b32.xlu0 %v180, 112
      %v1474 = vpop.permute.xlu0 %1473
      %1475 = vrot.lane.b32.xlu0 %v181, 112
      %v1476 = vpop.permute.xlu0 %1475
      %1477 = vrot.lane.b32.xlu0 %v182, 112
      %v1478 = vpop.permute.xlu0 %1477
      %1479 = vrot.lane.b32.xlu0 %v183, 112
      %v1480 = vpop.permute.xlu0 %1479
      %1481 = vrot.lane.b32.xlu0 %v184, 112
      %v1482 = vpop.permute.xlu0 %1481
      %1483 = vrot.lane.b32.xlu0 %v185, 112
      %v1484 = vpop.permute.xlu0 %1483
      %1485 = vrot.lane.b32.xlu0 %v186, 112
      %v1486 = vpop.permute.xlu0 %1485
      %1487 = vrot.lane.b32.xlu0 %v187, 112
      %v1488 = vpop.permute.xlu0 %1487
      %1489 = vrot.lane.b32.xlu0 %v188, 112
      %v1490 = vpop.permute.xlu0 %1489
      %1491 = vrot.lane.b32.xlu0 %v189, 112
      %v1492 = vpop.permute.xlu0 %1491
      %1493 = vrot.lane.b32.xlu0 %v190, 112
      %v1494 = vpop.permute.xlu0 %1493
      %1495 = vrot.lane.b32.xlu0 %v191, 112
      %v1496 = vpop.permute.xlu0 %1495
      %1497 = vrot.lane.b32.xlu0 %v192, 112
      %v1498 = vpop.permute.xlu0 %1497
      %1499 = vrot.lane.b32.xlu0 %v193, 112
      %v1500 = vpop.permute.xlu0 %1499
      %1501 = vrot.lane.b32.xlu0 %v194, 112
      %v1502 = vpop.permute.xlu0 %1501
      %1503 = vrot.lane.b32.xlu0 %v195, 112
      %v1504 = vpop.permute.xlu0 %1503
      %1505 = vrot.lane.b32.xlu0 %v196, 112
      %v1506 = vpop.permute.xlu0 %1505
      %1507 = vrot.lane.b32.xlu0 %v197, 112
      %v1508 = vpop.permute.xlu0 %1507
      %1509 = vrot.lane.b32.xlu0 %v198, 112
      %v1510 = vpop.permute.xlu0 %1509
      %1511 = vrot.lane.b32.xlu0 %v199, 112
      %v1512 = vpop.permute.xlu0 %1511
      %1513 = vrot.lane.b32.xlu0 %v200, 112
      %v1514 = vpop.permute.xlu0 %1513
      %1515 = vrot.lane.b32.xlu0 %v201, 112
      %v1516 = vpop.permute.xlu0 %1515
      %1517 = vrot.lane.b32.xlu0 %v202, 112
      %v1518 = vpop.permute.xlu0 %1517
      %1519 = vrot.lane.b32.xlu0 %v203, 112
      %v1520 = vpop.permute.xlu0 %1519
      %1521 = vrot.lane.b32.xlu0 %v204, 112
      %v1522 = vpop.permute.xlu0 %1521
      %1523 = vrot.lane.b32.xlu0 %v205, 112
      %v1524 = vpop.permute.xlu0 %1523
      %vm1557 = vcmask 1048448
      %1558 = vst.msk [vmem:[#allocation3] sm:$0xff] %vm1557, %v1462
      %1559 = vst.msk [vmem:[#allocation3 + $0x10] sm:$0xff] %vm1557, %v1464
      %1560 = vst.msk [vmem:[#allocation3 + $0x20] sm:$0xff] %vm1557, %v1466
      %1561 = vst.msk [vmem:[#allocation3 + $0x30] sm:$0xff] %vm1557, %v1468
      %1562 = vst.msk [vmem:[#allocation3 + $0x40] sm:$0xff] %vm1557, %v1470
      %1563 = vst.msk [vmem:[#allocation3 + $0x50] sm:$0xff] %vm1557, %v1472
      %1564 = vst.msk [vmem:[#allocation3 + $0x60] sm:$0xff] %vm1557, %v1474
      %1565 = vst.msk [vmem:[#allocation3 + $0x70] sm:$0xff] %vm1557, %v1476
      %1566 = vst.msk [vmem:[#allocation3 + $0x80] sm:$0xff] %vm1557, %v1478
      %1567 = vst.msk [vmem:[#allocation3 + $0x90] sm:$0xff] %vm1557, %v1480
      %1568 = vst.msk [vmem:[#allocation3 + $0xa0] sm:$0xff] %vm1557, %v1482
      %1569 = vst.msk [vmem:[#allocation3 + $0xb0] sm:$0xff] %vm1557, %v1484
      %1570 = vst.msk [vmem:[#allocation3 + $0xc0] sm:$0xff] %vm1557, %v1486
      %1571 = vst.msk [vmem:[#allocation3 + $0xd0] sm:$0xff] %vm1557, %v1488
      %1572 = vst.msk [vmem:[#allocation3 + $0xe0] sm:$0xff] %vm1557, %v1490
      %1573 = vst.msk [vmem:[#allocation3 + $0xf0] sm:$0xff] %vm1557, %v1492
      %1574 = vst.msk [vmem:[#allocation3 + $0x100] sm:$0xff] %vm1557, %v1494
      %1575 = vst.msk [vmem:[#allocation3 + $0x110] sm:$0xff] %vm1557, %v1496
      %1576 = vst.msk [vmem:[#allocation3 + $0x120] sm:$0xff] %vm1557, %v1498
      %1577 = vst.msk [vmem:[#allocation3 + $0x130] sm:$0xff] %vm1557, %v1500
      %1578 = vst.msk [vmem:[#allocation3 + $0x140] sm:$0xff] %vm1557, %v1502
      %1579 = vst.msk [vmem:[#allocation3 + $0x150] sm:$0xff] %vm1557, %v1504
      %1580 = vst.msk [vmem:[#allocation3 + $0x160] sm:$0xff] %vm1557, %v1506
      %1581 = vst.msk [vmem:[#allocation3 + $0x170] sm:$0xff] %vm1557, %v1508
      %1582 = vst.msk [vmem:[#allocation3 + $0x180] sm:$0xff] %vm1557, %v1510
      %1583 = vst.msk [vmem:[#allocation3 + $0x190] sm:$0xff] %vm1557, %v1512
      %1584 = vst.msk [vmem:[#allocation3 + $0x1a0] sm:$0xff] %vm1557, %v1514
      %1585 = vst.msk [vmem:[#allocation3 + $0x1b0] sm:$0xff] %vm1557, %v1516
      %1586 = vst.msk [vmem:[#allocation3 + $0x1c0] sm:$0xff] %vm1557, %v1518
      %1587 = vst.msk [vmem:[#allocation3 + $0x1d0] sm:$0xff] %vm1557, %v1520
      %1588 = vst.msk [vmem:[#allocation3 + $0x1e0] sm:$0xff] %vm1557, %v1522
      %1589 = vst.msk [vmem:[#allocation3 + $0x1f0] sm:$0xff] %vm1557, %v1524
      %1590 = vst.msk [vmem:[#allocation3 + $0x8] sm:$0xff] %vm624, %v174
      %1591 = vst.msk [vmem:[#allocation3 + $0x18] sm:$0xff] %vm624, %v175
      %1592 = vst.msk [vmem:[#allocation3 + $0x28] sm:$0xff] %vm624, %v176
      %1593 = vst.msk [vmem:[#allocation3 + $0x38] sm:$0xff] %vm624, %v177
      %1594 = vst.msk [vmem:[#allocation3 + $0x48] sm:$0xff] %vm624, %v178
      %1595 = vst.msk [vmem:[#allocation3 + $0x58] sm:$0xff] %vm624, %v179
      %1596 = vst.msk [vmem:[#allocation3 + $0x68] sm:$0xff] %vm624, %v180
      %1597 = vst.msk [vmem:[#allocation3 + $0x78] sm:$0xff] %vm624, %v181
      %1598 = vst.msk [vmem:[#allocation3 + $0x88] sm:$0xff] %vm624, %v182
      %1599 = vst.msk [vmem:[#allocation3 + $0x98] sm:$0xff] %vm624, %v183
      %1600 = vst.msk [vmem:[#allocation3 + $0xa8] sm:$0xff] %vm624, %v184
      %1601 = vst.msk [vmem:[#allocation3 + $0xb8] sm:$0xff] %vm624, %v185
      %1602 = vst.msk [vmem:[#allocation3 + $0xc8] sm:$0xff] %vm624, %v186
      %1603 = vst.msk [vmem:[#allocation3 + $0xd8] sm:$0xff] %vm624, %v187
      %1604 = vst.msk [vmem:[#allocation3 + $0xe8] sm:$0xff] %vm624, %v188
      %1605 = vst.msk [vmem:[#allocation3 + $0xf8] sm:$0xff] %vm624, %v189
      %1606 = vst.msk [vmem:[#allocation3 + $0x108] sm:$0xff] %vm624, %v190
      %1607 = vst.msk [vmem:[#allocation3 + $0x118] sm:$0xff] %vm624, %v191
      %1608 = vst.msk [vmem:[#allocation3 + $0x128] sm:$0xff] %vm624, %v192
      %1609 = vst.msk [vmem:[#allocation3 + $0x138] sm:$0xff] %vm624, %v193
      %1610 = vst.msk [vmem:[#allocation3 + $0x148] sm:$0xff] %vm624, %v194
      %1611 = vst.msk [vmem:[#allocation3 + $0x158] sm:$0xff] %vm624, %v195
      %1612 = vst.msk [vmem:[#allocation3 + $0x168] sm:$0xff] %vm624, %v196
      %1613 = vst.msk [vmem:[#allocation3 + $0x178] sm:$0xff] %vm624, %v197
      %1614 = vst.msk [vmem:[#allocation3 + $0x188] sm:$0xff] %vm624, %v198
      %1615 = vst.msk [vmem:[#allocation3 + $0x198] sm:$0xff] %vm624, %v199
      %1616 = vst.msk [vmem:[#allocation3 + $0x1a8] sm:$0xff] %vm624, %v200
      %1617 = vst.msk [vmem:[#allocation3 + $0x1b8] sm:$0xff] %vm624, %v201
      %1618 = vst.msk [vmem:[#allocation3 + $0x1c8] sm:$0xff] %vm624, %v202
      %1619 = vst.msk [vmem:[#allocation3 + $0x1d8] sm:$0xff] %vm624, %v203
      %1620 = vst.msk [vmem:[#allocation3 + $0x1e8] sm:$0xff] %vm624, %v204
      %1621 = vst.msk [vmem:[#allocation3 + $0x1f8] sm:$0xff] %vm624, %v205
      %1622 = vst.msk [vmem:[#allocation3 + $0x8] sm:$0xff] %vm785, %v690
      %1623 = vst.msk [vmem:[#allocation3 + $0x18] sm:$0xff] %vm785, %v692
      %1624 = vst.msk [vmem:[#allocation3 + $0x28] sm:$0xff] %vm785, %v694
      %1625 = vst.msk [vmem:[#allocation3 + $0x38] sm:$0xff] %vm785, %v696
      %1626 = vst.msk [vmem:[#allocation3 + $0x48] sm:$0xff] %vm785, %v698
      %1627 = vst.msk [vmem:[#allocation3 + $0x58] sm:$0xff] %vm785, %v700
      %1628 = vst.msk [vmem:[#allocation3 + $0x68] sm:$0xff] %vm785, %v702
      %1629 = vst.msk [vmem:[#allocation3 + $0x78] sm:$0xff] %vm785, %v704
      %1630 = vst.msk [vmem:[#allocation3 + $0x88] sm:$0xff] %vm785, %v706
      %1631 = vst.msk [vmem:[#allocation3 + $0x98] sm:$0xff] %vm785, %v708
      %1632 = vst.msk [vmem:[#allocation3 + $0xa8] sm:$0xff] %vm785, %v710
      %1633 = vst.msk [vmem:[#allocation3 + $0xb8] sm:$0xff] %vm785, %v712
      %1634 = vst.msk [vmem:[#allocation3 + $0xc8] sm:$0xff] %vm785, %v714
      %1635 = vst.msk [vmem:[#allocation3 + $0xd8] sm:$0xff] %vm785, %v716
      %1636 = vst.msk [vmem:[#allocation3 + $0xe8] sm:$0xff] %vm785, %v718
      %1637 = vst.msk [vmem:[#allocation3 + $0xf8] sm:$0xff] %vm785, %v720
      %1638 = vst.msk [vmem:[#allocation3 + $0x108] sm:$0xff] %vm785, %v722
      %1639 = vst.msk [vmem:[#allocation3 + $0x118] sm:$0xff] %vm785, %v724
      %1640 = vst.msk [vmem:[#allocation3 + $0x128] sm:$0xff] %vm785, %v726
      %1641 = vst.msk [vmem:[#allocation3 + $0x138] sm:$0xff] %vm785, %v728
      %1642 = vst.msk [vmem:[#allocation3 + $0x148] sm:$0xff] %vm785, %v730
      %1643 = vst.msk [vmem:[#allocation3 + $0x158] sm:$0xff] %vm785, %v732
      %1644 = vst.msk [vmem:[#allocation3 + $0x168] sm:$0xff] %vm785, %v734
      %1645 = vst.msk [vmem:[#allocation3 + $0x178] sm:$0xff] %vm785, %v736
      %1646 = vst.msk [vmem:[#allocation3 + $0x188] sm:$0xff] %vm785, %v738
      %1647 = vst.msk [vmem:[#allocation3 + $0x198] sm:$0xff] %vm785, %v740
      %1648 = vst.msk [vmem:[#allocation3 + $0x1a8] sm:$0xff] %vm785, %v742
      %1649 = vst.msk [vmem:[#allocation3 + $0x1b8] sm:$0xff] %vm785, %v744
      %1650 = vst.msk [vmem:[#allocation3 + $0x1c8] sm:$0xff] %vm785, %v746
      %1651 = vst.msk [vmem:[#allocation3 + $0x1d8] sm:$0xff] %vm785, %v748
      %1652 = vst.msk [vmem:[#allocation3 + $0x1e8] sm:$0xff] %vm785, %v750
      %1653 = vst.msk [vmem:[#allocation3 + $0x1f8] sm:$0xff] %vm785, %v752
      %1654 = vst.msk [vmem:[#allocation3 + $0x8] sm:$0xff] %vm914, %v819
      %1655 = vst.msk [vmem:[#allocation3 + $0x18] sm:$0xff] %vm914, %v821
      %1656 = vst.msk [vmem:[#allocation3 + $0x28] sm:$0xff] %vm914, %v823
      %1657 = vst.msk [vmem:[#allocation3 + $0x38] sm:$0xff] %vm914, %v825
      %1658 = vst.msk [vmem:[#allocation3 + $0x48] sm:$0xff] %vm914, %v827
      %1659 = vst.msk [vmem:[#allocation3 + $0x58] sm:$0xff] %vm914, %v829
      %1660 = vst.msk [vmem:[#allocation3 + $0x68] sm:$0xff] %vm914, %v831
      %1661 = vst.msk [vmem:[#allocation3 + $0x78] sm:$0xff] %vm914, %v833
      %1662 = vst.msk [vmem:[#allocation3 + $0x88] sm:$0xff] %vm914, %v835
      %1663 = vst.msk [vmem:[#allocation3 + $0x98] sm:$0xff] %vm914, %v837
      %1664 = vst.msk [vmem:[#allocation3 + $0xa8] sm:$0xff] %vm914, %v839
      %1665 = vst.msk [vmem:[#allocation3 + $0xb8] sm:$0xff] %vm914, %v841
      %1666 = vst.msk [vmem:[#allocation3 + $0xc8] sm:$0xff] %vm914, %v843
      %1667 = vst.msk [vmem:[#allocation3 + $0xd8] sm:$0xff] %vm914, %v845
      %1668 = vst.msk [vmem:[#allocation3 + $0xe8] sm:$0xff] %vm914, %v847
      %1669 = vst.msk [vmem:[#allocation3 + $0xf8] sm:$0xff] %vm914, %v849
      %1670 = vst.msk [vmem:[#allocation3 + $0x108] sm:$0xff] %vm914, %v851
      %1671 = vst.msk [vmem:[#allocation3 + $0x118] sm:$0xff] %vm914, %v853
      %1672 = vst.msk [vmem:[#allocation3 + $0x128] sm:$0xff] %vm914, %v855
      %1673 = vst.msk [vmem:[#allocation3 + $0x138] sm:$0xff] %vm914, %v857
      %1674 = vst.msk [vmem:[#allocation3 + $0x148] sm:$0xff] %vm914, %v859
      %1675 = vst.msk [vmem:[#allocation3 + $0x158] sm:$0xff] %vm914, %v861
      %1676 = vst.msk [vmem:[#allocation3 + $0x168] sm:$0xff] %vm914, %v863
      %1677 = vst.msk [vmem:[#allocation3 + $0x178] sm:$0xff] %vm914, %v865
      %1678 = vst.msk [vmem:[#allocation3 + $0x188] sm:$0xff] %vm914, %v867
      %1679 = vst.msk [vmem:[#allocation3 + $0x198] sm:$0xff] %vm914, %v869
      %1680 = vst.msk [vmem:[#allocation3 + $0x1a8] sm:$0xff] %vm914, %v871
      %1681 = vst.msk [vmem:[#allocation3 + $0x1b8] sm:$0xff] %vm914, %v873
      %1682 = vst.msk [vmem:[#allocation3 + $0x1c8] sm:$0xff] %vm914, %v875
      %1683 = vst.msk [vmem:[#allocation3 + $0x1d8] sm:$0xff] %vm914, %v877
      %1684 = vst.msk [vmem:[#allocation3 + $0x1e8] sm:$0xff] %vm914, %v879
      %1685 = vst.msk [vmem:[#allocation3 + $0x1f8] sm:$0xff] %vm914, %v881
      %v1686 = vld [vmem:[#allocation3] sm:$0xff]
      %v1687 = vld [vmem:[#allocation3 + $0x8] sm:$0xff]
      %v1688 = vld [vmem:[#allocation3 + $0x10] sm:$0xff]
      %v1689 = vld [vmem:[#allocation3 + $0x18] sm:$0xff]
      %v1690 = vld [vmem:[#allocation3 + $0x20] sm:$0xff]
      %v1691 = vld [vmem:[#allocation3 + $0x28] sm:$0xff]
      %v1692 = vld [vmem:[#allocation3 + $0x30] sm:$0xff]
      %v1693 = vld [vmem:[#allocation3 + $0x38] sm:$0xff]
      %v1694 = vld [vmem:[#allocation3 + $0x40] sm:$0xff]
      %v1695 = vld [vmem:[#allocation3 + $0x48] sm:$0xff]
      %v1696 = vld [vmem:[#allocation3 + $0x50] sm:$0xff]
      %v1697 = vld [vmem:[#allocation3 + $0x58] sm:$0xff]
      %v1698 = vld [vmem:[#allocation3 + $0x60] sm:$0xff]
      %v1699 = vld [vmem:[#allocation3 + $0x68] sm:$0xff]
      %v1700 = vld [vmem:[#allocation3 + $0x70] sm:$0xff]
      %v1701 = vld [vmem:[#allocation3 + $0x78] sm:$0xff]
      %v1702 = vld [vmem:[#allocation3 + $0x80] sm:$0xff]
      %v1703 = vld [vmem:[#allocation3 + $0x88] sm:$0xff]
      %v1704 = vld [vmem:[#allocation3 + $0x90] sm:$0xff]
      %v1705 = vld [vmem:[#allocation3 + $0x98] sm:$0xff]
      %v1706 = vld [vmem:[#allocation3 + $0xa0] sm:$0xff]
      %v1707 = vld [vmem:[#allocation3 + $0xa8] sm:$0xff]
      %v1708 = vld [vmem:[#allocation3 + $0xb0] sm:$0xff]
      %v1709 = vld [vmem:[#allocation3 + $0xb8] sm:$0xff]
      %v1710 = vld [vmem:[#allocation3 + $0xc0] sm:$0xff]
      %v1711 = vld [vmem:[#allocation3 + $0xc8] sm:$0xff]
      %v1712 = vld [vmem:[#allocation3 + $0xd0] sm:$0xff]
      %v1713 = vld [vmem:[#allocation3 + $0xd8] sm:$0xff]
      %v1714 = vld [vmem:[#allocation3 + $0xe0] sm:$0xff]
      %v1715 = vld [vmem:[#allocation3 + $0xe8] sm:$0xff]
      %v1716 = vld [vmem:[#allocation3 + $0xf0] sm:$0xff]
      %v1717 = vld [vmem:[#allocation3 + $0xf8] sm:$0xff]
      %v1718 = vld [vmem:[#allocation3 + $0x100] sm:$0xff]
      %v1719 = vld [vmem:[#allocation3 + $0x108] sm:$0xff]
      %v1720 = vld [vmem:[#allocation3 + $0x110] sm:$0xff]
      %v1721 = vld [vmem:[#allocation3 + $0x118] sm:$0xff]
      %v1722 = vld [vmem:[#allocation3 + $0x120] sm:$0xff]
      %v1723 = vld [vmem:[#allocation3 + $0x128] sm:$0xff]
      %v1724 = vld [vmem:[#allocation3 + $0x130] sm:$0xff]
      %v1725 = vld [vmem:[#allocation3 + $0x138] sm:$0xff]
      %v1726 = vld [vmem:[#allocation3 + $0x140] sm:$0xff]
      %v1727 = vld [vmem:[#allocation3 + $0x148] sm:$0xff]
      %v1728 = vld [vmem:[#allocation3 + $0x150] sm:$0xff]
      %v1729 = vld [vmem:[#allocation3 + $0x158] sm:$0xff]
      %v1730 = vld [vmem:[#allocation3 + $0x160] sm:$0xff]
      %v1731 = vld [vmem:[#allocation3 + $0x168] sm:$0xff]
      %v1732 = vld [vmem:[#allocation3 + $0x170] sm:$0xff]
      %v1733 = vld [vmem:[#allocation3 + $0x178] sm:$0xff]
      %v1734 = vld [vmem:[#allocation3 + $0x180] sm:$0xff]
      %v1735 = vld [vmem:[#allocation3 + $0x188] sm:$0xff]
      %v1736 = vld [vmem:[#allocation3 + $0x190] sm:$0xff]
      %v1737 = vld [vmem:[#allocation3 + $0x198] sm:$0xff]
      %v1738 = vld [vmem:[#allocation3 + $0x1a0] sm:$0xff]
      %v1739 = vld [vmem:[#allocation3 + $0x1a8] sm:$0xff]
      %v1740 = vld [vmem:[#allocation3 + $0x1b0] sm:$0xff]
      %v1741 = vld [vmem:[#allocation3 + $0x1b8] sm:$0xff]
      %v1742 = vld [vmem:[#allocation3 + $0x1c0] sm:$0xff]
      %v1743 = vld [vmem:[#allocation3 + $0x1c8] sm:$0xff]
      %v1744 = vld [vmem:[#allocation3 + $0x1d0] sm:$0xff]
      %v1745 = vld [vmem:[#allocation3 + $0x1d8] sm:$0xff]
      %v1746 = vld [vmem:[#allocation3 + $0x1e0] sm:$0xff]
      %v1747 = vld [vmem:[#allocation3 + $0x1e8] sm:$0xff]
      %v1748 = vld [vmem:[#allocation3 + $0x1f0] sm:$0xff]
      %v1749 = vld [vmem:[#allocation3 + $0x1f8] sm:$0xff]
      %v1750 = vld [vmem:[%s1] ss:$8 sm:$0x3]
      %s1751 = scalar_lea.vmem %s1, 1
      %v1752 = vld [vmem:[%s1751] ss:$8 sm:$0x3]
      %v1754 = vlaneseq
      %v1755 = vshrl.u32 %v1754, 7
      %v1756 = vsub.s32 0, %v1755
      %v1757 = vrot.slane %v1750, %v1756
      %v1758 = vlaneseq
      %v1759 = vshrl.u32 %v1758, 7
      %v1760 = vsub.s32 1, %v1759
      %v1761 = vrot.slane %v1750, %v1760
      %vm1764 = vcmp.ge.f32.partialorder %v1686, %v1757
      %vm1765 = vcmp.ge.f32.partialorder %v1687, %v1761
      %vm1766 = vcmp.ge.f32.partialorder %v1688, %v1757
      %vm1767 = vcmp.ge.f32.partialorder %v1689, %v1761
      %vm1768 = vcmp.ge.f32.partialorder %v1690, %v1757
      %vm1769 = vcmp.ge.f32.partialorder %v1691, %v1761
      %vm1770 = vcmp.ge.f32.partialorder %v1692, %v1757
      %vm1771 = vcmp.ge.f32.partialorder %v1693, %v1761
      %vm1772 = vcmp.ge.f32.partialorder %v1694, %v1757
      %vm1773 = vcmp.ge.f32.partialorder %v1695, %v1761
      %vm1774 = vcmp.ge.f32.partialorder %v1696, %v1757
      %vm1775 = vcmp.ge.f32.partialorder %v1697, %v1761
      %vm1776 = vcmp.ge.f32.partialorder %v1698, %v1757
      %vm1777 = vcmp.ge.f32.partialorder %v1699, %v1761
      %vm1778 = vcmp.ge.f32.partialorder %v1700, %v1757
      %vm1779 = vcmp.ge.f32.partialorder %v1701, %v1761
      %vm1780 = vcmp.ge.f32.partialorder %v1702, %v1757
      %vm1781 = vcmp.ge.f32.partialorder %v1703, %v1761
      %vm1782 = vcmp.ge.f32.partialorder %v1704, %v1757
      %vm1783 = vcmp.ge.f32.partialorder %v1705, %v1761
      %vm1784 = vcmp.ge.f32.partialorder %v1706, %v1757
      %vm1785 = vcmp.ge.f32.partialorder %v1707, %v1761
      %vm1786 = vcmp.ge.f32.partialorder %v1708, %v1757
      %vm1787 = vcmp.ge.f32.partialorder %v1709, %v1761
      %vm1788 = vcmp.ge.f32.partialorder %v1710, %v1757
      %vm1789 = vcmp.ge.f32.partialorder %v1711, %v1761
      %vm1790 = vcmp.ge.f32.partialorder %v1712, %v1757
      %vm1791 = vcmp.ge.f32.partialorder %v1713, %v1761
      %vm1792 = vcmp.ge.f32.partialorder %v1714, %v1757
      %vm1793 = vcmp.ge.f32.partialorder %v1715, %v1761
      %vm1794 = vcmp.ge.f32.partialorder %v1716, %v1757
      %vm1795 = vcmp.ge.f32.partialorder %v1717, %v1761
      %vm1796 = vcmp.ge.f32.partialorder %v1718, %v1757
      %vm1797 = vcmp.ge.f32.partialorder %v1719, %v1761
      %vm1798 = vcmp.ge.f32.partialorder %v1720, %v1757
      %vm1799 = vcmp.ge.f32.partialorder %v1721, %v1761
      %vm1800 = vcmp.ge.f32.partialorder %v1722, %v1757
      %vm1801 = vcmp.ge.f32.partialorder %v1723, %v1761
      %vm1802 = vcmp.ge.f32.partialorder %v1724, %v1757
      %vm1803 = vcmp.ge.f32.partialorder %v1725, %v1761
      %vm1804 = vcmp.ge.f32.partialorder %v1726, %v1757
      %vm1805 = vcmp.ge.f32.partialorder %v1727, %v1761
      %vm1806 = vcmp.ge.f32.partialorder %v1728, %v1757
      %vm1807 = vcmp.ge.f32.partialorder %v1729, %v1761
      %vm1808 = vcmp.ge.f32.partialorder %v1730, %v1757
      %vm1809 = vcmp.ge.f32.partialorder %v1731, %v1761
      %vm1810 = vcmp.ge.f32.partialorder %v1732, %v1757
      %vm1811 = vcmp.ge.f32.partialorder %v1733, %v1761
      %vm1812 = vcmp.ge.f32.partialorder %v1734, %v1757
      %vm1813 = vcmp.ge.f32.partialorder %v1735, %v1761
      %vm1814 = vcmp.ge.f32.partialorder %v1736, %v1757
      %vm1815 = vcmp.ge.f32.partialorder %v1737, %v1761
      %vm1816 = vcmp.ge.f32.partialorder %v1738, %v1757
      %vm1817 = vcmp.ge.f32.partialorder %v1739, %v1761
      %vm1818 = vcmp.ge.f32.partialorder %v1740, %v1757
      %vm1819 = vcmp.ge.f32.partialorder %v1741, %v1761
      %vm1820 = vcmp.ge.f32.partialorder %v1742, %v1757
      %vm1821 = vcmp.ge.f32.partialorder %v1743, %v1761
      %vm1822 = vcmp.ge.f32.partialorder %v1744, %v1757
      %vm1823 = vcmp.ge.f32.partialorder %v1745, %v1761
      %vm1824 = vcmp.ge.f32.partialorder %v1746, %v1757
      %vm1825 = vcmp.ge.f32.partialorder %v1747, %v1761
      %vm1826 = vcmp.ge.f32.partialorder %v1748, %v1757
      %vm1827 = vcmp.ge.f32.partialorder %v1749, %v1761
      %v1829 = vlaneseq
      %v1830 = vshrl.u32 %v1829, 7
      %v1831 = vsub.s32 0, %v1830
      %v1832 = vrot.slane %v1752, %v1831
      %v1833 = vlaneseq
      %v1834 = vshrl.u32 %v1833, 7
      %v1835 = vsub.s32 1, %v1834
      %v1836 = vrot.slane %v1752, %v1835
      %vm1839 = vcmp.lt.f32.partialorder %v1686, %v1832
      %vm1840 = vcmp.lt.f32.partialorder %v1687, %v1836
      %vm1841 = vcmp.lt.f32.partialorder %v1688, %v1832
      %vm1842 = vcmp.lt.f32.partialorder %v1689, %v1836
      %vm1843 = vcmp.lt.f32.partialorder %v1690, %v1832
      %vm1844 = vcmp.lt.f32.partialorder %v1691, %v1836
      %vm1845 = vcmp.lt.f32.partialorder %v1692, %v1832
      %vm1846 = vcmp.lt.f32.partialorder %v1693, %v1836
      %vm1847 = vcmp.lt.f32.partialorder %v1694, %v1832
      %vm1848 = vcmp.lt.f32.partialorder %v1695, %v1836
      %vm1849 = vcmp.lt.f32.partialorder %v1696, %v1832
      %vm1850 = vcmp.lt.f32.partialorder %v1697, %v1836
      %vm1851 = vcmp.lt.f32.partialorder %v1698, %v1832
      %vm1852 = vcmp.lt.f32.partialorder %v1699, %v1836
      %vm1853 = vcmp.lt.f32.partialorder %v1700, %v1832
      %vm1854 = vcmp.lt.f32.partialorder %v1701, %v1836
      %vm1855 = vcmp.lt.f32.partialorder %v1702, %v1832
      %vm1856 = vcmp.lt.f32.partialorder %v1703, %v1836
      %vm1857 = vcmp.lt.f32.partialorder %v1704, %v1832
      %vm1858 = vcmp.lt.f32.partialorder %v1705, %v1836
      %vm1859 = vcmp.lt.f32.partialorder %v1706, %v1832
      %vm1860 = vcmp.lt.f32.partialorder %v1707, %v1836
      %vm1861 = vcmp.lt.f32.partialorder %v1708, %v1832
      %vm1862 = vcmp.lt.f32.partialorder %v1709, %v1836
      %vm1863 = vcmp.lt.f32.partialorder %v1710, %v1832
      %vm1864 = vcmp.lt.f32.partialorder %v1711, %v1836
      %vm1865 = vcmp.lt.f32.partialorder %v1712, %v1832
      %vm1866 = vcmp.lt.f32.partialorder %v1713, %v1836
      %vm1867 = vcmp.lt.f32.partialorder %v1714, %v1832
      %vm1868 = vcmp.lt.f32.partialorder %v1715, %v1836
      %vm1869 = vcmp.lt.f32.partialorder %v1716, %v1832
      %vm1870 = vcmp.lt.f32.partialorder %v1717, %v1836
      %vm1871 = vcmp.lt.f32.partialorder %v1718, %v1832
      %vm1872 = vcmp.lt.f32.partialorder %v1719, %v1836
      %vm1873 = vcmp.lt.f32.partialorder %v1720, %v1832
      %vm1874 = vcmp.lt.f32.partialorder %v1721, %v1836
      %vm1875 = vcmp.lt.f32.partialorder %v1722, %v1832
      %vm1876 = vcmp.lt.f32.partialorder %v1723, %v1836
      %vm1877 = vcmp.lt.f32.partialorder %v1724, %v1832
      %vm1878 = vcmp.lt.f32.partialorder %v1725, %v1836
      %vm1879 = vcmp.lt.f32.partialorder %v1726, %v1832
      %vm1880 = vcmp.lt.f32.partialorder %v1727, %v1836
      %vm1881 = vcmp.lt.f32.partialorder %v1728, %v1832
      %vm1882 = vcmp.lt.f32.partialorder %v1729, %v1836
      %vm1883 = vcmp.lt.f32.partialorder %v1730, %v1832
      %vm1884 = vcmp.lt.f32.partialorder %v1731, %v1836
      %vm1885 = vcmp.lt.f32.partialorder %v1732, %v1832
      %vm1886 = vcmp.lt.f32.partialorder %v1733, %v1836
      %vm1887 = vcmp.lt.f32.partialorder %v1734, %v1832
      %vm1888 = vcmp.lt.f32.partialorder %v1735, %v1836
      %vm1889 = vcmp.lt.f32.partialorder %v1736, %v1832
      %vm1890 = vcmp.lt.f32.partialorder %v1737, %v1836
      %vm1891 = vcmp.lt.f32.partialorder %v1738, %v1832
      %vm1892 = vcmp.lt.f32.partialorder %v1739, %v1836
      %vm1893 = vcmp.lt.f32.partialorder %v1740, %v1832
      %vm1894 = vcmp.lt.f32.partialorder %v1741, %v1836
      %vm1895 = vcmp.lt.f32.partialorder %v1742, %v1832
      %vm1896 = vcmp.lt.f32.partialorder %v1743, %v1836
      %vm1897 = vcmp.lt.f32.partialorder %v1744, %v1832
      %vm1898 = vcmp.lt.f32.partialorder %v1745, %v1836
      %vm1899 = vcmp.lt.f32.partialorder %v1746, %v1832
      %vm1900 = vcmp.lt.f32.partialorder %v1747, %v1836
      %vm1901 = vcmp.lt.f32.partialorder %v1748, %v1832
      %vm1902 = vcmp.lt.f32.partialorder %v1749, %v1836
      %vm1903 = vmand %vm1764, %vm1839
      %vm1904 = vmand %vm1765, %vm1840
      %vm1905 = vmand %vm1766, %vm1841
      %vm1906 = vmand %vm1767, %vm1842
      %vm1907 = vmand %vm1768, %vm1843
      %vm1908 = vmand %vm1769, %vm1844
      %vm1909 = vmand %vm1770, %vm1845
      %vm1910 = vmand %vm1771, %vm1846
      %vm1911 = vmand %vm1772, %vm1847
      %vm1912 = vmand %vm1773, %vm1848
      %vm1913 = vmand %vm1774, %vm1849
      %vm1914 = vmand %vm1775, %vm1850
      %vm1915 = vmand %vm1776, %vm1851
      %vm1916 = vmand %vm1777, %vm1852
      %vm1917 = vmand %vm1778, %vm1853
      %vm1918 = vmand %vm1779, %vm1854
      %vm1919 = vmand %vm1780, %vm1855
      %vm1920 = vmand %vm1781, %vm1856
      %vm1921 = vmand %vm1782, %vm1857
      %vm1922 = vmand %vm1783, %vm1858
      %vm1923 = vmand %vm1784, %vm1859
      %vm1924 = vmand %vm1785, %vm1860
      %vm1925 = vmand %vm1786, %vm1861
      %vm1926 = vmand %vm1787, %vm1862
      %vm1927 = vmand %vm1788, %vm1863
      %vm1928 = vmand %vm1789, %vm1864
      %vm1929 = vmand %vm1790, %vm1865
      %vm1930 = vmand %vm1791, %vm1866
      %vm1931 = vmand %vm1792, %vm1867
      %vm1932 = vmand %vm1793, %vm1868
      %vm1933 = vmand %vm1794, %vm1869
      %vm1934 = vmand %vm1795, %vm1870
      %vm1935 = vmand %vm1796, %vm1871
      %vm1936 = vmand %vm1797, %vm1872
      %vm1937 = vmand %vm1798, %vm1873
      %vm1938 = vmand %vm1799, %vm1874
      %vm1939 = vmand %vm1800, %vm1875
      %vm1940 = vmand %vm1801, %vm1876
      %vm1941 = vmand %vm1802, %vm1877
      %vm1942 = vmand %vm1803, %vm1878
      %vm1943 = vmand %vm1804, %vm1879
      %vm1944 = vmand %vm1805, %vm1880
      %vm1945 = vmand %vm1806, %vm1881
      %vm1946 = vmand %vm1807, %vm1882
      %vm1947 = vmand %vm1808, %vm1883
      %vm1948 = vmand %vm1809, %vm1884
      %vm1949 = vmand %vm1810, %vm1885
      %vm1950 = vmand %vm1811, %vm1886
      %vm1951 = vmand %vm1812, %vm1887
      %vm1952 = vmand %vm1813, %vm1888
      %vm1953 = vmand %vm1814, %vm1889
      %vm1954 = vmand %vm1815, %vm1890
      %vm1955 = vmand %vm1816, %vm1891
      %vm1956 = vmand %vm1817, %vm1892
      %vm1957 = vmand %vm1818, %vm1893
      %vm1958 = vmand %vm1819, %vm1894
      %vm1959 = vmand %vm1820, %vm1895
      %vm1960 = vmand %vm1821, %vm1896
      %vm1961 = vmand %vm1822, %vm1897
      %vm1962 = vmand %vm1823, %vm1898
      %vm1963 = vmand %vm1824, %vm1899
      %vm1964 = vmand %vm1825, %vm1900
      %vm1965 = vmand %vm1826, %vm1901
      %vm1966 = vmand %vm1827, %vm1902
      %v1967 = vsel %vm1903, 1, 0
      %v1968 = vsel %vm1904, 1, 0
      %v1969 = vsel %vm1905, 1, 0
      %v1970 = vsel %vm1906, 1, 0
      %v1971 = vsel %vm1907, 1, 0
      %v1972 = vsel %vm1908, 1, 0
      %v1973 = vsel %vm1909, 1, 0
      %v1974 = vsel %vm1910, 1, 0
      %v1975 = vsel %vm1911, 1, 0
      %v1976 = vsel %vm1912, 1, 0
      %v1977 = vsel %vm1913, 1, 0
      %v1978 = vsel %vm1914, 1, 0
      %v1979 = vsel %vm1915, 1, 0
      %v1980 = vsel %vm1916, 1, 0
      %v1981 = vsel %vm1917, 1, 0
      %v1982 = vsel %vm1918, 1, 0
      %v1983 = vsel %vm1919, 1, 0
      %v1984 = vsel %vm1920, 1, 0
      %v1985 = vsel %vm1921, 1, 0
      %v1986 = vsel %vm1922, 1, 0
      %v1987 = vsel %vm1923, 1, 0
      %v1988 = vsel %vm1924, 1, 0
      %v1989 = vsel %vm1925, 1, 0
      %v1990 = vsel %vm1926, 1, 0
      %v1991 = vsel %vm1927, 1, 0
      %v1992 = vsel %vm1928, 1, 0
      %v1993 = vsel %vm1929, 1, 0
      %v1994 = vsel %vm1930, 1, 0
      %v1995 = vsel %vm1931, 1, 0
      %v1996 = vsel %vm1932, 1, 0
      %v1997 = vsel %vm1933, 1, 0
      %v1998 = vsel %vm1934, 1, 0
      %v1999 = vsel %vm1935, 1, 0
      %v2000 = vsel %vm1936, 1, 0
      %v2001 = vsel %vm1937, 1, 0
      %v2002 = vsel %vm1938, 1, 0
      %v2003 = vsel %vm1939, 1, 0
      %v2004 = vsel %vm1940, 1, 0
      %v2005 = vsel %vm1941, 1, 0
      %v2006 = vsel %vm1942, 1, 0
      %v2007 = vsel %vm1943, 1, 0
      %v2008 = vsel %vm1944, 1, 0
      %v2009 = vsel %vm1945, 1, 0
      %v2010 = vsel %vm1946, 1, 0
      %v2011 = vsel %vm1947, 1, 0
      %v2012 = vsel %vm1948, 1, 0
      %v2013 = vsel %vm1949, 1, 0
      %v2014 = vsel %vm1950, 1, 0
      %v2015 = vsel %vm1951, 1, 0
      %v2016 = vsel %vm1952, 1, 0
      %v2017 = vsel %vm1953, 1, 0
      %v2018 = vsel %vm1954, 1, 0
      %v2019 = vsel %vm1955, 1, 0
      %v2020 = vsel %vm1956, 1, 0
      %v2021 = vsel %vm1957, 1, 0
      %v2022 = vsel %vm1958, 1, 0
      %v2023 = vsel %vm1959, 1, 0
      %v2024 = vsel %vm1960, 1, 0
      %v2025 = vsel %vm1961, 1, 0
      %v2026 = vsel %vm1962, 1, 0
      %v2027 = vsel %vm1963, 1, 0
      %v2028 = vsel %vm1964, 1, 0
      %v2029 = vsel %vm1965, 1, 0
      %v2030 = vsel %vm1966, 1, 0
      %v2031 = vcvt.s32.f32 %v1967
      %v2032 = vcvt.s32.f32 %v1968
      %v2033 = vcvt.s32.f32 %v1969
      %v2034 = vcvt.s32.f32 %v1970
      %v2035 = vcvt.s32.f32 %v1971
      %v2036 = vcvt.s32.f32 %v1972
      %v2037 = vcvt.s32.f32 %v1973
      %v2038 = vcvt.s32.f32 %v1974
      %v2039 = vcvt.s32.f32 %v1975
      %v2040 = vcvt.s32.f32 %v1976
      %v2041 = vcvt.s32.f32 %v1977
      %v2042 = vcvt.s32.f32 %v1978
      %v2043 = vcvt.s32.f32 %v1979
      %v2044 = vcvt.s32.f32 %v1980
      %v2045 = vcvt.s32.f32 %v1981
      %v2046 = vcvt.s32.f32 %v1982
      %v2047 = vcvt.s32.f32 %v1983
      %v2048 = vcvt.s32.f32 %v1984
      %v2049 = vcvt.s32.f32 %v1985
      %v2050 = vcvt.s32.f32 %v1986
      %v2051 = vcvt.s32.f32 %v1987
      %v2052 = vcvt.s32.f32 %v1988
      %v2053 = vcvt.s32.f32 %v1989
      %v2054 = vcvt.s32.f32 %v1990
      %v2055 = vcvt.s32.f32 %v1991
      %v2056 = vcvt.s32.f32 %v1992
      %v2057 = vcvt.s32.f32 %v1993
      %v2058 = vcvt.s32.f32 %v1994
      %v2059 = vcvt.s32.f32 %v1995
      %v2060 = vcvt.s32.f32 %v1996
      %v2061 = vcvt.s32.f32 %v1997
      %v2062 = vcvt.s32.f32 %v1998
      %v2063 = vcvt.s32.f32 %v1999
      %v2064 = vcvt.s32.f32 %v2000
      %v2065 = vcvt.s32.f32 %v2001
      %v2066 = vcvt.s32.f32 %v2002
      %v2067 = vcvt.s32.f32 %v2003
      %v2068 = vcvt.s32.f32 %v2004
      %v2069 = vcvt.s32.f32 %v2005
      %v2070 = vcvt.s32.f32 %v2006
      %v2071 = vcvt.s32.f32 %v2007
      %v2072 = vcvt.s32.f32 %v2008
      %v2073 = vcvt.s32.f32 %v2009
      %v2074 = vcvt.s32.f32 %v2010
      %v2075 = vcvt.s32.f32 %v2011
      %v2076 = vcvt.s32.f32 %v2012
      %v2077 = vcvt.s32.f32 %v2013
      %v2078 = vcvt.s32.f32 %v2014
      %v2079 = vcvt.s32.f32 %v2015
      %v2080 = vcvt.s32.f32 %v2016
      %v2081 = vcvt.s32.f32 %v2017
      %v2082 = vcvt.s32.f32 %v2018
      %v2083 = vcvt.s32.f32 %v2019
      %v2084 = vcvt.s32.f32 %v2020
      %v2085 = vcvt.s32.f32 %v2021
      %v2086 = vcvt.s32.f32 %v2022
      %v2087 = vcvt.s32.f32 %v2023
      %v2088 = vcvt.s32.f32 %v2024
      %v2089 = vcvt.s32.f32 %v2025
      %v2090 = vcvt.s32.f32 %v2026
      %v2091 = vcvt.s32.f32 %v2027
      %v2092 = vcvt.s32.f32 %v2028
      %v2093 = vcvt.s32.f32 %v2029
      %v2094 = vcvt.s32.f32 %v2030
      %2095 = vst [vmem:[#allocation2] sm:$0xff] %v2031
      %vm2096 = vcmask 392192
      %2097 = vst.msk [vmem:[#allocation2 + $0x8] sm:$0xff] %vm2096, %v2032
      %2098 = vst [vmem:[#allocation2 + $0x10] sm:$0xff] %v2033
      %2099 = vst.msk [vmem:[#allocation2 + $0x18] sm:$0xff] %vm2096, %v2034
      %2100 = vst [vmem:[#allocation2 + $0x20] sm:$0xff] %v2035
      %2101 = vst.msk [vmem:[#allocation2 + $0x28] sm:$0xff] %vm2096, %v2036
      %2102 = vst [vmem:[#allocation2 + $0x30] sm:$0xff] %v2037
      %2103 = vst.msk [vmem:[#allocation2 + $0x38] sm:$0xff] %vm2096, %v2038
      %2104 = vst [vmem:[#allocation2 + $0x40] sm:$0xff] %v2039
      %2105 = vst.msk [vmem:[#allocation2 + $0x48] sm:$0xff] %vm2096, %v2040
      %2106 = vst [vmem:[#allocation2 + $0x50] sm:$0xff] %v2041
      %2107 = vst.msk [vmem:[#allocation2 + $0x58] sm:$0xff] %vm2096, %v2042
      %2108 = vst [vmem:[#allocation2 + $0x60] sm:$0xff] %v2043
      %2109 = vst.msk [vmem:[#allocation2 + $0x68] sm:$0xff] %vm2096, %v2044
      %2110 = vst [vmem:[#allocation2 + $0x70] sm:$0xff] %v2045
      %2111 = vst.msk [vmem:[#allocation2 + $0x78] sm:$0xff] %vm2096, %v2046
      %2112 = vst [vmem:[#allocation2 + $0x80] sm:$0xff] %v2047
      %2113 = vst.msk [vmem:[#allocation2 + $0x88] sm:$0xff] %vm2096, %v2048
      %2114 = vst [vmem:[#allocation2 + $0x90] sm:$0xff] %v2049
      %2115 = vst.msk [vmem:[#allocation2 + $0x98] sm:$0xff] %vm2096, %v2050
      %2116 = vst [vmem:[#allocation2 + $0xa0] sm:$0xff] %v2051
      %2117 = vst.msk [vmem:[#allocation2 + $0xa8] sm:$0xff] %vm2096, %v2052
      %2118 = vst [vmem:[#allocation2 + $0xb0] sm:$0xff] %v2053
      %2119 = vst.msk [vmem:[#allocation2 + $0xb8] sm:$0xff] %vm2096, %v2054
      %2120 = vst [vmem:[#allocation2 + $0xc0] sm:$0xff] %v2055
      %2121 = vst.msk [vmem:[#allocation2 + $0xc8] sm:$0xff] %vm2096, %v2056
      %2122 = vst [vmem:[#allocation2 + $0xd0] sm:$0xff] %v2057
      %2123 = vst.msk [vmem:[#allocation2 + $0xd8] sm:$0xff] %vm2096, %v2058
      %2124 = vst [vmem:[#allocation2 + $0xe0] sm:$0xff] %v2059
      %2125 = vst.msk [vmem:[#allocation2 + $0xe8] sm:$0xff] %vm2096, %v2060
      %2126 = vst [vmem:[#allocation2 + $0xf0] sm:$0xff] %v2061
      %2127 = vst.msk [vmem:[#allocation2 + $0xf8] sm:$0xff] %vm2096, %v2062
      %2128 = vst [vmem:[#allocation2 + $0x100] sm:$0xff] %v2063
      %2129 = vst.msk [vmem:[#allocation2 + $0x108] sm:$0xff] %vm2096, %v2064
      %2130 = vst [vmem:[#allocation2 + $0x110] sm:$0xff] %v2065
      %2131 = vst.msk [vmem:[#allocation2 + $0x118] sm:$0xff] %vm2096, %v2066
      %2132 = vst [vmem:[#allocation2 + $0x120] sm:$0xff] %v2067
      %2133 = vst.msk [vmem:[#allocation2 + $0x128] sm:$0xff] %vm2096, %v2068
      %2134 = vst [vmem:[#allocation2 + $0x130] sm:$0xff] %v2069
      %2135 = vst.msk [vmem:[#allocation2 + $0x138] sm:$0xff] %vm2096, %v2070
      %2136 = vst [vmem:[#allocation2 + $0x140] sm:$0xff] %v2071
      %2137 = vst.msk [vmem:[#allocation2 + $0x148] sm:$0xff] %vm2096, %v2072
      %2138 = vst [vmem:[#allocation2 + $0x150] sm:$0xff] %v2073
      %2139 = vst.msk [vmem:[#allocation2 + $0x158] sm:$0xff] %vm2096, %v2074
      %2140 = vst [vmem:[#allocation2 + $0x160] sm:$0xff] %v2075
      %2141 = vst.msk [vmem:[#allocation2 + $0x168] sm:$0xff] %vm2096, %v2076
      %2142 = vst [vmem:[#allocation2 + $0x170] sm:$0xff] %v2077
      %2143 = vst.msk [vmem:[#allocation2 + $0x178] sm:$0xff] %vm2096, %v2078
      %2144 = vst [vmem:[#allocation2 + $0x180] sm:$0xff] %v2079
      %2145 = vst.msk [vmem:[#allocation2 + $0x188] sm:$0xff] %vm2096, %v2080
      %2146 = vst [vmem:[#allocation2 + $0x190] sm:$0xff] %v2081
      %2147 = vst.msk [vmem:[#allocation2 + $0x198] sm:$0xff] %vm2096, %v2082
      %2148 = vst [vmem:[#allocation2 + $0x1a0] sm:$0xff] %v2083
      %2149 = vst.msk [vmem:[#allocation2 + $0x1a8] sm:$0xff] %vm2096, %v2084
      %2150 = vst [vmem:[#allocation2 + $0x1b0] sm:$0xff] %v2085
      %2151 = vst.msk [vmem:[#allocation2 + $0x1b8] sm:$0xff] %vm2096, %v2086
      %2152 = vst [vmem:[#allocation2 + $0x1c0] sm:$0xff] %v2087
      %2153 = vst.msk [vmem:[#allocation2 + $0x1c8] sm:$0xff] %vm2096, %v2088
      %2154 = vst [vmem:[#allocation2 + $0x1d0] sm:$0xff] %v2089
      %2155 = vst.msk [vmem:[#allocation2 + $0x1d8] sm:$0xff] %vm2096, %v2090
      %2156 = vst [vmem:[#allocation2 + $0x1e0] sm:$0xff] %v2091
      %2157 = vst.msk [vmem:[#allocation2 + $0x1e8] sm:$0xff] %vm2096, %v2092
      %2158 = vst [vmem:[#allocation2 + $0x1f0] sm:$0xff] %v2093
      %2159 = vst.msk [vmem:[#allocation2 + $0x1f8] sm:$0xff] %vm2096, %v2094
      %s2160 = scalar_lea.vmem %s1, 2
      %v2161 = vld [vmem:[%s2160] ss:$8 sm:$0x3]
      %s2162 = scalar_lea.vmem %s1, 3
      %v2163 = vld [vmem:[%s2162] ss:$8 sm:$0x3]
      %s2164 = scalar_lea.vmem %s1, 4
      %v2165 = vld [vmem:[%s2164] ss:$8 sm:$0x3]
      %s2166 = scalar_lea.vmem %s1, 5
      %v2167 = vld [vmem:[%s2166] ss:$8 sm:$0x3]
      %v2168 = vld [vmem:[#allocation3] sm:$0xff]
      %v2169 = vld [vmem:[#allocation3 + $0x8] sm:$0xff]
      %v2170 = vld [vmem:[#allocation3 + $0x10] sm:$0xff]
      %v2171 = vld [vmem:[#allocation3 + $0x18] sm:$0xff]
      %v2172 = vld [vmem:[#allocation3 + $0x20] sm:$0xff]
      %v2173 = vld [vmem:[#allocation3 + $0x28] sm:$0xff]
      %v2174 = vld [vmem:[#allocation3 + $0x30] sm:$0xff]
      %v2175 = vld [vmem:[#allocation3 + $0x38] sm:$0xff]
      %v2176 = vld [vmem:[#allocation3 + $0x40] sm:$0xff]
      %v2177 = vld [vmem:[#allocation3 + $0x48] sm:$0xff]
      %v2178 = vld [vmem:[#allocation3 + $0x50] sm:$0xff]
      %v2179 = vld [vmem:[#allocation3 + $0x58] sm:$0xff]
      %v2180 = vld [vmem:[#allocation3 + $0x60] sm:$0xff]
      %v2181 = vld [vmem:[#allocation3 + $0x68] sm:$0xff]
      %v2182 = vld [vmem:[#allocation3 + $0x70] sm:$0xff]
      %v2183 = vld [vmem:[#allocation3 + $0x78] sm:$0xff]
      %v2184 = vld [vmem:[#allocation3 + $0x80] sm:$0xff]
      %v2185 = vld [vmem:[#allocation3 + $0x88] sm:$0xff]
      %v2186 = vld [vmem:[#allocation3 + $0x90] sm:$0xff]
      %v2187 = vld [vmem:[#allocation3 + $0x98] sm:$0xff]
      %v2188 = vld [vmem:[#allocation3 + $0xa0] sm:$0xff]
      %v2189 = vld [vmem:[#allocation3 + $0xa8] sm:$0xff]
      %v2190 = vld [vmem:[#allocation3 + $0xb0] sm:$0xff]
      %v2191 = vld [vmem:[#allocation3 + $0xb8] sm:$0xff]
      %v2192 = vld [vmem:[#allocation3 + $0xc0] sm:$0xff]
      %v2193 = vld [vmem:[#allocation3 + $0xc8] sm:$0xff]
      %v2194 = vld [vmem:[#allocation3 + $0xd0] sm:$0xff]
      %v2195 = vld [vmem:[#allocation3 + $0xd8] sm:$0xff]
      %v2196 = vld [vmem:[#allocation3 + $0xe0] sm:$0xff]
      %v2197 = vld [vmem:[#allocation3 + $0xe8] sm:$0xff]
      %v2198 = vld [vmem:[#allocation3 + $0xf0] sm:$0xff]
      %v2199 = vld [vmem:[#allocation3 + $0xf8] sm:$0xff]
      %v2200 = vld [vmem:[#allocation3 + $0x100] sm:$0xff]
      %v2201 = vld [vmem:[#allocation3 + $0x108] sm:$0xff]
      %v2202 = vld [vmem:[#allocation3 + $0x110] sm:$0xff]
      %v2203 = vld [vmem:[#allocation3 + $0x118] sm:$0xff]
      %v2204 = vld [vmem:[#allocation3 + $0x120] sm:$0xff]
      %v2205 = vld [vmem:[#allocation3 + $0x128] sm:$0xff]
      %v2206 = vld [vmem:[#allocation3 + $0x130] sm:$0xff]
      %v2207 = vld [vmem:[#allocation3 + $0x138] sm:$0xff]
      %v2208 = vld [vmem:[#allocation3 + $0x140] sm:$0xff]
      %v2209 = vld [vmem:[#allocation3 + $0x148] sm:$0xff]
      %v2210 = vld [vmem:[#allocation3 + $0x150] sm:$0xff]
      %v2211 = vld [vmem:[#allocation3 + $0x158] sm:$0xff]
      %v2212 = vld [vmem:[#allocation3 + $0x160] sm:$0xff]
      %v2213 = vld [vmem:[#allocation3 + $0x168] sm:$0xff]
      %v2214 = vld [vmem:[#allocation3 + $0x170] sm:$0xff]
      %v2215 = vld [vmem:[#allocation3 + $0x178] sm:$0xff]
      %v2216 = vld [vmem:[#allocation3 + $0x180] sm:$0xff]
      %v2217 = vld [vmem:[#allocation3 + $0x188] sm:$0xff]
      %v2218 = vld [vmem:[#allocation3 + $0x190] sm:$0xff]
      %v2219 = vld [vmem:[#allocation3 + $0x198] sm:$0xff]
      %v2220 = vld [vmem:[#allocation3 + $0x1a0] sm:$0xff]
      %v2221 = vld [vmem:[#allocation3 + $0x1a8] sm:$0xff]
      %v2222 = vld [vmem:[#allocation3 + $0x1b0] sm:$0xff]
      %v2223 = vld [vmem:[#allocation3 + $0x1b8] sm:$0xff]
      %v2224 = vld [vmem:[#allocation3 + $0x1c0] sm:$0xff]
      %v2225 = vld [vmem:[#allocation3 + $0x1c8] sm:$0xff]
      %v2226 = vld [vmem:[#allocation3 + $0x1d0] sm:$0xff]
      %v2227 = vld [vmem:[#allocation3 + $0x1d8] sm:$0xff]
      %v2228 = vld [vmem:[#allocation3 + $0x1e0] sm:$0xff]
      %v2229 = vld [vmem:[#allocation3 + $0x1e8] sm:$0xff]
      %v2230 = vld [vmem:[#allocation3 + $0x1f0] sm:$0xff]
      %v2231 = vld [vmem:[#allocation3 + $0x1f8] sm:$0xff]
      %v2232 = vld [vmem:[#allocation2] sm:$0xff]
      %v2233 = vld [vmem:[#allocation2 + $0x8] sm:$0xff]
      %v2234 = vld [vmem:[#allocation2 + $0x10] sm:$0xff]
      %v2235 = vld [vmem:[#allocation2 + $0x18] sm:$0xff]
      %v2236 = vld [vmem:[#allocation2 + $0x20] sm:$0xff]
      %v2237 = vld [vmem:[#allocation2 + $0x28] sm:$0xff]
      %v2238 = vld [vmem:[#allocation2 + $0x30] sm:$0xff]
      %v2239 = vld [vmem:[#allocation2 + $0x38] sm:$0xff]
      %v2240 = vld [vmem:[#allocation2 + $0x40] sm:$0xff]
      %v2241 = vld [vmem:[#allocation2 + $0x48] sm:$0xff]
      %v2242 = vld [vmem:[#allocation2 + $0x50] sm:$0xff]
      %v2243 = vld [vmem:[#allocation2 + $0x58] sm:$0xff]
      %v2244 = vld [vmem:[#allocation2 + $0x60] sm:$0xff]
      %v2245 = vld [vmem:[#allocation2 + $0x68] sm:$0xff]
      %v2246 = vld [vmem:[#allocation2 + $0x70] sm:$0xff]
      %v2247 = vld [vmem:[#allocation2 + $0x78] sm:$0xff]
      %v2248 = vld [vmem:[#allocation2 + $0x80] sm:$0xff]
      %v2249 = vld [vmem:[#allocation2 + $0x88] sm:$0xff]
      %v2250 = vld [vmem:[#allocation2 + $0x90] sm:$0xff]
      %v2251 = vld [vmem:[#allocation2 + $0x98] sm:$0xff]
      %v2252 = vld [vmem:[#allocation2 + $0xa0] sm:$0xff]
      %v2253 = vld [vmem:[#allocation2 + $0xa8] sm:$0xff]
      %v2254 = vld [vmem:[#allocation2 + $0xb0] sm:$0xff]
      %v2255 = vld [vmem:[#allocation2 + $0xb8] sm:$0xff]
      %v2256 = vld [vmem:[#allocation2 + $0xc0] sm:$0xff]
      %v2257 = vld [vmem:[#allocation2 + $0xc8] sm:$0xff]
      %v2258 = vld [vmem:[#allocation2 + $0xd0] sm:$0xff]
      %v2259 = vld [vmem:[#allocation2 + $0xd8] sm:$0xff]
      %v2260 = vld [vmem:[#allocation2 + $0xe0] sm:$0xff]
      %v2261 = vld [vmem:[#allocation2 + $0xe8] sm:$0xff]
      %v2262 = vld [vmem:[#allocation2 + $0xf0] sm:$0xff]
      %v2263 = vld [vmem:[#allocation2 + $0xf8] sm:$0xff]
      %v2264 = vld [vmem:[#allocation2 + $0x100] sm:$0xff]
      %v2265 = vld [vmem:[#allocation2 + $0x108] sm:$0xff]
      %v2266 = vld [vmem:[#allocation2 + $0x110] sm:$0xff]
      %v2267 = vld [vmem:[#allocation2 + $0x118] sm:$0xff]
      %v2268 = vld [vmem:[#allocation2 + $0x120] sm:$0xff]
      %v2269 = vld [vmem:[#allocation2 + $0x128] sm:$0xff]
      %v2270 = vld [vmem:[#allocation2 + $0x130] sm:$0xff]
      %v2271 = vld [vmem:[#allocation2 + $0x138] sm:$0xff]
      %v2272 = vld [vmem:[#allocation2 + $0x140] sm:$0xff]
      %v2273 = vld [vmem:[#allocation2 + $0x148] sm:$0xff]
      %v2274 = vld [vmem:[#allocation2 + $0x150] sm:$0xff]
      %v2275 = vld [vmem:[#allocation2 + $0x158] sm:$0xff]
      %v2276 = vld [vmem:[#allocation2 + $0x160] sm:$0xff]
      %v2277 = vld [vmem:[#allocation2 + $0x168] sm:$0xff]
      %v2278 = vld [vmem:[#allocation2 + $0x170] sm:$0xff]
      %v2279 = vld [vmem:[#allocation2 + $0x178] sm:$0xff]
      %v2280 = vld [vmem:[#allocation2 + $0x180] sm:$0xff]
      %v2281 = vld [vmem:[#allocation2 + $0x188] sm:$0xff]
      %v2282 = vld [vmem:[#allocation2 + $0x190] sm:$0xff]
      %v2283 = vld [vmem:[#allocation2 + $0x198] sm:$0xff]
      %v2284 = vld [vmem:[#allocation2 + $0x1a0] sm:$0xff]
      %v2285 = vld [vmem:[#allocation2 + $0x1a8] sm:$0xff]
      %v2286 = vld [vmem:[#allocation2 + $0x1b0] sm:$0xff]
      %v2287 = vld [vmem:[#allocation2 + $0x1b8] sm:$0xff]
      %v2288 = vld [vmem:[#allocation2 + $0x1c0] sm:$0xff]
      %v2289 = vld [vmem:[#allocation2 + $0x1c8] sm:$0xff]
      %v2290 = vld [vmem:[#allocation2 + $0x1d0] sm:$0xff]
      %v2291 = vld [vmem:[#allocation2 + $0x1d8] sm:$0xff]
      %v2292 = vld [vmem:[#allocation2 + $0x1e0] sm:$0xff]
      %v2293 = vld [vmem:[#allocation2 + $0x1e8] sm:$0xff]
      %v2294 = vld [vmem:[#allocation2 + $0x1f0] sm:$0xff]
      %v2295 = vld [vmem:[#allocation2 + $0x1f8] sm:$0xff]
      %v2297 = vlaneseq
      %v2298 = vshrl.u32 %v2297, 7
      %v2299 = vsub.s32 0, %v2298
      %v2300 = vrot.slane %v2161, %v2299
      %v2301 = vlaneseq
      %v2302 = vshrl.u32 %v2301, 7
      %v2303 = vsub.s32 1, %v2302
      %v2304 = vrot.slane %v2161, %v2303
      %v2307 = vsub.f32 %v2168, %v2300
      %v2308 = vsub.f32 %v2169, %v2304
      %v2309 = vsub.f32 %v2170, %v2300
      %v2310 = vsub.f32 %v2171, %v2304
      %v2311 = vsub.f32 %v2172, %v2300
      %v2312 = vsub.f32 %v2173, %v2304
      %v2313 = vsub.f32 %v2174, %v2300
      %v2314 = vsub.f32 %v2175, %v2304
      %v2315 = vsub.f32 %v2176, %v2300
      %v2316 = vsub.f32 %v2177, %v2304
      %v2317 = vsub.f32 %v2178, %v2300
      %v2318 = vsub.f32 %v2179, %v2304
      %v2319 = vsub.f32 %v2180, %v2300
      %v2320 = vsub.f32 %v2181, %v2304
      %v2321 = vsub.f32 %v2182, %v2300
      %v2322 = vsub.f32 %v2183, %v2304
      %v2323 = vsub.f32 %v2184, %v2300
      %v2324 = vsub.f32 %v2185, %v2304
      %v2325 = vsub.f32 %v2186, %v2300
      %v2326 = vsub.f32 %v2187, %v2304
      %v2327 = vsub.f32 %v2188, %v2300
      %v2328 = vsub.f32 %v2189, %v2304
      %v2329 = vsub.f32 %v2190, %v2300
      %v2330 = vsub.f32 %v2191, %v2304
      %v2331 = vsub.f32 %v2192, %v2300
      %v2332 = vsub.f32 %v2193, %v2304
      %v2333 = vsub.f32 %v2194, %v2300
      %v2334 = vsub.f32 %v2195, %v2304
      %v2335 = vsub.f32 %v2196, %v2300
      %v2336 = vsub.f32 %v2197, %v2304
      %v2337 = vsub.f32 %v2198, %v2300
      %v2338 = vsub.f32 %v2199, %v2304
      %v2339 = vsub.f32 %v2200, %v2300
      %v2340 = vsub.f32 %v2201, %v2304
      %v2341 = vsub.f32 %v2202, %v2300
      %v2342 = vsub.f32 %v2203, %v2304
      %v2343 = vsub.f32 %v2204, %v2300
      %v2344 = vsub.f32 %v2205, %v2304
      %v2345 = vsub.f32 %v2206, %v2300
      %v2346 = vsub.f32 %v2207, %v2304
      %v2347 = vsub.f32 %v2208, %v2300
      %v2348 = vsub.f32 %v2209, %v2304
      %v2349 = vsub.f32 %v2210, %v2300
      %v2350 = vsub.f32 %v2211, %v2304
      %v2351 = vsub.f32 %v2212, %v2300
      %v2352 = vsub.f32 %v2213, %v2304
      %v2353 = vsub.f32 %v2214, %v2300
      %v2354 = vsub.f32 %v2215, %v2304
      %v2355 = vsub.f32 %v2216, %v2300
      %v2356 = vsub.f32 %v2217, %v2304
      %v2357 = vsub.f32 %v2218, %v2300
      %v2358 = vsub.f32 %v2219, %v2304
      %v2359 = vsub.f32 %v2220, %v2300
      %v2360 = vsub.f32 %v2221, %v2304
      %v2361 = vsub.f32 %v2222, %v2300
      %v2362 = vsub.f32 %v2223, %v2304
      %v2363 = vsub.f32 %v2224, %v2300
      %v2364 = vsub.f32 %v2225, %v2304
      %v2365 = vsub.f32 %v2226, %v2300
      %v2366 = vsub.f32 %v2227, %v2304
      %v2367 = vsub.f32 %v2228, %v2300
      %v2368 = vsub.f32 %v2229, %v2304
      %v2369 = vsub.f32 %v2230, %v2300
      %v2370 = vsub.f32 %v2231, %v2304
      %v2372 = vlaneseq
      %v2373 = vshrl.u32 %v2372, 7
      %v2374 = vsub.s32 0, %v2373
      %v2375 = vrot.slane %v2163, %v2374
      %v2376 = vlaneseq
      %v2377 = vshrl.u32 %v2376, 7
      %v2378 = vsub.s32 1, %v2377
      %v2379 = vrot.slane %v2163, %v2378
      %v2382 = vmul.f32 %v2307, %v2375
      %v2383 = vmul.f32 %v2308, %v2379
      %v2384 = vmul.f32 %v2309, %v2375
      %v2385 = vmul.f32 %v2310, %v2379
      %v2386 = vmul.f32 %v2311, %v2375
      %v2387 = vmul.f32 %v2312, %v2379
      %v2388 = vmul.f32 %v2313, %v2375
      %v2389 = vmul.f32 %v2314, %v2379
      %v2390 = vmul.f32 %v2315, %v2375
      %v2391 = vmul.f32 %v2316, %v2379
      %v2392 = vmul.f32 %v2317, %v2375
      %v2393 = vmul.f32 %v2318, %v2379
      %v2394 = vmul.f32 %v2319, %v2375
      %v2395 = vmul.f32 %v2320, %v2379
      %v2396 = vmul.f32 %v2321, %v2375
      %v2397 = vmul.f32 %v2322, %v2379
      %v2398 = vmul.f32 %v2323, %v2375
      %v2399 = vmul.f32 %v2324, %v2379
      %v2400 = vmul.f32 %v2325, %v2375
      %v2401 = vmul.f32 %v2326, %v2379
      %v2402 = vmul.f32 %v2327, %v2375
      %v2403 = vmul.f32 %v2328, %v2379
      %v2404 = vmul.f32 %v2329, %v2375
      %v2405 = vmul.f32 %v2330, %v2379
      %v2406 = vmul.f32 %v2331, %v2375
      %v2407 = vmul.f32 %v2332, %v2379
      %v2408 = vmul.f32 %v2333, %v2375
      %v2409 = vmul.f32 %v2334, %v2379
      %v2410 = vmul.f32 %v2335, %v2375
      %v2411 = vmul.f32 %v2336, %v2379
      %v2412 = vmul.f32 %v2337, %v2375
      %v2413 = vmul.f32 %v2338, %v2379
      %v2414 = vmul.f32 %v2339, %v2375
      %v2415 = vmul.f32 %v2340, %v2379
      %v2416 = vmul.f32 %v2341, %v2375
      %v2417 = vmul.f32 %v2342, %v2379
      %v2418 = vmul.f32 %v2343, %v2375
      %v2419 = vmul.f32 %v2344, %v2379
      %v2420 = vmul.f32 %v2345, %v2375
      %v2421 = vmul.f32 %v2346, %v2379
      %v2422 = vmul.f32 %v2347, %v2375
      %v2423 = vmul.f32 %v2348, %v2379
      %v2424 = vmul.f32 %v2349, %v2375
      %v2425 = vmul.f32 %v2350, %v2379
      %v2426 = vmul.f32 %v2351, %v2375
      %v2427 = vmul.f32 %v2352, %v2379
      %v2428 = vmul.f32 %v2353, %v2375
      %v2429 = vmul.f32 %v2354, %v2379
      %v2430 = vmul.f32 %v2355, %v2375
      %v2431 = vmul.f32 %v2356, %v2379
      %v2432 = vmul.f32 %v2357, %v2375
      %v2433 = vmul.f32 %v2358, %v2379
      %v2434 = vmul.f32 %v2359, %v2375
      %v2435 = vmul.f32 %v2360, %v2379
      %v2436 = vmul.f32 %v2361, %v2375
      %v2437 = vmul.f32 %v2362, %v2379
      %v2438 = vmul.f32 %v2363, %v2375
      %v2439 = vmul.f32 %v2364, %v2379
      %v2440 = vmul.f32 %v2365, %v2375
      %v2441 = vmul.f32 %v2366, %v2379
      %v2442 = vmul.f32 %v2367, %v2375
      %v2443 = vmul.f32 %v2368, %v2379
      %v2444 = vmul.f32 %v2369, %v2375
      %v2445 = vmul.f32 %v2370, %v2379
      %v2446 = vmul.f32 %v2382, %v2232
      %v2447 = vmul.f32 %v2383, %v2233
      %v2448 = vmul.f32 %v2384, %v2234
      %v2449 = vmul.f32 %v2385, %v2235
      %v2450 = vmul.f32 %v2386, %v2236
      %v2451 = vmul.f32 %v2387, %v2237
      %v2452 = vmul.f32 %v2388, %v2238
      %v2453 = vmul.f32 %v2389, %v2239
      %v2454 = vmul.f32 %v2390, %v2240
      %v2455 = vmul.f32 %v2391, %v2241
      %v2456 = vmul.f32 %v2392, %v2242
      %v2457 = vmul.f32 %v2393, %v2243
      %v2458 = vmul.f32 %v2394, %v2244
      %v2459 = vmul.f32 %v2395, %v2245
      %v2460 = vmul.f32 %v2396, %v2246
      %v2461 = vmul.f32 %v2397, %v2247
      %v2462 = vmul.f32 %v2398, %v2248
      %v2463 = vmul.f32 %v2399, %v2249
      %v2464 = vmul.f32 %v2400, %v2250
      %v2465 = vmul.f32 %v2401, %v2251
      %v2466 = vmul.f32 %v2402, %v2252
      %v2467 = vmul.f32 %v2403, %v2253
      %v2468 = vmul.f32 %v2404, %v2254
      %v2469 = vmul.f32 %v2405, %v2255
      %v2470 = vmul.f32 %v2406, %v2256
      %v2471 = vmul.f32 %v2407, %v2257
      %v2472 = vmul.f32 %v2408, %v2258
      %v2473 = vmul.f32 %v2409, %v2259
      %v2474 = vmul.f32 %v2410, %v2260
      %v2475 = vmul.f32 %v2411, %v2261
      %v2476 = vmul.f32 %v2412, %v2262
      %v2477 = vmul.f32 %v2413, %v2263
      %v2478 = vmul.f32 %v2414, %v2264
      %v2479 = vmul.f32 %v2415, %v2265
      %v2480 = vmul.f32 %v2416, %v2266
      %v2481 = vmul.f32 %v2417, %v2267
      %v2482 = vmul.f32 %v2418, %v2268
      %v2483 = vmul.f32 %v2419, %v2269
      %v2484 = vmul.f32 %v2420, %v2270
      %v2485 = vmul.f32 %v2421, %v2271
      %v2486 = vmul.f32 %v2422, %v2272
      %v2487 = vmul.f32 %v2423, %v2273
      %v2488 = vmul.f32 %v2424, %v2274
      %v2489 = vmul.f32 %v2425, %v2275
      %v2490 = vmul.f32 %v2426, %v2276
      %v2491 = vmul.f32 %v2427, %v2277
      %v2492 = vmul.f32 %v2428, %v2278
      %v2493 = vmul.f32 %v2429, %v2279
      %v2494 = vmul.f32 %v2430, %v2280
      %v2495 = vmul.f32 %v2431, %v2281
      %v2496 = vmul.f32 %v2432, %v2282
      %v2497 = vmul.f32 %v2433, %v2283
      %v2498 = vmul.f32 %v2434, %v2284
      %v2499 = vmul.f32 %v2435, %v2285
      %v2500 = vmul.f32 %v2436, %v2286
      %v2501 = vmul.f32 %v2437, %v2287
      %v2502 = vmul.f32 %v2438, %v2288
      %v2503 = vmul.f32 %v2439, %v2289
      %v2504 = vmul.f32 %v2440, %v2290
      %v2505 = vmul.f32 %v2441, %v2291
      %v2506 = vmul.f32 %v2442, %v2292
      %v2507 = vmul.f32 %v2443, %v2293
      %v2508 = vmul.f32 %v2444, %v2294
      %v2509 = vmul.f32 %v2445, %v2295
      %v2511 = vlaneseq
      %v2512 = vshrl.u32 %v2511, 7
      %v2513 = vsub.s32 0, %v2512
      %v2514 = vrot.slane %v2165, %v2513
      %v2515 = vlaneseq
      %v2516 = vshrl.u32 %v2515, 7
      %v2517 = vsub.s32 1, %v2516
      %v2518 = vrot.slane %v2165, %v2517
      %v2521 = vsub.f32 %v2514, %v2168
      %v2522 = vsub.f32 %v2518, %v2169
      %v2523 = vsub.f32 %v2514, %v2170
      %v2524 = vsub.f32 %v2518, %v2171
      %v2525 = vsub.f32 %v2514, %v2172
      %v2526 = vsub.f32 %v2518, %v2173
      %v2527 = vsub.f32 %v2514, %v2174
      %v2528 = vsub.f32 %v2518, %v2175
      %v2529 = vsub.f32 %v2514, %v2176
      %v2530 = vsub.f32 %v2518, %v2177
      %v2531 = vsub.f32 %v2514, %v2178
      %v2532 = vsub.f32 %v2518, %v2179
      %v2533 = vsub.f32 %v2514, %v2180
      %v2534 = vsub.f32 %v2518, %v2181
      %v2535 = vsub.f32 %v2514, %v2182
      %v2536 = vsub.f32 %v2518, %v2183
      %v2537 = vsub.f32 %v2514, %v2184
      %v2538 = vsub.f32 %v2518, %v2185
      %v2539 = vsub.f32 %v2514, %v2186
      %v2540 = vsub.f32 %v2518, %v2187
      %v2541 = vsub.f32 %v2514, %v2188
      %v2542 = vsub.f32 %v2518, %v2189
      %v2543 = vsub.f32 %v2514, %v2190
      %v2544 = vsub.f32 %v2518, %v2191
      %v2545 = vsub.f32 %v2514, %v2192
      %v2546 = vsub.f32 %v2518, %v2193
      %v2547 = vsub.f32 %v2514, %v2194
      %v2548 = vsub.f32 %v2518, %v2195
      %v2549 = vsub.f32 %v2514, %v2196
      %v2550 = vsub.f32 %v2518, %v2197
      %v2551 = vsub.f32 %v2514, %v2198
      %v2552 = vsub.f32 %v2518, %v2199
      %v2553 = vsub.f32 %v2514, %v2200
      %v2554 = vsub.f32 %v2518, %v2201
      %v2555 = vsub.f32 %v2514, %v2202
      %v2556 = vsub.f32 %v2518, %v2203
      %v2557 = vsub.f32 %v2514, %v2204
      %v2558 = vsub.f32 %v2518, %v2205
      %v2559 = vsub.f32 %v2514, %v2206
      %v2560 = vsub.f32 %v2518, %v2207
      %v2561 = vsub.f32 %v2514, %v2208
      %v2562 = vsub.f32 %v2518, %v2209
      %v2563 = vsub.f32 %v2514, %v2210
      %v2564 = vsub.f32 %v2518, %v2211
      %v2565 = vsub.f32 %v2514, %v2212
      %v2566 = vsub.f32 %v2518, %v2213
      %v2567 = vsub.f32 %v2514, %v2214
      %v2568 = vsub.f32 %v2518, %v2215
      %v2569 = vsub.f32 %v2514, %v2216
      %v2570 = vsub.f32 %v2518, %v2217
      %v2571 = vsub.f32 %v2514, %v2218
      %v2572 = vsub.f32 %v2518, %v2219
      %v2573 = vsub.f32 %v2514, %v2220
      %v2574 = vsub.f32 %v2518, %v2221
      %v2575 = vsub.f32 %v2514, %v2222
      %v2576 = vsub.f32 %v2518, %v2223
      %v2577 = vsub.f32 %v2514, %v2224
      %v2578 = vsub.f32 %v2518, %v2225
      %v2579 = vsub.f32 %v2514, %v2226
      %v2580 = vsub.f32 %v2518, %v2227
      %v2581 = vsub.f32 %v2514, %v2228
      %v2582 = vsub.f32 %v2518, %v2229
      %v2583 = vsub.f32 %v2514, %v2230
      %v2584 = vsub.f32 %v2518, %v2231
      %v2586 = vlaneseq
      %v2587 = vshrl.u32 %v2586, 7
      %v2588 = vsub.s32 0, %v2587
      %v2589 = vrot.slane %v2167, %v2588
      %v2590 = vlaneseq
      %v2591 = vshrl.u32 %v2590, 7
      %v2592 = vsub.s32 1, %v2591
      %v2593 = vrot.slane %v2167, %v2592
      %v2596 = vmul.f32 %v2521, %v2589
      %v2597 = vmul.f32 %v2522, %v2593
      %v2598 = vmul.f32 %v2523, %v2589
      %v2599 = vmul.f32 %v2524, %v2593
      %v2600 = vmul.f32 %v2525, %v2589
      %v2601 = vmul.f32 %v2526, %v2593
      %v2602 = vmul.f32 %v2527, %v2589
      %v2603 = vmul.f32 %v2528, %v2593
      %v2604 = vmul.f32 %v2529, %v2589
      %v2605 = vmul.f32 %v2530, %v2593
      %v2606 = vmul.f32 %v2531, %v2589
      %v2607 = vmul.f32 %v2532, %v2593
      %v2608 = vmul.f32 %v2533, %v2589
      %v2609 = vmul.f32 %v2534, %v2593
      %v2610 = vmul.f32 %v2535, %v2589
      %v2611 = vmul.f32 %v2536, %v2593
      %v2612 = vmul.f32 %v2537, %v2589
      %v2613 = vmul.f32 %v2538, %v2593
      %v2614 = vmul.f32 %v2539, %v2589
      %v2615 = vmul.f32 %v2540, %v2593
      %v2616 = vmul.f32 %v2541, %v2589
      %v2617 = vmul.f32 %v2542, %v2593
      %v2618 = vmul.f32 %v2543, %v2589
      %v2619 = vmul.f32 %v2544, %v2593
      %v2620 = vmul.f32 %v2545, %v2589
      %v2621 = vmul.f32 %v2546, %v2593
      %v2622 = vmul.f32 %v2547, %v2589
      %v2623 = vmul.f32 %v2548, %v2593
      %v2624 = vmul.f32 %v2549, %v2589
      %v2625 = vmul.f32 %v2550, %v2593
      %v2626 = vmul.f32 %v2551, %v2589
      %v2627 = vmul.f32 %v2552, %v2593
      %v2628 = vmul.f32 %v2553, %v2589
      %v2629 = vmul.f32 %v2554, %v2593
      %v2630 = vmul.f32 %v2555, %v2589
      %v2631 = vmul.f32 %v2556, %v2593
      %v2632 = vmul.f32 %v2557, %v2589
      %v2633 = vmul.f32 %v2558, %v2593
      %v2634 = vmul.f32 %v2559, %v2589
      %v2635 = vmul.f32 %v2560, %v2593
      %v2636 = vmul.f32 %v2561, %v2589
      %v2637 = vmul.f32 %v2562, %v2593
      %v2638 = vmul.f32 %v2563, %v2589
      %v2639 = vmul.f32 %v2564, %v2593
      %v2640 = vmul.f32 %v2565, %v2589
      %v2641 = vmul.f32 %v2566, %v2593
      %v2642 = vmul.f32 %v2567, %v2589
      %v2643 = vmul.f32 %v2568, %v2593
      %v2644 = vmul.f32 %v2569, %v2589
      %v2645 = vmul.f32 %v2570, %v2593
      %v2646 = vmul.f32 %v2571, %v2589
      %v2647 = vmul.f32 %v2572, %v2593
      %v2648 = vmul.f32 %v2573, %v2589
      %v2649 = vmul.f32 %v2574, %v2593
      %v2650 = vmul.f32 %v2575, %v2589
      %v2651 = vmul.f32 %v2576, %v2593
      %v2652 = vmul.f32 %v2577, %v2589
      %v2653 = vmul.f32 %v2578, %v2593
      %v2654 = vmul.f32 %v2579, %v2589
      %v2655 = vmul.f32 %v2580, %v2593
      %v2656 = vmul.f32 %v2581, %v2589
      %v2657 = vmul.f32 %v2582, %v2593
      %v2658 = vmul.f32 %v2583, %v2589
      %v2659 = vmul.f32 %v2584, %v2593
      %2724 = vrot.lane.b32.xlu0 %v2232, 112
      %v2725 = vpop.permute.xlu0 %2724
      %2726 = vrot.lane.b32.xlu0 %v2233, 112
      %v2727 = vpop.permute.xlu0 %2726
      %2728 = vrot.lane.b32.xlu0 %v2234, 112
      %v2729 = vpop.permute.xlu0 %2728
      %2730 = vrot.lane.b32.xlu0 %v2235, 112
      %v2731 = vpop.permute.xlu0 %2730
      %2732 = vrot.lane.b32.xlu0 %v2236, 112
      %v2733 = vpop.permute.xlu0 %2732
      %2734 = vrot.lane.b32.xlu0 %v2237, 112
      %v2735 = vpop.permute.xlu0 %2734
      %2736 = vrot.lane.b32.xlu0 %v2238, 112
      %v2737 = vpop.permute.xlu0 %2736
      %2738 = vrot.lane.b32.xlu0 %v2239, 112
      %v2739 = vpop.permute.xlu0 %2738
      %2740 = vrot.lane.b32.xlu0 %v2240, 112
      %v2741 = vpop.permute.xlu0 %2740
      %2742 = vrot.lane.b32.xlu0 %v2241, 112
      %v2743 = vpop.permute.xlu0 %2742
      %2744 = vrot.lane.b32.xlu0 %v2242, 112
      %v2745 = vpop.permute.xlu0 %2744
      %2746 = vrot.lane.b32.xlu0 %v2243, 112
      %v2747 = vpop.permute.xlu0 %2746
      %2748 = vrot.lane.b32.xlu0 %v2244, 112
      %v2749 = vpop.permute.xlu0 %2748
      %2750 = vrot.lane.b32.xlu0 %v2245, 112
      %v2751 = vpop.permute.xlu0 %2750
      %2752 = vrot.lane.b32.xlu0 %v2246, 112
      %v2753 = vpop.permute.xlu0 %2752
      %2754 = vrot.lane.b32.xlu0 %v2247, 112
      %v2755 = vpop.permute.xlu0 %2754
      %2756 = vrot.lane.b32.xlu0 %v2248, 112
      %v2757 = vpop.permute.xlu0 %2756
      %2758 = vrot.lane.b32.xlu0 %v2249, 112
      %v2759 = vpop.permute.xlu0 %2758
      %2760 = vrot.lane.b32.xlu0 %v2250, 112
      %v2761 = vpop.permute.xlu0 %2760
      %2762 = vrot.lane.b32.xlu0 %v2251, 112
      %v2763 = vpop.permute.xlu0 %2762
      %2764 = vrot.lane.b32.xlu0 %v2252, 112
      %v2765 = vpop.permute.xlu0 %2764
      %2766 = vrot.lane.b32.xlu0 %v2253, 112
      %v2767 = vpop.permute.xlu0 %2766
      %2768 = vrot.lane.b32.xlu0 %v2254, 112
      %v2769 = vpop.permute.xlu0 %2768
      %2770 = vrot.lane.b32.xlu0 %v2255, 112
      %v2771 = vpop.permute.xlu0 %2770
      %2772 = vrot.lane.b32.xlu0 %v2256, 112
      %v2773 = vpop.permute.xlu0 %2772
      %2774 = vrot.lane.b32.xlu0 %v2257, 112
      %v2775 = vpop.permute.xlu0 %2774
      %2776 = vrot.lane.b32.xlu0 %v2258, 112
      %v2777 = vpop.permute.xlu0 %2776
      %2778 = vrot.lane.b32.xlu0 %v2259, 112
      %v2779 = vpop.permute.xlu0 %2778
      %2780 = vrot.lane.b32.xlu0 %v2260, 112
      %v2781 = vpop.permute.xlu0 %2780
      %2782 = vrot.lane.b32.xlu0 %v2261, 112
      %v2783 = vpop.permute.xlu0 %2782
      %2784 = vrot.lane.b32.xlu0 %v2262, 112
      %v2785 = vpop.permute.xlu0 %2784
      %2786 = vrot.lane.b32.xlu0 %v2263, 112
      %v2787 = vpop.permute.xlu0 %2786
      %2788 = vrot.lane.b32.xlu0 %v2264, 112
      %v2789 = vpop.permute.xlu0 %2788
      %2790 = vrot.lane.b32.xlu0 %v2265, 112
      %v2791 = vpop.permute.xlu0 %2790
      %2792 = vrot.lane.b32.xlu0 %v2266, 112
      %v2793 = vpop.permute.xlu0 %2792
      %2794 = vrot.lane.b32.xlu0 %v2267, 112
      %v2795 = vpop.permute.xlu0 %2794
      %2796 = vrot.lane.b32.xlu0 %v2268, 112
      %v2797 = vpop.permute.xlu0 %2796
      %2798 = vrot.lane.b32.xlu0 %v2269, 112
      %v2799 = vpop.permute.xlu0 %2798
      %2800 = vrot.lane.b32.xlu0 %v2270, 112
      %v2801 = vpop.permute.xlu0 %2800
      %2802 = vrot.lane.b32.xlu0 %v2271, 112
      %v2803 = vpop.permute.xlu0 %2802
      %2804 = vrot.lane.b32.xlu0 %v2272, 112
      %v2805 = vpop.permute.xlu0 %2804
      %2806 = vrot.lane.b32.xlu0 %v2273, 112
      %v2807 = vpop.permute.xlu0 %2806
      %2808 = vrot.lane.b32.xlu0 %v2274, 112
      %v2809 = vpop.permute.xlu0 %2808
      %2810 = vrot.lane.b32.xlu0 %v2275, 112
      %v2811 = vpop.permute.xlu0 %2810
      %2812 = vrot.lane.b32.xlu0 %v2276, 112
      %v2813 = vpop.permute.xlu0 %2812
      %2814 = vrot.lane.b32.xlu0 %v2277, 112
      %v2815 = vpop.permute.xlu0 %2814
      %2816 = vrot.lane.b32.xlu0 %v2278, 112
      %v2817 = vpop.permute.xlu0 %2816
      %2818 = vrot.lane.b32.xlu0 %v2279, 112
      %v2819 = vpop.permute.xlu0 %2818
      %2820 = vrot.lane.b32.xlu0 %v2280, 112
      %v2821 = vpop.permute.xlu0 %2820
      %2822 = vrot.lane.b32.xlu0 %v2281, 112
      %v2823 = vpop.permute.xlu0 %2822
      %2824 = vrot.lane.b32.xlu0 %v2282, 112
      %v2825 = vpop.permute.xlu0 %2824
      %2826 = vrot.lane.b32.xlu0 %v2283, 112
      %v2827 = vpop.permute.xlu0 %2826
      %2828 = vrot.lane.b32.xlu0 %v2284, 112
      %v2829 = vpop.permute.xlu0 %2828
      %2830 = vrot.lane.b32.xlu0 %v2285, 112
      %v2831 = vpop.permute.xlu0 %2830
      %2832 = vrot.lane.b32.xlu0 %v2286, 112
      %v2833 = vpop.permute.xlu0 %2832
      %2834 = vrot.lane.b32.xlu0 %v2287, 112
      %v2835 = vpop.permute.xlu0 %2834
      %2836 = vrot.lane.b32.xlu0 %v2288, 112
      %v2837 = vpop.permute.xlu0 %2836
      %2838 = vrot.lane.b32.xlu0 %v2289, 112
      %v2839 = vpop.permute.xlu0 %2838
      %2840 = vrot.lane.b32.xlu0 %v2290, 112
      %v2841 = vpop.permute.xlu0 %2840
      %2842 = vrot.lane.b32.xlu0 %v2291, 112
      %v2843 = vpop.permute.xlu0 %2842
      %2844 = vrot.lane.b32.xlu0 %v2292, 112
      %v2845 = vpop.permute.xlu0 %2844
      %2846 = vrot.lane.b32.xlu0 %v2293, 112
      %v2847 = vpop.permute.xlu0 %2846
      %2848 = vrot.lane.b32.xlu0 %v2294, 112
      %v2849 = vpop.permute.xlu0 %2848
      %2850 = vrot.lane.b32.xlu0 %v2295, 112
      %v2851 = vpop.permute.xlu0 %2850
      %vm2852 = vcmask 916480
      %v2853 = vsel %vm2852, %v2725, %v2727
      %v2854 = vsel %vm2852, %v2729, %v2731
      %v2855 = vsel %vm2852, %v2733, %v2735
      %v2856 = vsel %vm2852, %v2737, %v2739
      %v2857 = vsel %vm2852, %v2741, %v2743
      %v2858 = vsel %vm2852, %v2745, %v2747
      %v2859 = vsel %vm2852, %v2749, %v2751
      %v2860 = vsel %vm2852, %v2753, %v2755
      %v2861 = vsel %vm2852, %v2757, %v2759
      %v2862 = vsel %vm2852, %v2761, %v2763
      %v2863 = vsel %vm2852, %v2765, %v2767
      %v2864 = vsel %vm2852, %v2769, %v2771
      %v2865 = vsel %vm2852, %v2773, %v2775
      %v2866 = vsel %vm2852, %v2777, %v2779
      %v2867 = vsel %vm2852, %v2781, %v2783
      %v2868 = vsel %vm2852, %v2785, %v2787
      %v2869 = vsel %vm2852, %v2789, %v2791
      %v2870 = vsel %vm2852, %v2793, %v2795
      %v2871 = vsel %vm2852, %v2797, %v2799
      %v2872 = vsel %vm2852, %v2801, %v2803
      %v2873 = vsel %vm2852, %v2805, %v2807
      %v2874 = vsel %vm2852, %v2809, %v2811
      %v2875 = vsel %vm2852, %v2813, %v2815
      %v2876 = vsel %vm2852, %v2817, %v2819
      %v2877 = vsel %vm2852, %v2821, %v2823
      %v2878 = vsel %vm2852, %v2825, %v2827
      %v2879 = vsel %vm2852, %v2829, %v2831
      %v2880 = vsel %vm2852, %v2833, %v2835
      %v2881 = vsel %vm2852, %v2837, %v2839
      %v2882 = vsel %vm2852, %v2841, %v2843
      %v2883 = vsel %vm2852, %v2845, %v2847
      %v2884 = vsel %vm2852, %v2849, %v2851
      %v2949 = vmul.f32 %v2596, %v2853
      %v2950 = vmul.f32 %v2597, %v2727
      %v2951 = vmul.f32 %v2598, %v2854
      %v2952 = vmul.f32 %v2599, %v2731
      %v2953 = vmul.f32 %v2600, %v2855
      %v2954 = vmul.f32 %v2601, %v2735
      %v2955 = vmul.f32 %v2602, %v2856
      %v2956 = vmul.f32 %v2603, %v2739
      %v2957 = vmul.f32 %v2604, %v2857
      %v2958 = vmul.f32 %v2605, %v2743
      %v2959 = vmul.f32 %v2606, %v2858
      %v2960 = vmul.f32 %v2607, %v2747
      %v2961 = vmul.f32 %v2608, %v2859
      %v2962 = vmul.f32 %v2609, %v2751
      %v2963 = vmul.f32 %v2610, %v2860
      %v2964 = vmul.f32 %v2611, %v2755
      %v2965 = vmul.f32 %v2612, %v2861
      %v2966 = vmul.f32 %v2613, %v2759
      %v2967 = vmul.f32 %v2614, %v2862
      %v2968 = vmul.f32 %v2615, %v2763
      %v2969 = vmul.f32 %v2616, %v2863
      %v2970 = vmul.f32 %v2617, %v2767
      %v2971 = vmul.f32 %v2618, %v2864
      %v2972 = vmul.f32 %v2619, %v2771
      %v2973 = vmul.f32 %v2620, %v2865
      %v2974 = vmul.f32 %v2621, %v2775
      %v2975 = vmul.f32 %v2622, %v2866
      %v2976 = vmul.f32 %v2623, %v2779
      %v2977 = vmul.f32 %v2624, %v2867
      %v2978 = vmul.f32 %v2625, %v2783
      %v2979 = vmul.f32 %v2626, %v2868
      %v2980 = vmul.f32 %v2627, %v2787
      %v2981 = vmul.f32 %v2628, %v2869
      %v2982 = vmul.f32 %v2629, %v2791
      %v2983 = vmul.f32 %v2630, %v2870
      %v2984 = vmul.f32 %v2631, %v2795
      %v2985 = vmul.f32 %v2632, %v2871
      %v2986 = vmul.f32 %v2633, %v2799
      %v2987 = vmul.f32 %v2634, %v2872
      %v2988 = vmul.f32 %v2635, %v2803
      %v2989 = vmul.f32 %v2636, %v2873
      %v2990 = vmul.f32 %v2637, %v2807
      %v2991 = vmul.f32 %v2638, %v2874
      %v2992 = vmul.f32 %v2639, %v2811
      %v2993 = vmul.f32 %v2640, %v2875
      %v2994 = vmul.f32 %v2641, %v2815
      %v2995 = vmul.f32 %v2642, %v2876
      %v2996 = vmul.f32 %v2643, %v2819
      %v2997 = vmul.f32 %v2644, %v2877
      %v2998 = vmul.f32 %v2645, %v2823
      %v2999 = vmul.f32 %v2646, %v2878
      %v3000 = vmul.f32 %v2647, %v2827
      %v3001 = vmul.f32 %v2648, %v2879
      %v3002 = vmul.f32 %v2649, %v2831
      %v3003 = vmul.f32 %v2650, %v2880
      %v3004 = vmul.f32 %v2651, %v2835
      %v3005 = vmul.f32 %v2652, %v2881
      %v3006 = vmul.f32 %v2653, %v2839
      %v3007 = vmul.f32 %v2654, %v2882
      %v3008 = vmul.f32 %v2655, %v2843
      %v3009 = vmul.f32 %v2656, %v2883
      %v3010 = vmul.f32 %v2657, %v2847
      %v3011 = vmul.f32 %v2658, %v2884
      %v3012 = vmul.f32 %v2659, %v2851
      %v3013 = vadd.f32 %v2446, %v2949
      %v3014 = vadd.f32 %v2447, %v2950
      %v3015 = vadd.f32 %v2448, %v2951
      %v3016 = vadd.f32 %v2449, %v2952
      %v3017 = vadd.f32 %v2450, %v2953
      %v3018 = vadd.f32 %v2451, %v2954
      %v3019 = vadd.f32 %v2452, %v2955
      %v3020 = vadd.f32 %v2453, %v2956
      %v3021 = vadd.f32 %v2454, %v2957
      %v3022 = vadd.f32 %v2455, %v2958
      %v3023 = vadd.f32 %v2456, %v2959
      %v3024 = vadd.f32 %v2457, %v2960
      %v3025 = vadd.f32 %v2458, %v2961
      %v3026 = vadd.f32 %v2459, %v2962
      %v3027 = vadd.f32 %v2460, %v2963
      %v3028 = vadd.f32 %v2461, %v2964
      %v3029 = vadd.f32 %v2462, %v2965
      %v3030 = vadd.f32 %v2463, %v2966
      %v3031 = vadd.f32 %v2464, %v2967
      %v3032 = vadd.f32 %v2465, %v2968
      %v3033 = vadd.f32 %v2466, %v2969
      %v3034 = vadd.f32 %v2467, %v2970
      %v3035 = vadd.f32 %v2468, %v2971
      %v3036 = vadd.f32 %v2469, %v2972
      %v3037 = vadd.f32 %v2470, %v2973
      %v3038 = vadd.f32 %v2471, %v2974
      %v3039 = vadd.f32 %v2472, %v2975
      %v3040 = vadd.f32 %v2473, %v2976
      %v3041 = vadd.f32 %v2474, %v2977
      %v3042 = vadd.f32 %v2475, %v2978
      %v3043 = vadd.f32 %v2476, %v2979
      %v3044 = vadd.f32 %v2477, %v2980
      %v3045 = vadd.f32 %v2478, %v2981
      %v3046 = vadd.f32 %v2479, %v2982
      %v3047 = vadd.f32 %v2480, %v2983
      %v3048 = vadd.f32 %v2481, %v2984
      %v3049 = vadd.f32 %v2482, %v2985
      %v3050 = vadd.f32 %v2483, %v2986
      %v3051 = vadd.f32 %v2484, %v2987
      %v3052 = vadd.f32 %v2485, %v2988
      %v3053 = vadd.f32 %v2486, %v2989
      %v3054 = vadd.f32 %v2487, %v2990
      %v3055 = vadd.f32 %v2488, %v2991
      %v3056 = vadd.f32 %v2489, %v2992
      %v3057 = vadd.f32 %v2490, %v2993
      %v3058 = vadd.f32 %v2491, %v2994
      %v3059 = vadd.f32 %v2492, %v2995
      %v3060 = vadd.f32 %v2493, %v2996
      %v3061 = vadd.f32 %v2494, %v2997
      %v3062 = vadd.f32 %v2495, %v2998
      %v3063 = vadd.f32 %v2496, %v2999
      %v3064 = vadd.f32 %v2497, %v3000
      %v3065 = vadd.f32 %v2498, %v3001
      %v3066 = vadd.f32 %v2499, %v3002
      %v3067 = vadd.f32 %v2500, %v3003
      %v3068 = vadd.f32 %v2501, %v3004
      %v3069 = vadd.f32 %v2502, %v3005
      %v3070 = vadd.f32 %v2503, %v3006
      %v3071 = vadd.f32 %v2504, %v3007
      %v3072 = vadd.f32 %v2505, %v3008
      %v3073 = vadd.f32 %v2506, %v3009
      %v3074 = vadd.f32 %v2507, %v3010
      %v3075 = vadd.f32 %v2508, %v3011
      %v3076 = vadd.f32 %v2509, %v3012
      %3077 = vst [vmem:[#allocation2] sm:$0xff] %v3013
      %3078 = vst.msk [vmem:[#allocation2 + $0x8] sm:$0xff] %vm2096, %v3014
      %3079 = vst [vmem:[#allocation2 + $0x10] sm:$0xff] %v3015
      %3080 = vst.msk [vmem:[#allocation2 + $0x18] sm:$0xff] %vm2096, %v3016
      %3081 = vst [vmem:[#allocation2 + $0x20] sm:$0xff] %v3017
      %3082 = vst.msk [vmem:[#allocation2 + $0x28] sm:$0xff] %vm2096, %v3018
      %3083 = vst [vmem:[#allocation2 + $0x30] sm:$0xff] %v3019
      %3084 = vst.msk [vmem:[#allocation2 + $0x38] sm:$0xff] %vm2096, %v3020
      %3085 = vst [vmem:[#allocation2 + $0x40] sm:$0xff] %v3021
      %3086 = vst.msk [vmem:[#allocation2 + $0x48] sm:$0xff] %vm2096, %v3022
      %3087 = vst [vmem:[#allocation2 + $0x50] sm:$0xff] %v3023
      %3088 = vst.msk [vmem:[#allocation2 + $0x58] sm:$0xff] %vm2096, %v3024
      %3089 = vst [vmem:[#allocation2 + $0x60] sm:$0xff] %v3025
      %3090 = vst.msk [vmem:[#allocation2 + $0x68] sm:$0xff] %vm2096, %v3026
      %3091 = vst [vmem:[#allocation2 + $0x70] sm:$0xff] %v3027
      %3092 = vst.msk [vmem:[#allocation2 + $0x78] sm:$0xff] %vm2096, %v3028
      %3093 = vst [vmem:[#allocation2 + $0x80] sm:$0xff] %v3029
      %3094 = vst.msk [vmem:[#allocation2 + $0x88] sm:$0xff] %vm2096, %v3030
      %3095 = vst [vmem:[#allocation2 + $0x90] sm:$0xff] %v3031
      %3096 = vst.msk [vmem:[#allocation2 + $0x98] sm:$0xff] %vm2096, %v3032
      %3097 = vst [vmem:[#allocation2 + $0xa0] sm:$0xff] %v3033
      %3098 = vst.msk [vmem:[#allocation2 + $0xa8] sm:$0xff] %vm2096, %v3034
      %3099 = vst [vmem:[#allocation2 + $0xb0] sm:$0xff] %v3035
      %3100 = vst.msk [vmem:[#allocation2 + $0xb8] sm:$0xff] %vm2096, %v3036
      %3101 = vst [vmem:[#allocation2 + $0xc0] sm:$0xff] %v3037
      %3102 = vst.msk [vmem:[#allocation2 + $0xc8] sm:$0xff] %vm2096, %v3038
      %3103 = vst [vmem:[#allocation2 + $0xd0] sm:$0xff] %v3039
      %3104 = vst.msk [vmem:[#allocation2 + $0xd8] sm:$0xff] %vm2096, %v3040
      %3105 = vst [vmem:[#allocation2 + $0xe0] sm:$0xff] %v3041
      %3106 = vst.msk [vmem:[#allocation2 + $0xe8] sm:$0xff] %vm2096, %v3042
      %3107 = vst [vmem:[#allocation2 + $0xf0] sm:$0xff] %v3043
      %3108 = vst.msk [vmem:[#allocation2 + $0xf8] sm:$0xff] %vm2096, %v3044
      %3109 = vst [vmem:[#allocation2 + $0x100] sm:$0xff] %v3045
      %3110 = vst.msk [vmem:[#allocation2 + $0x108] sm:$0xff] %vm2096, %v3046
      %3111 = vst [vmem:[#allocation2 + $0x110] sm:$0xff] %v3047
      %3112 = vst.msk [vmem:[#allocation2 + $0x118] sm:$0xff] %vm2096, %v3048
      %3113 = vst [vmem:[#allocation2 + $0x120] sm:$0xff] %v3049
      %3114 = vst.msk [vmem:[#allocation2 + $0x128] sm:$0xff] %vm2096, %v3050
      %3115 = vst [vmem:[#allocation2 + $0x130] sm:$0xff] %v3051
      %3116 = vst.msk [vmem:[#allocation2 + $0x138] sm:$0xff] %vm2096, %v3052
      %3117 = vst [vmem:[#allocation2 + $0x140] sm:$0xff] %v3053
      %3118 = vst.msk [vmem:[#allocation2 + $0x148] sm:$0xff] %vm2096, %v3054
      %3119 = vst [vmem:[#allocation2 + $0x150] sm:$0xff] %v3055
      %3120 = vst.msk [vmem:[#allocation2 + $0x158] sm:$0xff] %vm2096, %v3056
      %3121 = vst [vmem:[#allocation2 + $0x160] sm:$0xff] %v3057
      %3122 = vst.msk [vmem:[#allocation2 + $0x168] sm:$0xff] %vm2096, %v3058
      %3123 = vst [vmem:[#allocation2 + $0x170] sm:$0xff] %v3059
      %3124 = vst.msk [vmem:[#allocation2 + $0x178] sm:$0xff] %vm2096, %v3060
      %3125 = vst [vmem:[#allocation2 + $0x180] sm:$0xff] %v3061
      %3126 = vst.msk [vmem:[#allocation2 + $0x188] sm:$0xff] %vm2096, %v3062
      %3127 = vst [vmem:[#allocation2 + $0x190] sm:$0xff] %v3063
      %3128 = vst.msk [vmem:[#allocation2 + $0x198] sm:$0xff] %vm2096, %v3064
      %3129 = vst [vmem:[#allocation2 + $0x1a0] sm:$0xff] %v3065
      %3130 = vst.msk [vmem:[#allocation2 + $0x1a8] sm:$0xff] %vm2096, %v3066
      %3131 = vst [vmem:[#allocation2 + $0x1b0] sm:$0xff] %v3067
      %3132 = vst.msk [vmem:[#allocation2 + $0x1b8] sm:$0xff] %vm2096, %v3068
      %3133 = vst [vmem:[#allocation2 + $0x1c0] sm:$0xff] %v3069
      %3134 = vst.msk [vmem:[#allocation2 + $0x1c8] sm:$0xff] %vm2096, %v3070
      %3135 = vst [vmem:[#allocation2 + $0x1d0] sm:$0xff] %v3071
      %3136 = vst.msk [vmem:[#allocation2 + $0x1d8] sm:$0xff] %vm2096, %v3072
      %3137 = vst [vmem:[#allocation2 + $0x1e0] sm:$0xff] %v3073
      %3138 = vst.msk [vmem:[#allocation2 + $0x1e8] sm:$0xff] %vm2096, %v3074
      %3139 = vst [vmem:[#allocation2 + $0x1f0] sm:$0xff] %v3075
      %3140 = vst.msk [vmem:[#allocation2 + $0x1f8] sm:$0xff] %vm2096, %v3076
      %s3141 = scalar_lea.vmem %s1, 6
      %v3142 = vld [vmem:[%s3141] ss:$8 sm:$0x3]
      %s3143 = scalar_lea.vmem %s1, 7
      %v3144 = vld [vmem:[%s3143] ss:$8 sm:$0x3]
      %s3145 = scalar_lea.vmem %s1, 16
      %v3146 = vld [vmem:[%s3145] ss:$8 sm:$0x3]
      %s3147 = scalar_lea.vmem %s1, 17
      %v3148 = vld [vmem:[%s3147] ss:$8 sm:$0x3]
      %v3149 = vld [vmem:[#allocation3] sm:$0xff]
      %v3150 = vld [vmem:[#allocation3 + $0x8] sm:$0xff]
      %v3151 = vld [vmem:[#allocation3 + $0x10] sm:$0xff]
      %v3152 = vld [vmem:[#allocation3 + $0x18] sm:$0xff]
      %v3153 = vld [vmem:[#allocation3 + $0x20] sm:$0xff]
      %v3154 = vld [vmem:[#allocation3 + $0x28] sm:$0xff]
      %v3155 = vld [vmem:[#allocation3 + $0x30] sm:$0xff]
      %v3156 = vld [vmem:[#allocation3 + $0x38] sm:$0xff]
      %v3157 = vld [vmem:[#allocation3 + $0x40] sm:$0xff]
      %v3158 = vld [vmem:[#allocation3 + $0x48] sm:$0xff]
      %v3159 = vld [vmem:[#allocation3 + $0x50] sm:$0xff]
      %v3160 = vld [vmem:[#allocation3 + $0x58] sm:$0xff]
      %v3161 = vld [vmem:[#allocation3 + $0x60] sm:$0xff]
      %v3162 = vld [vmem:[#allocation3 + $0x68] sm:$0xff]
      %v3163 = vld [vmem:[#allocation3 + $0x70] sm:$0xff]
      %v3164 = vld [vmem:[#allocation3 + $0x78] sm:$0xff]
      %v3165 = vld [vmem:[#allocation3 + $0x80] sm:$0xff]
      %v3166 = vld [vmem:[#allocation3 + $0x88] sm:$0xff]
      %v3167 = vld [vmem:[#allocation3 + $0x90] sm:$0xff]
      %v3168 = vld [vmem:[#allocation3 + $0x98] sm:$0xff]
      %v3169 = vld [vmem:[#allocation3 + $0xa0] sm:$0xff]
      %v3170 = vld [vmem:[#allocation3 + $0xa8] sm:$0xff]
      %v3171 = vld [vmem:[#allocation3 + $0xb0] sm:$0xff]
      %v3172 = vld [vmem:[#allocation3 + $0xb8] sm:$0xff]
      %v3173 = vld [vmem:[#allocation3 + $0xc0] sm:$0xff]
      %v3174 = vld [vmem:[#allocation3 + $0xc8] sm:$0xff]
      %v3175 = vld [vmem:[#allocation3 + $0xd0] sm:$0xff]
      %v3176 = vld [vmem:[#allocation3 + $0xd8] sm:$0xff]
      %v3177 = vld [vmem:[#allocation3 + $0xe0] sm:$0xff]
      %v3178 = vld [vmem:[#allocation3 + $0xe8] sm:$0xff]
      %v3179 = vld [vmem:[#allocation3 + $0xf0] sm:$0xff]
      %v3180 = vld [vmem:[#allocation3 + $0xf8] sm:$0xff]
      %v3181 = vld [vmem:[#allocation3 + $0x100] sm:$0xff]
      %v3182 = vld [vmem:[#allocation3 + $0x108] sm:$0xff]
      %v3183 = vld [vmem:[#allocation3 + $0x110] sm:$0xff]
      %v3184 = vld [vmem:[#allocation3 + $0x118] sm:$0xff]
      %v3185 = vld [vmem:[#allocation3 + $0x120] sm:$0xff]
      %v3186 = vld [vmem:[#allocation3 + $0x128] sm:$0xff]
      %v3187 = vld [vmem:[#allocation3 + $0x130] sm:$0xff]
      %v3188 = vld [vmem:[#allocation3 + $0x138] sm:$0xff]
      %v3189 = vld [vmem:[#allocation3 + $0x140] sm:$0xff]
      %v3190 = vld [vmem:[#allocation3 + $0x148] sm:$0xff]
      %v3191 = vld [vmem:[#allocation3 + $0x150] sm:$0xff]
      %v3192 = vld [vmem:[#allocation3 + $0x158] sm:$0xff]
      %v3193 = vld [vmem:[#allocation3 + $0x160] sm:$0xff]
      %v3194 = vld [vmem:[#allocation3 + $0x168] sm:$0xff]
      %v3195 = vld [vmem:[#allocation3 + $0x170] sm:$0xff]
      %v3196 = vld [vmem:[#allocation3 + $0x178] sm:$0xff]
      %v3197 = vld [vmem:[#allocation3 + $0x180] sm:$0xff]
      %v3198 = vld [vmem:[#allocation3 + $0x188] sm:$0xff]
      %v3199 = vld [vmem:[#allocation3 + $0x190] sm:$0xff]
      %v3200 = vld [vmem:[#allocation3 + $0x198] sm:$0xff]
      %v3201 = vld [vmem:[#allocation3 + $0x1a0] sm:$0xff]
      %v3202 = vld [vmem:[#allocation3 + $0x1a8] sm:$0xff]
      %v3203 = vld [vmem:[#allocation3 + $0x1b0] sm:$0xff]
      %v3204 = vld [vmem:[#allocation3 + $0x1b8] sm:$0xff]
      %v3205 = vld [vmem:[#allocation3 + $0x1c0] sm:$0xff]
      %v3206 = vld [vmem:[#allocation3 + $0x1c8] sm:$0xff]
      %v3207 = vld [vmem:[#allocation3 + $0x1d0] sm:$0xff]
      %v3208 = vld [vmem:[#allocation3 + $0x1d8] sm:$0xff]
      %v3209 = vld [vmem:[#allocation3 + $0x1e0] sm:$0xff]
      %v3210 = vld [vmem:[#allocation3 + $0x1e8] sm:$0xff]
      %v3211 = vld [vmem:[#allocation3 + $0x1f0] sm:$0xff]
      %v3212 = vld [vmem:[#allocation3 + $0x1f8] sm:$0xff]
      %v3213 = vld [vmem:[#allocation2] sm:$0xff]
      %v3214 = vld [vmem:[#allocation2 + $0x8] sm:$0xff]
      %v3215 = vld [vmem:[#allocation2 + $0x10] sm:$0xff]
      %v3216 = vld [vmem:[#allocation2 + $0x18] sm:$0xff]
      %v3217 = vld [vmem:[#allocation2 + $0x20] sm:$0xff]
      %v3218 = vld [vmem:[#allocation2 + $0x28] sm:$0xff]
      %v3219 = vld [vmem:[#allocation2 + $0x30] sm:$0xff]
      %v3220 = vld [vmem:[#allocation2 + $0x38] sm:$0xff]
      %v3221 = vld [vmem:[#allocation2 + $0x40] sm:$0xff]
      %v3222 = vld [vmem:[#allocation2 + $0x48] sm:$0xff]
      %v3223 = vld [vmem:[#allocation2 + $0x50] sm:$0xff]
      %v3224 = vld [vmem:[#allocation2 + $0x58] sm:$0xff]
      %v3225 = vld [vmem:[#allocation2 + $0x60] sm:$0xff]
      %v3226 = vld [vmem:[#allocation2 + $0x68] sm:$0xff]
      %v3227 = vld [vmem:[#allocation2 + $0x70] sm:$0xff]
      %v3228 = vld [vmem:[#allocation2 + $0x78] sm:$0xff]
      %v3229 = vld [vmem:[#allocation2 + $0x80] sm:$0xff]
      %v3230 = vld [vmem:[#allocation2 + $0x88] sm:$0xff]
      %v3231 = vld [vmem:[#allocation2 + $0x90] sm:$0xff]
      %v3232 = vld [vmem:[#allocation2 + $0x98] sm:$0xff]
      %v3233 = vld [vmem:[#allocation2 + $0xa0] sm:$0xff]
      %v3234 = vld [vmem:[#allocation2 + $0xa8] sm:$0xff]
      %v3235 = vld [vmem:[#allocation2 + $0xb0] sm:$0xff]
      %v3236 = vld [vmem:[#allocation2 + $0xb8] sm:$0xff]
      %v3237 = vld [vmem:[#allocation2 + $0xc0] sm:$0xff]
      %v3238 = vld [vmem:[#allocation2 + $0xc8] sm:$0xff]
      %v3239 = vld [vmem:[#allocation2 + $0xd0] sm:$0xff]
      %v3240 = vld [vmem:[#allocation2 + $0xd8] sm:$0xff]
      %v3241 = vld [vmem:[#allocation2 + $0xe0] sm:$0xff]
      %v3242 = vld [vmem:[#allocation2 + $0xe8] sm:$0xff]
      %v3243 = vld [vmem:[#allocation2 + $0xf0] sm:$0xff]
      %v3244 = vld [vmem:[#allocation2 + $0xf8] sm:$0xff]
      %v3245 = vld [vmem:[#allocation2 + $0x100] sm:$0xff]
      %v3246 = vld [vmem:[#allocation2 + $0x108] sm:$0xff]
      %v3247 = vld [vmem:[#allocation2 + $0x110] sm:$0xff]
      %v3248 = vld [vmem:[#allocation2 + $0x118] sm:$0xff]
      %v3249 = vld [vmem:[#allocation2 + $0x120] sm:$0xff]
      %v3250 = vld [vmem:[#allocation2 + $0x128] sm:$0xff]
      %v3251 = vld [vmem:[#allocation2 + $0x130] sm:$0xff]
      %v3252 = vld [vmem:[#allocation2 + $0x138] sm:$0xff]
      %v3253 = vld [vmem:[#allocation2 + $0x140] sm:$0xff]
      %v3254 = vld [vmem:[#allocation2 + $0x148] sm:$0xff]
      %v3255 = vld [vmem:[#allocation2 + $0x150] sm:$0xff]
      %v3256 = vld [vmem:[#allocation2 + $0x158] sm:$0xff]
      %v3257 = vld [vmem:[#allocation2 + $0x160] sm:$0xff]
      %v3258 = vld [vmem:[#allocation2 + $0x168] sm:$0xff]
      %v3259 = vld [vmem:[#allocation2 + $0x170] sm:$0xff]
      %v3260 = vld [vmem:[#allocation2 + $0x178] sm:$0xff]
      %v3261 = vld [vmem:[#allocation2 + $0x180] sm:$0xff]
      %v3262 = vld [vmem:[#allocation2 + $0x188] sm:$0xff]
      %v3263 = vld [vmem:[#allocation2 + $0x190] sm:$0xff]
      %v3264 = vld [vmem:[#allocation2 + $0x198] sm:$0xff]
      %v3265 = vld [vmem:[#allocation2 + $0x1a0] sm:$0xff]
      %v3266 = vld [vmem:[#allocation2 + $0x1a8] sm:$0xff]
      %v3267 = vld [vmem:[#allocation2 + $0x1b0] sm:$0xff]
      %v3268 = vld [vmem:[#allocation2 + $0x1b8] sm:$0xff]
      %v3269 = vld [vmem:[#allocation2 + $0x1c0] sm:$0xff]
      %v3270 = vld [vmem:[#allocation2 + $0x1c8] sm:$0xff]
      %v3271 = vld [vmem:[#allocation2 + $0x1d0] sm:$0xff]
      %v3272 = vld [vmem:[#allocation2 + $0x1d8] sm:$0xff]
      %v3273 = vld [vmem:[#allocation2 + $0x1e0] sm:$0xff]
      %v3274 = vld [vmem:[#allocation2 + $0x1e8] sm:$0xff]
      %v3275 = vld [vmem:[#allocation2 + $0x1f0] sm:$0xff]
      %v3276 = vld [vmem:[#allocation2 + $0x1f8] sm:$0xff]
      %v3278 = vlaneseq
      %v3279 = vshrl.u32 %v3278, 7
      %v3280 = vsub.s32 0, %v3279
      %v3281 = vrot.slane %v3142, %v3280
      %v3282 = vlaneseq
      %v3283 = vshrl.u32 %v3282, 7
      %v3284 = vsub.s32 1, %v3283
      %v3285 = vrot.slane %v3142, %v3284
      %v3288 = vsub.f32 %v3149, %v3281
      %v3289 = vsub.f32 %v3150, %v3285
      %v3290 = vsub.f32 %v3151, %v3281
      %v3291 = vsub.f32 %v3152, %v3285
      %v3292 = vsub.f32 %v3153, %v3281
      %v3293 = vsub.f32 %v3154, %v3285
      %v3294 = vsub.f32 %v3155, %v3281
      %v3295 = vsub.f32 %v3156, %v3285
      %v3296 = vsub.f32 %v3157, %v3281
      %v3297 = vsub.f32 %v3158, %v3285
      %v3298 = vsub.f32 %v3159, %v3281
      %v3299 = vsub.f32 %v3160, %v3285
      %v3300 = vsub.f32 %v3161, %v3281
      %v3301 = vsub.f32 %v3162, %v3285
      %v3302 = vsub.f32 %v3163, %v3281
      %v3303 = vsub.f32 %v3164, %v3285
      %v3304 = vsub.f32 %v3165, %v3281
      %v3305 = vsub.f32 %v3166, %v3285
      %v3306 = vsub.f32 %v3167, %v3281
      %v3307 = vsub.f32 %v3168, %v3285
      %v3308 = vsub.f32 %v3169, %v3281
      %v3309 = vsub.f32 %v3170, %v3285
      %v3310 = vsub.f32 %v3171, %v3281
      %v3311 = vsub.f32 %v3172, %v3285
      %v3312 = vsub.f32 %v3173, %v3281
      %v3313 = vsub.f32 %v3174, %v3285
      %v3314 = vsub.f32 %v3175, %v3281
      %v3315 = vsub.f32 %v3176, %v3285
      %v3316 = vsub.f32 %v3177, %v3281
      %v3317 = vsub.f32 %v3178, %v3285
      %v3318 = vsub.f32 %v3179, %v3281
      %v3319 = vsub.f32 %v3180, %v3285
      %v3320 = vsub.f32 %v3181, %v3281
      %v3321 = vsub.f32 %v3182, %v3285
      %v3322 = vsub.f32 %v3183, %v3281
      %v3323 = vsub.f32 %v3184, %v3285
      %v3324 = vsub.f32 %v3185, %v3281
      %v3325 = vsub.f32 %v3186, %v3285
      %v3326 = vsub.f32 %v3187, %v3281
      %v3327 = vsub.f32 %v3188, %v3285
      %v3328 = vsub.f32 %v3189, %v3281
      %v3329 = vsub.f32 %v3190, %v3285
      %v3330 = vsub.f32 %v3191, %v3281
      %v3331 = vsub.f32 %v3192, %v3285
      %v3332 = vsub.f32 %v3193, %v3281
      %v3333 = vsub.f32 %v3194, %v3285
      %v3334 = vsub.f32 %v3195, %v3281
      %v3335 = vsub.f32 %v3196, %v3285
      %v3336 = vsub.f32 %v3197, %v3281
      %v3337 = vsub.f32 %v3198, %v3285
      %v3338 = vsub.f32 %v3199, %v3281
      %v3339 = vsub.f32 %v3200, %v3285
      %v3340 = vsub.f32 %v3201, %v3281
      %v3341 = vsub.f32 %v3202, %v3285
      %v3342 = vsub.f32 %v3203, %v3281
      %v3343 = vsub.f32 %v3204, %v3285
      %v3344 = vsub.f32 %v3205, %v3281
      %v3345 = vsub.f32 %v3206, %v3285
      %v3346 = vsub.f32 %v3207, %v3281
      %v3347 = vsub.f32 %v3208, %v3285
      %v3348 = vsub.f32 %v3209, %v3281
      %v3349 = vsub.f32 %v3210, %v3285
      %v3350 = vsub.f32 %v3211, %v3281
      %v3351 = vsub.f32 %v3212, %v3285
      %v3353 = vlaneseq
      %v3354 = vshrl.u32 %v3353, 7
      %v3355 = vsub.s32 0, %v3354
      %v3356 = vrot.slane %v3144, %v3355
      %v3357 = vlaneseq
      %v3358 = vshrl.u32 %v3357, 7
      %v3359 = vsub.s32 1, %v3358
      %v3360 = vrot.slane %v3144, %v3359
      %v3363 = vmul.f32 %v3288, %v3356
      %v3364 = vmul.f32 %v3289, %v3360
      %v3365 = vmul.f32 %v3290, %v3356
      %v3366 = vmul.f32 %v3291, %v3360
      %v3367 = vmul.f32 %v3292, %v3356
      %v3368 = vmul.f32 %v3293, %v3360
      %v3369 = vmul.f32 %v3294, %v3356
      %v3370 = vmul.f32 %v3295, %v3360
      %v3371 = vmul.f32 %v3296, %v3356
      %v3372 = vmul.f32 %v3297, %v3360
      %v3373 = vmul.f32 %v3298, %v3356
      %v3374 = vmul.f32 %v3299, %v3360
      %v3375 = vmul.f32 %v3300, %v3356
      %v3376 = vmul.f32 %v3301, %v3360
      %v3377 = vmul.f32 %v3302, %v3356
      %v3378 = vmul.f32 %v3303, %v3360
      %v3379 = vmul.f32 %v3304, %v3356
      %v3380 = vmul.f32 %v3305, %v3360
      %v3381 = vmul.f32 %v3306, %v3356
      %v3382 = vmul.f32 %v3307, %v3360
      %v3383 = vmul.f32 %v3308, %v3356
      %v3384 = vmul.f32 %v3309, %v3360
      %v3385 = vmul.f32 %v3310, %v3356
      %v3386 = vmul.f32 %v3311, %v3360
      %v3387 = vmul.f32 %v3312, %v3356
      %v3388 = vmul.f32 %v3313, %v3360
      %v3389 = vmul.f32 %v3314, %v3356
      %v3390 = vmul.f32 %v3315, %v3360
      %v3391 = vmul.f32 %v3316, %v3356
      %v3392 = vmul.f32 %v3317, %v3360
      %v3393 = vmul.f32 %v3318, %v3356
      %v3394 = vmul.f32 %v3319, %v3360
      %v3395 = vmul.f32 %v3320, %v3356
      %v3396 = vmul.f32 %v3321, %v3360
      %v3397 = vmul.f32 %v3322, %v3356
      %v3398 = vmul.f32 %v3323, %v3360
      %v3399 = vmul.f32 %v3324, %v3356
      %v3400 = vmul.f32 %v3325, %v3360
      %v3401 = vmul.f32 %v3326, %v3356
      %v3402 = vmul.f32 %v3327, %v3360
      %v3403 = vmul.f32 %v3328, %v3356
      %v3404 = vmul.f32 %v3329, %v3360
      %v3405 = vmul.f32 %v3330, %v3356
      %v3406 = vmul.f32 %v3331, %v3360
      %v3407 = vmul.f32 %v3332, %v3356
      %v3408 = vmul.f32 %v3333, %v3360
      %v3409 = vmul.f32 %v3334, %v3356
      %v3410 = vmul.f32 %v3335, %v3360
      %v3411 = vmul.f32 %v3336, %v3356
      %v3412 = vmul.f32 %v3337, %v3360
      %v3413 = vmul.f32 %v3338, %v3356
      %v3414 = vmul.f32 %v3339, %v3360
      %v3415 = vmul.f32 %v3340, %v3356
      %v3416 = vmul.f32 %v3341, %v3360
      %v3417 = vmul.f32 %v3342, %v3356
      %v3418 = vmul.f32 %v3343, %v3360
      %v3419 = vmul.f32 %v3344, %v3356
      %v3420 = vmul.f32 %v3345, %v3360
      %v3421 = vmul.f32 %v3346, %v3356
      %v3422 = vmul.f32 %v3347, %v3360
      %v3423 = vmul.f32 %v3348, %v3356
      %v3424 = vmul.f32 %v3349, %v3360
      %v3425 = vmul.f32 %v3350, %v3356
      %v3426 = vmul.f32 %v3351, %v3360
      %v3427 = vmul.f32 %v3363, %v3213
      %v3428 = vmul.f32 %v3364, %v3214
      %v3429 = vmul.f32 %v3365, %v3215
      %v3430 = vmul.f32 %v3366, %v3216
      %v3431 = vmul.f32 %v3367, %v3217
      %v3432 = vmul.f32 %v3368, %v3218
      %v3433 = vmul.f32 %v3369, %v3219
      %v3434 = vmul.f32 %v3370, %v3220
      %v3435 = vmul.f32 %v3371, %v3221
      %v3436 = vmul.f32 %v3372, %v3222
      %v3437 = vmul.f32 %v3373, %v3223
      %v3438 = vmul.f32 %v3374, %v3224
      %v3439 = vmul.f32 %v3375, %v3225
      %v3440 = vmul.f32 %v3376, %v3226
      %v3441 = vmul.f32 %v3377, %v3227
      %v3442 = vmul.f32 %v3378, %v3228
      %v3443 = vmul.f32 %v3379, %v3229
      %v3444 = vmul.f32 %v3380, %v3230
      %v3445 = vmul.f32 %v3381, %v3231
      %v3446 = vmul.f32 %v3382, %v3232
      %v3447 = vmul.f32 %v3383, %v3233
      %v3448 = vmul.f32 %v3384, %v3234
      %v3449 = vmul.f32 %v3385, %v3235
      %v3450 = vmul.f32 %v3386, %v3236
      %v3451 = vmul.f32 %v3387, %v3237
      %v3452 = vmul.f32 %v3388, %v3238
      %v3453 = vmul.f32 %v3389, %v3239
      %v3454 = vmul.f32 %v3390, %v3240
      %v3455 = vmul.f32 %v3391, %v3241
      %v3456 = vmul.f32 %v3392, %v3242
      %v3457 = vmul.f32 %v3393, %v3243
      %v3458 = vmul.f32 %v3394, %v3244
      %v3459 = vmul.f32 %v3395, %v3245
      %v3460 = vmul.f32 %v3396, %v3246
      %v3461 = vmul.f32 %v3397, %v3247
      %v3462 = vmul.f32 %v3398, %v3248
      %v3463 = vmul.f32 %v3399, %v3249
      %v3464 = vmul.f32 %v3400, %v3250
      %v3465 = vmul.f32 %v3401, %v3251
      %v3466 = vmul.f32 %v3402, %v3252
      %v3467 = vmul.f32 %v3403, %v3253
      %v3468 = vmul.f32 %v3404, %v3254
      %v3469 = vmul.f32 %v3405, %v3255
      %v3470 = vmul.f32 %v3406, %v3256
      %v3471 = vmul.f32 %v3407, %v3257
      %v3472 = vmul.f32 %v3408, %v3258
      %v3473 = vmul.f32 %v3409, %v3259
      %v3474 = vmul.f32 %v3410, %v3260
      %v3475 = vmul.f32 %v3411, %v3261
      %v3476 = vmul.f32 %v3412, %v3262
      %v3477 = vmul.f32 %v3413, %v3263
      %v3478 = vmul.f32 %v3414, %v3264
      %v3479 = vmul.f32 %v3415, %v3265
      %v3480 = vmul.f32 %v3416, %v3266
      %v3481 = vmul.f32 %v3417, %v3267
      %v3482 = vmul.f32 %v3418, %v3268
      %v3483 = vmul.f32 %v3419, %v3269
      %v3484 = vmul.f32 %v3420, %v3270
      %v3485 = vmul.f32 %v3421, %v3271
      %v3486 = vmul.f32 %v3422, %v3272
      %v3487 = vmul.f32 %v3423, %v3273
      %v3488 = vmul.f32 %v3424, %v3274
      %v3489 = vmul.f32 %v3425, %v3275
      %v3490 = vmul.f32 %v3426, %v3276
      %v3492 = vlaneseq
      %v3493 = vshrl.u32 %v3492, 7
      %v3494 = vsub.s32 0, %v3493
      %v3495 = vrot.slane %v3146, %v3494
      %v3496 = vlaneseq
      %v3497 = vshrl.u32 %v3496, 7
      %v3498 = vsub.s32 1, %v3497
      %v3499 = vrot.slane %v3146, %v3498
      %v3502 = vsub.f32 %v3495, %v3149
      %v3503 = vsub.f32 %v3499, %v3150
      %v3504 = vsub.f32 %v3495, %v3151
      %v3505 = vsub.f32 %v3499, %v3152
      %v3506 = vsub.f32 %v3495, %v3153
      %v3507 = vsub.f32 %v3499, %v3154
      %v3508 = vsub.f32 %v3495, %v3155
      %v3509 = vsub.f32 %v3499, %v3156
      %v3510 = vsub.f32 %v3495, %v3157
      %v3511 = vsub.f32 %v3499, %v3158
      %v3512 = vsub.f32 %v3495, %v3159
      %v3513 = vsub.f32 %v3499, %v3160
      %v3514 = vsub.f32 %v3495, %v3161
      %v3515 = vsub.f32 %v3499, %v3162
      %v3516 = vsub.f32 %v3495, %v3163
      %v3517 = vsub.f32 %v3499, %v3164
      %v3518 = vsub.f32 %v3495, %v3165
      %v3519 = vsub.f32 %v3499, %v3166
      %v3520 = vsub.f32 %v3495, %v3167
      %v3521 = vsub.f32 %v3499, %v3168
      %v3522 = vsub.f32 %v3495, %v3169
      %v3523 = vsub.f32 %v3499, %v3170
      %v3524 = vsub.f32 %v3495, %v3171
      %v3525 = vsub.f32 %v3499, %v3172
      %v3526 = vsub.f32 %v3495, %v3173
      %v3527 = vsub.f32 %v3499, %v3174
      %v3528 = vsub.f32 %v3495, %v3175
      %v3529 = vsub.f32 %v3499, %v3176
      %v3530 = vsub.f32 %v3495, %v3177
      %v3531 = vsub.f32 %v3499, %v3178
      %v3532 = vsub.f32 %v3495, %v3179
      %v3533 = vsub.f32 %v3499, %v3180
      %v3534 = vsub.f32 %v3495, %v3181
      %v3535 = vsub.f32 %v3499, %v3182
      %v3536 = vsub.f32 %v3495, %v3183
      %v3537 = vsub.f32 %v3499, %v3184
      %v3538 = vsub.f32 %v3495, %v3185
      %v3539 = vsub.f32 %v3499, %v3186
      %v3540 = vsub.f32 %v3495, %v3187
      %v3541 = vsub.f32 %v3499, %v3188
      %v3542 = vsub.f32 %v3495, %v3189
      %v3543 = vsub.f32 %v3499, %v3190
      %v3544 = vsub.f32 %v3495, %v3191
      %v3545 = vsub.f32 %v3499, %v3192
      %v3546 = vsub.f32 %v3495, %v3193
      %v3547 = vsub.f32 %v3499, %v3194
      %v3548 = vsub.f32 %v3495, %v3195
      %v3549 = vsub.f32 %v3499, %v3196
      %v3550 = vsub.f32 %v3495, %v3197
      %v3551 = vsub.f32 %v3499, %v3198
      %v3552 = vsub.f32 %v3495, %v3199
      %v3553 = vsub.f32 %v3499, %v3200
      %v3554 = vsub.f32 %v3495, %v3201
      %v3555 = vsub.f32 %v3499, %v3202
      %v3556 = vsub.f32 %v3495, %v3203
      %v3557 = vsub.f32 %v3499, %v3204
      %v3558 = vsub.f32 %v3495, %v3205
      %v3559 = vsub.f32 %v3499, %v3206
      %v3560 = vsub.f32 %v3495, %v3207
      %v3561 = vsub.f32 %v3499, %v3208
      %v3562 = vsub.f32 %v3495, %v3209
      %v3563 = vsub.f32 %v3499, %v3210
      %v3564 = vsub.f32 %v3495, %v3211
      %v3565 = vsub.f32 %v3499, %v3212
      %v3567 = vlaneseq
      %v3568 = vshrl.u32 %v3567, 7
      %v3569 = vsub.s32 0, %v3568
      %v3570 = vrot.slane %v3148, %v3569
      %v3571 = vlaneseq
      %v3572 = vshrl.u32 %v3571, 7
      %v3573 = vsub.s32 1, %v3572
      %v3574 = vrot.slane %v3148, %v3573
      %v3577 = vmul.f32 %v3502, %v3570
      %v3578 = vmul.f32 %v3503, %v3574
      %v3579 = vmul.f32 %v3504, %v3570
      %v3580 = vmul.f32 %v3505, %v3574
      %v3581 = vmul.f32 %v3506, %v3570
      %v3582 = vmul.f32 %v3507, %v3574
      %v3583 = vmul.f32 %v3508, %v3570
      %v3584 = vmul.f32 %v3509, %v3574
      %v3585 = vmul.f32 %v3510, %v3570
      %v3586 = vmul.f32 %v3511, %v3574
      %v3587 = vmul.f32 %v3512, %v3570
      %v3588 = vmul.f32 %v3513, %v3574
      %v3589 = vmul.f32 %v3514, %v3570
      %v3590 = vmul.f32 %v3515, %v3574
      %v3591 = vmul.f32 %v3516, %v3570
      %v3592 = vmul.f32 %v3517, %v3574
      %v3593 = vmul.f32 %v3518, %v3570
      %v3594 = vmul.f32 %v3519, %v3574
      %v3595 = vmul.f32 %v3520, %v3570
      %v3596 = vmul.f32 %v3521, %v3574
      %v3597 = vmul.f32 %v3522, %v3570
      %v3598 = vmul.f32 %v3523, %v3574
      %v3599 = vmul.f32 %v3524, %v3570
      %v3600 = vmul.f32 %v3525, %v3574
      %v3601 = vmul.f32 %v3526, %v3570
      %v3602 = vmul.f32 %v3527, %v3574
      %v3603 = vmul.f32 %v3528, %v3570
      %v3604 = vmul.f32 %v3529, %v3574
      %v3605 = vmul.f32 %v3530, %v3570
      %v3606 = vmul.f32 %v3531, %v3574
      %v3607 = vmul.f32 %v3532, %v3570
      %v3608 = vmul.f32 %v3533, %v3574
      %v3609 = vmul.f32 %v3534, %v3570
      %v3610 = vmul.f32 %v3535, %v3574
      %v3611 = vmul.f32 %v3536, %v3570
      %v3612 = vmul.f32 %v3537, %v3574
      %v3613 = vmul.f32 %v3538, %v3570
      %v3614 = vmul.f32 %v3539, %v3574
      %v3615 = vmul.f32 %v3540, %v3570
      %v3616 = vmul.f32 %v3541, %v3574
      %v3617 = vmul.f32 %v3542, %v3570
      %v3618 = vmul.f32 %v3543, %v3574
      %v3619 = vmul.f32 %v3544, %v3570
      %v3620 = vmul.f32 %v3545, %v3574
      %v3621 = vmul.f32 %v3546, %v3570
      %v3622 = vmul.f32 %v3547, %v3574
      %v3623 = vmul.f32 %v3548, %v3570
      %v3624 = vmul.f32 %v3549, %v3574
      %v3625 = vmul.f32 %v3550, %v3570
      %v3626 = vmul.f32 %v3551, %v3574
      %v3627 = vmul.f32 %v3552, %v3570
      %v3628 = vmul.f32 %v3553, %v3574
      %v3629 = vmul.f32 %v3554, %v3570
      %v3630 = vmul.f32 %v3555, %v3574
      %v3631 = vmul.f32 %v3556, %v3570
      %v3632 = vmul.f32 %v3557, %v3574
      %v3633 = vmul.f32 %v3558, %v3570
      %v3634 = vmul.f32 %v3559, %v3574
      %v3635 = vmul.f32 %v3560, %v3570
      %v3636 = vmul.f32 %v3561, %v3574
      %v3637 = vmul.f32 %v3562, %v3570
      %v3638 = vmul.f32 %v3563, %v3574
      %v3639 = vmul.f32 %v3564, %v3570
      %v3640 = vmul.f32 %v3565, %v3574
      %3705 = vrot.lane.b32.xlu0 %v3213, 112
      %v3706 = vpop.permute.xlu0 %3705
      %3707 = vrot.lane.b32.xlu0 %v3214, 112
      %v3708 = vpop.permute.xlu0 %3707
      %3709 = vrot.lane.b32.xlu0 %v3215, 112
      %v3710 = vpop.permute.xlu0 %3709
      %3711 = vrot.lane.b32.xlu0 %v3216, 112
      %v3712 = vpop.permute.xlu0 %3711
      %3713 = vrot.lane.b32.xlu0 %v3217, 112
      %v3714 = vpop.permute.xlu0 %3713
      %3715 = vrot.lane.b32.xlu0 %v3218, 112
      %v3716 = vpop.permute.xlu0 %3715
      %3717 = vrot.lane.b32.xlu0 %v3219, 112
      %v3718 = vpop.permute.xlu0 %3717
      %3719 = vrot.lane.b32.xlu0 %v3220, 112
      %v3720 = vpop.permute.xlu0 %3719
      %3721 = vrot.lane.b32.xlu0 %v3221, 112
      %v3722 = vpop.permute.xlu0 %3721
      %3723 = vrot.lane.b32.xlu0 %v3222, 112
      %v3724 = vpop.permute.xlu0 %3723
      %3725 = vrot.lane.b32.xlu0 %v3223, 112
      %v3726 = vpop.permute.xlu0 %3725
      %3727 = vrot.lane.b32.xlu0 %v3224, 112
      %v3728 = vpop.permute.xlu0 %3727
      %3729 = vrot.lane.b32.xlu0 %v3225, 112
      %v3730 = vpop.permute.xlu0 %3729
      %3731 = vrot.lane.b32.xlu0 %v3226, 112
      %v3732 = vpop.permute.xlu0 %3731
      %3733 = vrot.lane.b32.xlu0 %v3227, 112
      %v3734 = vpop.permute.xlu0 %3733
      %3735 = vrot.lane.b32.xlu0 %v3228, 112
      %v3736 = vpop.permute.xlu0 %3735
      %3737 = vrot.lane.b32.xlu0 %v3229, 112
      %v3738 = vpop.permute.xlu0 %3737
      %3739 = vrot.lane.b32.xlu0 %v3230, 112
      %v3740 = vpop.permute.xlu0 %3739
      %3741 = vrot.lane.b32.xlu0 %v3231, 112
      %v3742 = vpop.permute.xlu0 %3741
      %3743 = vrot.lane.b32.xlu0 %v3232, 112
      %v3744 = vpop.permute.xlu0 %3743
      %3745 = vrot.lane.b32.xlu0 %v3233, 112
      %v3746 = vpop.permute.xlu0 %3745
      %3747 = vrot.lane.b32.xlu0 %v3234, 112
      %v3748 = vpop.permute.xlu0 %3747
      %3749 = vrot.lane.b32.xlu0 %v3235, 112
      %v3750 = vpop.permute.xlu0 %3749
      %3751 = vrot.lane.b32.xlu0 %v3236, 112
      %v3752 = vpop.permute.xlu0 %3751
      %3753 = vrot.lane.b32.xlu0 %v3237, 112
      %v3754 = vpop.permute.xlu0 %3753
      %3755 = vrot.lane.b32.xlu0 %v3238, 112
      %v3756 = vpop.permute.xlu0 %3755
      %3757 = vrot.lane.b32.xlu0 %v3239, 112
      %v3758 = vpop.permute.xlu0 %3757
      %3759 = vrot.lane.b32.xlu0 %v3240, 112
      %v3760 = vpop.permute.xlu0 %3759
      %3761 = vrot.lane.b32.xlu0 %v3241, 112
      %v3762 = vpop.permute.xlu0 %3761
      %3763 = vrot.lane.b32.xlu0 %v3242, 112
      %v3764 = vpop.permute.xlu0 %3763
      %3765 = vrot.lane.b32.xlu0 %v3243, 112
      %v3766 = vpop.permute.xlu0 %3765
      %3767 = vrot.lane.b32.xlu0 %v3244, 112
      %v3768 = vpop.permute.xlu0 %3767
      %3769 = vrot.lane.b32.xlu0 %v3245, 112
      %v3770 = vpop.permute.xlu0 %3769
      %3771 = vrot.lane.b32.xlu0 %v3246, 112
      %v3772 = vpop.permute.xlu0 %3771
      %3773 = vrot.lane.b32.xlu0 %v3247, 112
      %v3774 = vpop.permute.xlu0 %3773
      %3775 = vrot.lane.b32.xlu0 %v3248, 112
      %v3776 = vpop.permute.xlu0 %3775
      %3777 = vrot.lane.b32.xlu0 %v3249, 112
      %v3778 = vpop.permute.xlu0 %3777
      %3779 = vrot.lane.b32.xlu0 %v3250, 112
      %v3780 = vpop.permute.xlu0 %3779
      %3781 = vrot.lane.b32.xlu0 %v3251, 112
      %v3782 = vpop.permute.xlu0 %3781
      %3783 = vrot.lane.b32.xlu0 %v3252, 112
      %v3784 = vpop.permute.xlu0 %3783
      %3785 = vrot.lane.b32.xlu0 %v3253, 112
      %v3786 = vpop.permute.xlu0 %3785
      %3787 = vrot.lane.b32.xlu0 %v3254, 112
      %v3788 = vpop.permute.xlu0 %3787
      %3789 = vrot.lane.b32.xlu0 %v3255, 112
      %v3790 = vpop.permute.xlu0 %3789
      %3791 = vrot.lane.b32.xlu0 %v3256, 112
      %v3792 = vpop.permute.xlu0 %3791
      %3793 = vrot.lane.b32.xlu0 %v3257, 112
      %v3794 = vpop.permute.xlu0 %3793
      %3795 = vrot.lane.b32.xlu0 %v3258, 112
      %v3796 = vpop.permute.xlu0 %3795
      %3797 = vrot.lane.b32.xlu0 %v3259, 112
      %v3798 = vpop.permute.xlu0 %3797
      %3799 = vrot.lane.b32.xlu0 %v3260, 112
      %v3800 = vpop.permute.xlu0 %3799
      %3801 = vrot.lane.b32.xlu0 %v3261, 112
      %v3802 = vpop.permute.xlu0 %3801
      %3803 = vrot.lane.b32.xlu0 %v3262, 112
      %v3804 = vpop.permute.xlu0 %3803
      %3805 = vrot.lane.b32.xlu0 %v3263, 112
      %v3806 = vpop.permute.xlu0 %3805
      %3807 = vrot.lane.b32.xlu0 %v3264, 112
      %v3808 = vpop.permute.xlu0 %3807
      %3809 = vrot.lane.b32.xlu0 %v3265, 112
      %v3810 = vpop.permute.xlu0 %3809
      %3811 = vrot.lane.b32.xlu0 %v3266, 112
      %v3812 = vpop.permute.xlu0 %3811
      %3813 = vrot.lane.b32.xlu0 %v3267, 112
      %v3814 = vpop.permute.xlu0 %3813
      %3815 = vrot.lane.b32.xlu0 %v3268, 112
      %v3816 = vpop.permute.xlu0 %3815
      %3817 = vrot.lane.b32.xlu0 %v3269, 112
      %v3818 = vpop.permute.xlu0 %3817
      %3819 = vrot.lane.b32.xlu0 %v3270, 112
      %v3820 = vpop.permute.xlu0 %3819
      %3821 = vrot.lane.b32.xlu0 %v3271, 112
      %v3822 = vpop.permute.xlu0 %3821
      %3823 = vrot.lane.b32.xlu0 %v3272, 112
      %v3824 = vpop.permute.xlu0 %3823
      %3825 = vrot.lane.b32.xlu0 %v3273, 112
      %v3826 = vpop.permute.xlu0 %3825
      %3827 = vrot.lane.b32.xlu0 %v3274, 112
      %v3828 = vpop.permute.xlu0 %3827
      %3829 = vrot.lane.b32.xlu0 %v3275, 112
      %v3830 = vpop.permute.xlu0 %3829
      %3831 = vrot.lane.b32.xlu0 %v3276, 112
      %v3832 = vpop.permute.xlu0 %3831
      %v3833 = vsel %vm2852, %v3706, %v3708
      %v3834 = vsel %vm2852, %v3710, %v3712
      %v3835 = vsel %vm2852, %v3714, %v3716
      %v3836 = vsel %vm2852, %v3718, %v3720
      %v3837 = vsel %vm2852, %v3722, %v3724
      %v3838 = vsel %vm2852, %v3726, %v3728
      %v3839 = vsel %vm2852, %v3730, %v3732
      %v3840 = vsel %vm2852, %v3734, %v3736
      %v3841 = vsel %vm2852, %v3738, %v3740
      %v3842 = vsel %vm2852, %v3742, %v3744
      %v3843 = vsel %vm2852, %v3746, %v3748
      %v3844 = vsel %vm2852, %v3750, %v3752
      %v3845 = vsel %vm2852, %v3754, %v3756
      %v3846 = vsel %vm2852, %v3758, %v3760
      %v3847 = vsel %vm2852, %v3762, %v3764
      %v3848 = vsel %vm2852, %v3766, %v3768
      %v3849 = vsel %vm2852, %v3770, %v3772
      %v3850 = vsel %vm2852, %v3774, %v3776
      %v3851 = vsel %vm2852, %v3778, %v3780
      %v3852 = vsel %vm2852, %v3782, %v3784
      %v3853 = vsel %vm2852, %v3786, %v3788
      %v3854 = vsel %vm2852, %v3790, %v3792
      %v3855 = vsel %vm2852, %v3794, %v3796
      %v3856 = vsel %vm2852, %v3798, %v3800
      %v3857 = vsel %vm2852, %v3802, %v3804
      %v3858 = vsel %vm2852, %v3806, %v3808
      %v3859 = vsel %vm2852, %v3810, %v3812
      %v3860 = vsel %vm2852, %v3814, %v3816
      %v3861 = vsel %vm2852, %v3818, %v3820
      %v3862 = vsel %vm2852, %v3822, %v3824
      %v3863 = vsel %vm2852, %v3826, %v3828
      %v3864 = vsel %vm2852, %v3830, %v3832
      %v3929 = vmul.f32 %v3577, %v3833
      %v3930 = vmul.f32 %v3578, %v3708
      %v3931 = vmul.f32 %v3579, %v3834
      %v3932 = vmul.f32 %v3580, %v3712
      %v3933 = vmul.f32 %v3581, %v3835
      %v3934 = vmul.f32 %v3582, %v3716
      %v3935 = vmul.f32 %v3583, %v3836
      %v3936 = vmul.f32 %v3584, %v3720
      %v3937 = vmul.f32 %v3585, %v3837
      %v3938 = vmul.f32 %v3586, %v3724
      %v3939 = vmul.f32 %v3587, %v3838
      %v3940 = vmul.f32 %v3588, %v3728
      %v3941 = vmul.f32 %v3589, %v3839
      %v3942 = vmul.f32 %v3590, %v3732
      %v3943 = vmul.f32 %v3591, %v3840
      %v3944 = vmul.f32 %v3592, %v3736
      %v3945 = vmul.f32 %v3593, %v3841
      %v3946 = vmul.f32 %v3594, %v3740
      %v3947 = vmul.f32 %v3595, %v3842
      %v3948 = vmul.f32 %v3596, %v3744
      %v3949 = vmul.f32 %v3597, %v3843
      %v3950 = vmul.f32 %v3598, %v3748
      %v3951 = vmul.f32 %v3599, %v3844
      %v3952 = vmul.f32 %v3600, %v3752
      %v3953 = vmul.f32 %v3601, %v3845
      %v3954 = vmul.f32 %v3602, %v3756
      %v3955 = vmul.f32 %v3603, %v3846
      %v3956 = vmul.f32 %v3604, %v3760
      %v3957 = vmul.f32 %v3605, %v3847
      %v3958 = vmul.f32 %v3606, %v3764
      %v3959 = vmul.f32 %v3607, %v3848
      %v3960 = vmul.f32 %v3608, %v3768
      %v3961 = vmul.f32 %v3609, %v3849
      %v3962 = vmul.f32 %v3610, %v3772
      %v3963 = vmul.f32 %v3611, %v3850
      %v3964 = vmul.f32 %v3612, %v3776
      %v3965 = vmul.f32 %v3613, %v3851
      %v3966 = vmul.f32 %v3614, %v3780
      %v3967 = vmul.f32 %v3615, %v3852
      %v3968 = vmul.f32 %v3616, %v3784
      %v3969 = vmul.f32 %v3617, %v3853
      %v3970 = vmul.f32 %v3618, %v3788
      %v3971 = vmul.f32 %v3619, %v3854
      %v3972 = vmul.f32 %v3620, %v3792
      %v3973 = vmul.f32 %v3621, %v3855
      %v3974 = vmul.f32 %v3622, %v3796
      %v3975 = vmul.f32 %v3623, %v3856
      %v3976 = vmul.f32 %v3624, %v3800
      %v3977 = vmul.f32 %v3625, %v3857
      %v3978 = vmul.f32 %v3626, %v3804
      %v3979 = vmul.f32 %v3627, %v3858
      %v3980 = vmul.f32 %v3628, %v3808
      %v3981 = vmul.f32 %v3629, %v3859
      %v3982 = vmul.f32 %v3630, %v3812
      %v3983 = vmul.f32 %v3631, %v3860
      %v3984 = vmul.f32 %v3632, %v3816
      %v3985 = vmul.f32 %v3633, %v3861
      %v3986 = vmul.f32 %v3634, %v3820
      %v3987 = vmul.f32 %v3635, %v3862
      %v3988 = vmul.f32 %v3636, %v3824
      %v3989 = vmul.f32 %v3637, %v3863
      %v3990 = vmul.f32 %v3638, %v3828
      %v3991 = vmul.f32 %v3639, %v3864
      %v3992 = vmul.f32 %v3640, %v3832
      %v3993 = vadd.f32 %v3427, %v3929
      %v3994 = vadd.f32 %v3428, %v3930
      %v3995 = vadd.f32 %v3429, %v3931
      %v3996 = vadd.f32 %v3430, %v3932
      %v3997 = vadd.f32 %v3431, %v3933
      %v3998 = vadd.f32 %v3432, %v3934
      %v3999 = vadd.f32 %v3433, %v3935
      %v4000 = vadd.f32 %v3434, %v3936
      %v4001 = vadd.f32 %v3435, %v3937
      %v4002 = vadd.f32 %v3436, %v3938
      %v4003 = vadd.f32 %v3437, %v3939
      %v4004 = vadd.f32 %v3438, %v3940
      %v4005 = vadd.f32 %v3439, %v3941
      %v4006 = vadd.f32 %v3440, %v3942
      %v4007 = vadd.f32 %v3441, %v3943
      %v4008 = vadd.f32 %v3442, %v3944
      %v4009 = vadd.f32 %v3443, %v3945
      %v4010 = vadd.f32 %v3444, %v3946
      %v4011 = vadd.f32 %v3445, %v3947
      %v4012 = vadd.f32 %v3446, %v3948
      %v4013 = vadd.f32 %v3447, %v3949
      %v4014 = vadd.f32 %v3448, %v3950
      %v4015 = vadd.f32 %v3449, %v3951
      %v4016 = vadd.f32 %v3450, %v3952
      %v4017 = vadd.f32 %v3451, %v3953
      %v4018 = vadd.f32 %v3452, %v3954
      %v4019 = vadd.f32 %v3453, %v3955
      %v4020 = vadd.f32 %v3454, %v3956
      %v4021 = vadd.f32 %v3455, %v3957
      %v4022 = vadd.f32 %v3456, %v3958
      %v4023 = vadd.f32 %v3457, %v3959
      %v4024 = vadd.f32 %v3458, %v3960
      %v4025 = vadd.f32 %v3459, %v3961
      %v4026 = vadd.f32 %v3460, %v3962
      %v4027 = vadd.f32 %v3461, %v3963
      %v4028 = vadd.f32 %v3462, %v3964
      %v4029 = vadd.f32 %v3463, %v3965
      %v4030 = vadd.f32 %v3464, %v3966
      %v4031 = vadd.f32 %v3465, %v3967
      %v4032 = vadd.f32 %v3466, %v3968
      %v4033 = vadd.f32 %v3467, %v3969
      %v4034 = vadd.f32 %v3468, %v3970
      %v4035 = vadd.f32 %v3469, %v3971
      %v4036 = vadd.f32 %v3470, %v3972
      %v4037 = vadd.f32 %v3471, %v3973
      %v4038 = vadd.f32 %v3472, %v3974
      %v4039 = vadd.f32 %v3473, %v3975
      %v4040 = vadd.f32 %v3474, %v3976
      %v4041 = vadd.f32 %v3475, %v3977
      %v4042 = vadd.f32 %v3476, %v3978
      %v4043 = vadd.f32 %v3477, %v3979
      %v4044 = vadd.f32 %v3478, %v3980
      %v4045 = vadd.f32 %v3479, %v3981
      %v4046 = vadd.f32 %v3480, %v3982
      %v4047 = vadd.f32 %v3481, %v3983
      %v4048 = vadd.f32 %v3482, %v3984
      %v4049 = vadd.f32 %v3483, %v3985
      %v4050 = vadd.f32 %v3484, %v3986
      %v4051 = vadd.f32 %v3485, %v3987
      %v4052 = vadd.f32 %v3486, %v3988
      %v4053 = vadd.f32 %v3487, %v3989
      %v4054 = vadd.f32 %v3488, %v3990
      %v4055 = vadd.f32 %v3489, %v3991
      %v4056 = vadd.f32 %v3490, %v3992
      %4057 = vst [vmem:[#allocation2] sm:$0xff] %v3993
      %4058 = vst.msk [vmem:[#allocation2 + $0x8] sm:$0xff] %vm2096, %v3994
      %4059 = vst [vmem:[#allocation2 + $0x10] sm:$0xff] %v3995
      %4060 = vst.msk [vmem:[#allocation2 + $0x18] sm:$0xff] %vm2096, %v3996
      %4061 = vst [vmem:[#allocation2 + $0x20] sm:$0xff] %v3997
      %4062 = vst.msk [vmem:[#allocation2 + $0x28] sm:$0xff] %vm2096, %v3998
      %4063 = vst [vmem:[#allocation2 + $0x30] sm:$0xff] %v3999
      %4064 = vst.msk [vmem:[#allocation2 + $0x38] sm:$0xff] %vm2096, %v4000
      %4065 = vst [vmem:[#allocation2 + $0x40] sm:$0xff] %v4001
      %4066 = vst.msk [vmem:[#allocation2 + $0x48] sm:$0xff] %vm2096, %v4002
      %4067 = vst [vmem:[#allocation2 + $0x50] sm:$0xff] %v4003
      %4068 = vst.msk [vmem:[#allocation2 + $0x58] sm:$0xff] %vm2096, %v4004
      %4069 = vst [vmem:[#allocation2 + $0x60] sm:$0xff] %v4005
      %4070 = vst.msk [vmem:[#allocation2 + $0x68] sm:$0xff] %vm2096, %v4006
      %4071 = vst [vmem:[#allocation2 + $0x70] sm:$0xff] %v4007
      %4072 = vst.msk [vmem:[#allocation2 + $0x78] sm:$0xff] %vm2096, %v4008
      %4073 = vst [vmem:[#allocation2 + $0x80] sm:$0xff] %v4009
      %4074 = vst.msk [vmem:[#allocation2 + $0x88] sm:$0xff] %vm2096, %v4010
      %4075 = vst [vmem:[#allocation2 + $0x90] sm:$0xff] %v4011
      %4076 = vst.msk [vmem:[#allocation2 + $0x98] sm:$0xff] %vm2096, %v4012
      %4077 = vst [vmem:[#allocation2 + $0xa0] sm:$0xff] %v4013
      %4078 = vst.msk [vmem:[#allocation2 + $0xa8] sm:$0xff] %vm2096, %v4014
      %4079 = vst [vmem:[#allocation2 + $0xb0] sm:$0xff] %v4015
      %4080 = vst.msk [vmem:[#allocation2 + $0xb8] sm:$0xff] %vm2096, %v4016
      %4081 = vst [vmem:[#allocation2 + $0xc0] sm:$0xff] %v4017
      %4082 = vst.msk [vmem:[#allocation2 + $0xc8] sm:$0xff] %vm2096, %v4018
      %4083 = vst [vmem:[#allocation2 + $0xd0] sm:$0xff] %v4019
      %4084 = vst.msk [vmem:[#allocation2 + $0xd8] sm:$0xff] %vm2096, %v4020
      %4085 = vst [vmem:[#allocation2 + $0xe0] sm:$0xff] %v4021
      %4086 = vst.msk [vmem:[#allocation2 + $0xe8] sm:$0xff] %vm2096, %v4022
      %4087 = vst [vmem:[#allocation2 + $0xf0] sm:$0xff] %v4023
      %4088 = vst.msk [vmem:[#allocation2 + $0xf8] sm:$0xff] %vm2096, %v4024
      %4089 = vst [vmem:[#allocation2 + $0x100] sm:$0xff] %v4025
      %4090 = vst.msk [vmem:[#allocation2 + $0x108] sm:$0xff] %vm2096, %v4026
      %4091 = vst [vmem:[#allocation2 + $0x110] sm:$0xff] %v4027
      %4092 = vst.msk [vmem:[#allocation2 + $0x118] sm:$0xff] %vm2096, %v4028
      %4093 = vst [vmem:[#allocation2 + $0x120] sm:$0xff] %v4029
      %4094 = vst.msk [vmem:[#allocation2 + $0x128] sm:$0xff] %vm2096, %v4030
      %4095 = vst [vmem:[#allocation2 + $0x130] sm:$0xff] %v4031
      %4096 = vst.msk [vmem:[#allocation2 + $0x138] sm:$0xff] %vm2096, %v4032
      %4097 = vst [vmem:[#allocation2 + $0x140] sm:$0xff] %v4033
      %4098 = vst.msk [vmem:[#allocation2 + $0x148] sm:$0xff] %vm2096, %v4034
      %4099 = vst [vmem:[#allocation2 + $0x150] sm:$0xff] %v4035
      %4100 = vst.msk [vmem:[#allocation2 + $0x158] sm:$0xff] %vm2096, %v4036
      %4101 = vst [vmem:[#allocation2 + $0x160] sm:$0xff] %v4037
      %4102 = vst.msk [vmem:[#allocation2 + $0x168] sm:$0xff] %vm2096, %v4038
      %4103 = vst [vmem:[#allocation2 + $0x170] sm:$0xff] %v4039
      %4104 = vst.msk [vmem:[#allocation2 + $0x178] sm:$0xff] %vm2096, %v4040
      %4105 = vst [vmem:[#allocation2 + $0x180] sm:$0xff] %v4041
      %4106 = vst.msk [vmem:[#allocation2 + $0x188] sm:$0xff] %vm2096, %v4042
      %4107 = vst [vmem:[#allocation2 + $0x190] sm:$0xff] %v4043
      %4108 = vst.msk [vmem:[#allocation2 + $0x198] sm:$0xff] %vm2096, %v4044
      %4109 = vst [vmem:[#allocation2 + $0x1a0] sm:$0xff] %v4045
      %4110 = vst.msk [vmem:[#allocation2 + $0x1a8] sm:$0xff] %vm2096, %v4046
      %4111 = vst [vmem:[#allocation2 + $0x1b0] sm:$0xff] %v4047
      %4112 = vst.msk [vmem:[#allocation2 + $0x1b8] sm:$0xff] %vm2096, %v4048
      %4113 = vst [vmem:[#allocation2 + $0x1c0] sm:$0xff] %v4049
      %4114 = vst.msk [vmem:[#allocation2 + $0x1c8] sm:$0xff] %vm2096, %v4050
      %4115 = vst [vmem:[#allocation2 + $0x1d0] sm:$0xff] %v4051
      %4116 = vst.msk [vmem:[#allocation2 + $0x1d8] sm:$0xff] %vm2096, %v4052
      %4117 = vst [vmem:[#allocation2 + $0x1e0] sm:$0xff] %v4053
      %4118 = vst.msk [vmem:[#allocation2 + $0x1e8] sm:$0xff] %vm2096, %v4054
      %4119 = vst [vmem:[#allocation2 + $0x1f0] sm:$0xff] %v4055
      %4120 = vst.msk [vmem:[#allocation2 + $0x1f8] sm:$0xff] %vm2096, %v4056
      %s4121 = scalar_lea.vmem %s1, 18
      %v4122 = vld [vmem:[%s4121] ss:$8 sm:$0x3]
      %s4123 = scalar_lea.vmem %s1, 19
      %v4124 = vld [vmem:[%s4123] ss:$8 sm:$0x3]
      %s4125 = scalar_lea.vmem %s1, 20
      %v4126 = vld [vmem:[%s4125] ss:$8 sm:$0x3]
      %s4127 = scalar_lea.vmem %s1, 21
      %v4128 = vld [vmem:[%s4127] ss:$8 sm:$0x3]
      %v4129 = vld [vmem:[#allocation3] sm:$0xff]
      %v4130 = vld [vmem:[#allocation3 + $0x8] sm:$0xff]
      %v4131 = vld [vmem:[#allocation3 + $0x10] sm:$0xff]
      %v4132 = vld [vmem:[#allocation3 + $0x18] sm:$0xff]
      %v4133 = vld [vmem:[#allocation3 + $0x20] sm:$0xff]
      %v4134 = vld [vmem:[#allocation3 + $0x28] sm:$0xff]
      %v4135 = vld [vmem:[#allocation3 + $0x30] sm:$0xff]
      %v4136 = vld [vmem:[#allocation3 + $0x38] sm:$0xff]
      %v4137 = vld [vmem:[#allocation3 + $0x40] sm:$0xff]
      %v4138 = vld [vmem:[#allocation3 + $0x48] sm:$0xff]
      %v4139 = vld [vmem:[#allocation3 + $0x50] sm:$0xff]
      %v4140 = vld [vmem:[#allocation3 + $0x58] sm:$0xff]
      %v4141 = vld [vmem:[#allocation3 + $0x60] sm:$0xff]
      %v4142 = vld [vmem:[#allocation3 + $0x68] sm:$0xff]
      %v4143 = vld [vmem:[#allocation3 + $0x70] sm:$0xff]
      %v4144 = vld [vmem:[#allocation3 + $0x78] sm:$0xff]
      %v4145 = vld [vmem:[#allocation3 + $0x80] sm:$0xff]
      %v4146 = vld [vmem:[#allocation3 + $0x88] sm:$0xff]
      %v4147 = vld [vmem:[#allocation3 + $0x90] sm:$0xff]
      %v4148 = vld [vmem:[#allocation3 + $0x98] sm:$0xff]
      %v4149 = vld [vmem:[#allocation3 + $0xa0] sm:$0xff]
      %v4150 = vld [vmem:[#allocation3 + $0xa8] sm:$0xff]
      %v4151 = vld [vmem:[#allocation3 + $0xb0] sm:$0xff]
      %v4152 = vld [vmem:[#allocation3 + $0xb8] sm:$0xff]
      %v4153 = vld [vmem:[#allocation3 + $0xc0] sm:$0xff]
      %v4154 = vld [vmem:[#allocation3 + $0xc8] sm:$0xff]
      %v4155 = vld [vmem:[#allocation3 + $0xd0] sm:$0xff]
      %v4156 = vld [vmem:[#allocation3 + $0xd8] sm:$0xff]
      %v4157 = vld [vmem:[#allocation3 + $0xe0] sm:$0xff]
      %v4158 = vld [vmem:[#allocation3 + $0xe8] sm:$0xff]
      %v4159 = vld [vmem:[#allocation3 + $0xf0] sm:$0xff]
      %v4160 = vld [vmem:[#allocation3 + $0xf8] sm:$0xff]
      %v4161 = vld [vmem:[#allocation3 + $0x100] sm:$0xff]
      %v4162 = vld [vmem:[#allocation3 + $0x108] sm:$0xff]
      %v4163 = vld [vmem:[#allocation3 + $0x110] sm:$0xff]
      %v4164 = vld [vmem:[#allocation3 + $0x118] sm:$0xff]
      %v4165 = vld [vmem:[#allocation3 + $0x120] sm:$0xff]
      %v4166 = vld [vmem:[#allocation3 + $0x128] sm:$0xff]
      %v4167 = vld [vmem:[#allocation3 + $0x130] sm:$0xff]
      %v4168 = vld [vmem:[#allocation3 + $0x138] sm:$0xff]
      %v4169 = vld [vmem:[#allocation3 + $0x140] sm:$0xff]
      %v4170 = vld [vmem:[#allocation3 + $0x148] sm:$0xff]
      %v4171 = vld [vmem:[#allocation3 + $0x150] sm:$0xff]
      %v4172 = vld [vmem:[#allocation3 + $0x158] sm:$0xff]
      %v4173 = vld [vmem:[#allocation3 + $0x160] sm:$0xff]
      %v4174 = vld [vmem:[#allocation3 + $0x168] sm:$0xff]
      %v4175 = vld [vmem:[#allocation3 + $0x170] sm:$0xff]
      %v4176 = vld [vmem:[#allocation3 + $0x178] sm:$0xff]
      %v4177 = vld [vmem:[#allocation3 + $0x180] sm:$0xff]
      %v4178 = vld [vmem:[#allocation3 + $0x188] sm:$0xff]
      %v4179 = vld [vmem:[#allocation3 + $0x190] sm:$0xff]
      %v4180 = vld [vmem:[#allocation3 + $0x198] sm:$0xff]
      %v4181 = vld [vmem:[#allocation3 + $0x1a0] sm:$0xff]
      %v4182 = vld [vmem:[#allocation3 + $0x1a8] sm:$0xff]
      %v4183 = vld [vmem:[#allocation3 + $0x1b0] sm:$0xff]
      %v4184 = vld [vmem:[#allocation3 + $0x1b8] sm:$0xff]
      %v4185 = vld [vmem:[#allocation3 + $0x1c0] sm:$0xff]
      %v4186 = vld [vmem:[#allocation3 + $0x1c8] sm:$0xff]
      %v4187 = vld [vmem:[#allocation3 + $0x1d0] sm:$0xff]
      %v4188 = vld [vmem:[#allocation3 + $0x1d8] sm:$0xff]
      %v4189 = vld [vmem:[#allocation3 + $0x1e0] sm:$0xff]
      %v4190 = vld [vmem:[#allocation3 + $0x1e8] sm:$0xff]
      %v4191 = vld [vmem:[#allocation3 + $0x1f0] sm:$0xff]
      %v4192 = vld [vmem:[#allocation3 + $0x1f8] sm:$0xff]
      %v4193 = vld [vmem:[#allocation2] sm:$0xff]
      %v4194 = vld [vmem:[#allocation2 + $0x8] sm:$0xff]
      %v4195 = vld [vmem:[#allocation2 + $0x10] sm:$0xff]
      %v4196 = vld [vmem:[#allocation2 + $0x18] sm:$0xff]
      %v4197 = vld [vmem:[#allocation2 + $0x20] sm:$0xff]
      %v4198 = vld [vmem:[#allocation2 + $0x28] sm:$0xff]
      %v4199 = vld [vmem:[#allocation2 + $0x30] sm:$0xff]
      %v4200 = vld [vmem:[#allocation2 + $0x38] sm:$0xff]
      %v4201 = vld [vmem:[#allocation2 + $0x40] sm:$0xff]
      %v4202 = vld [vmem:[#allocation2 + $0x48] sm:$0xff]
      %v4203 = vld [vmem:[#allocation2 + $0x50] sm:$0xff]
      %v4204 = vld [vmem:[#allocation2 + $0x58] sm:$0xff]
      %v4205 = vld [vmem:[#allocation2 + $0x60] sm:$0xff]
      %v4206 = vld [vmem:[#allocation2 + $0x68] sm:$0xff]
      %v4207 = vld [vmem:[#allocation2 + $0x70] sm:$0xff]
      %v4208 = vld [vmem:[#allocation2 + $0x78] sm:$0xff]
      %v4209 = vld [vmem:[#allocation2 + $0x80] sm:$0xff]
      %v4210 = vld [vmem:[#allocation2 + $0x88] sm:$0xff]
      %v4211 = vld [vmem:[#allocation2 + $0x90] sm:$0xff]
      %v4212 = vld [vmem:[#allocation2 + $0x98] sm:$0xff]
      %v4213 = vld [vmem:[#allocation2 + $0xa0] sm:$0xff]
      %v4214 = vld [vmem:[#allocation2 + $0xa8] sm:$0xff]
      %v4215 = vld [vmem:[#allocation2 + $0xb0] sm:$0xff]
      %v4216 = vld [vmem:[#allocation2 + $0xb8] sm:$0xff]
      %v4217 = vld [vmem:[#allocation2 + $0xc0] sm:$0xff]
      %v4218 = vld [vmem:[#allocation2 + $0xc8] sm:$0xff]
      %v4219 = vld [vmem:[#allocation2 + $0xd0] sm:$0xff]
      %v4220 = vld [vmem:[#allocation2 + $0xd8] sm:$0xff]
      %v4221 = vld [vmem:[#allocation2 + $0xe0] sm:$0xff]
      %v4222 = vld [vmem:[#allocation2 + $0xe8] sm:$0xff]
      %v4223 = vld [vmem:[#allocation2 + $0xf0] sm:$0xff]
      %v4224 = vld [vmem:[#allocation2 + $0xf8] sm:$0xff]
      %v4225 = vld [vmem:[#allocation2 + $0x100] sm:$0xff]
      %v4226 = vld [vmem:[#allocation2 + $0x108] sm:$0xff]
      %v4227 = vld [vmem:[#allocation2 + $0x110] sm:$0xff]
      %v4228 = vld [vmem:[#allocation2 + $0x118] sm:$0xff]
      %v4229 = vld [vmem:[#allocation2 + $0x120] sm:$0xff]
      %v4230 = vld [vmem:[#allocation2 + $0x128] sm:$0xff]
      %v4231 = vld [vmem:[#allocation2 + $0x130] sm:$0xff]
      %v4232 = vld [vmem:[#allocation2 + $0x138] sm:$0xff]
      %v4233 = vld [vmem:[#allocation2 + $0x140] sm:$0xff]
      %v4234 = vld [vmem:[#allocation2 + $0x148] sm:$0xff]
      %v4235 = vld [vmem:[#allocation2 + $0x150] sm:$0xff]
      %v4236 = vld [vmem:[#allocation2 + $0x158] sm:$0xff]
      %v4237 = vld [vmem:[#allocation2 + $0x160] sm:$0xff]
      %v4238 = vld [vmem:[#allocation2 + $0x168] sm:$0xff]
      %v4239 = vld [vmem:[#allocation2 + $0x170] sm:$0xff]
      %v4240 = vld [vmem:[#allocation2 + $0x178] sm:$0xff]
      %v4241 = vld [vmem:[#allocation2 + $0x180] sm:$0xff]
      %v4242 = vld [vmem:[#allocation2 + $0x188] sm:$0xff]
      %v4243 = vld [vmem:[#allocation2 + $0x190] sm:$0xff]
      %v4244 = vld [vmem:[#allocation2 + $0x198] sm:$0xff]
      %v4245 = vld [vmem:[#allocation2 + $0x1a0] sm:$0xff]
      %v4246 = vld [vmem:[#allocation2 + $0x1a8] sm:$0xff]
      %v4247 = vld [vmem:[#allocation2 + $0x1b0] sm:$0xff]
      %v4248 = vld [vmem:[#allocation2 + $0x1b8] sm:$0xff]
      %v4249 = vld [vmem:[#allocation2 + $0x1c0] sm:$0xff]
      %v4250 = vld [vmem:[#allocation2 + $0x1c8] sm:$0xff]
      %v4251 = vld [vmem:[#allocation2 + $0x1d0] sm:$0xff]
      %v4252 = vld [vmem:[#allocation2 + $0x1d8] sm:$0xff]
      %v4253 = vld [vmem:[#allocation2 + $0x1e0] sm:$0xff]
      %v4254 = vld [vmem:[#allocation2 + $0x1e8] sm:$0xff]
      %v4255 = vld [vmem:[#allocation2 + $0x1f0] sm:$0xff]
      %v4256 = vld [vmem:[#allocation2 + $0x1f8] sm:$0xff]
      %v4258 = vlaneseq
      %v4259 = vshrl.u32 %v4258, 7
      %v4260 = vsub.s32 0, %v4259
      %v4261 = vrot.slane %v4122, %v4260
      %v4262 = vlaneseq
      %v4263 = vshrl.u32 %v4262, 7
      %v4264 = vsub.s32 1, %v4263
      %v4265 = vrot.slane %v4122, %v4264
      %v4268 = vsub.f32 %v4129, %v4261
      %v4269 = vsub.f32 %v4130, %v4265
      %v4270 = vsub.f32 %v4131, %v4261
      %v4271 = vsub.f32 %v4132, %v4265
      %v4272 = vsub.f32 %v4133, %v4261
      %v4273 = vsub.f32 %v4134, %v4265
      %v4274 = vsub.f32 %v4135, %v4261
      %v4275 = vsub.f32 %v4136, %v4265
      %v4276 = vsub.f32 %v4137, %v4261
      %v4277 = vsub.f32 %v4138, %v4265
      %v4278 = vsub.f32 %v4139, %v4261
      %v4279 = vsub.f32 %v4140, %v4265
      %v4280 = vsub.f32 %v4141, %v4261
      %v4281 = vsub.f32 %v4142, %v4265
      %v4282 = vsub.f32 %v4143, %v4261
      %v4283 = vsub.f32 %v4144, %v4265
      %v4284 = vsub.f32 %v4145, %v4261
      %v4285 = vsub.f32 %v4146, %v4265
      %v4286 = vsub.f32 %v4147, %v4261
      %v4287 = vsub.f32 %v4148, %v4265
      %v4288 = vsub.f32 %v4149, %v4261
      %v4289 = vsub.f32 %v4150, %v4265
      %v4290 = vsub.f32 %v4151, %v4261
      %v4291 = vsub.f32 %v4152, %v4265
      %v4292 = vsub.f32 %v4153, %v4261
      %v4293 = vsub.f32 %v4154, %v4265
      %v4294 = vsub.f32 %v4155, %v4261
      %v4295 = vsub.f32 %v4156, %v4265
      %v4296 = vsub.f32 %v4157, %v4261
      %v4297 = vsub.f32 %v4158, %v4265
      %v4298 = vsub.f32 %v4159, %v4261
      %v4299 = vsub.f32 %v4160, %v4265
      %v4300 = vsub.f32 %v4161, %v4261
      %v4301 = vsub.f32 %v4162, %v4265
      %v4302 = vsub.f32 %v4163, %v4261
      %v4303 = vsub.f32 %v4164, %v4265
      %v4304 = vsub.f32 %v4165, %v4261
      %v4305 = vsub.f32 %v4166, %v4265
      %v4306 = vsub.f32 %v4167, %v4261
      %v4307 = vsub.f32 %v4168, %v4265
      %v4308 = vsub.f32 %v4169, %v4261
      %v4309 = vsub.f32 %v4170, %v4265
      %v4310 = vsub.f32 %v4171, %v4261
      %v4311 = vsub.f32 %v4172, %v4265
      %v4312 = vsub.f32 %v4173, %v4261
      %v4313 = vsub.f32 %v4174, %v4265
      %v4314 = vsub.f32 %v4175, %v4261
      %v4315 = vsub.f32 %v4176, %v4265
      %v4316 = vsub.f32 %v4177, %v4261
      %v4317 = vsub.f32 %v4178, %v4265
      %v4318 = vsub.f32 %v4179, %v4261
      %v4319 = vsub.f32 %v4180, %v4265
      %v4320 = vsub.f32 %v4181, %v4261
      %v4321 = vsub.f32 %v4182, %v4265
      %v4322 = vsub.f32 %v4183, %v4261
      %v4323 = vsub.f32 %v4184, %v4265
      %v4324 = vsub.f32 %v4185, %v4261
      %v4325 = vsub.f32 %v4186, %v4265
      %v4326 = vsub.f32 %v4187, %v4261
      %v4327 = vsub.f32 %v4188, %v4265
      %v4328 = vsub.f32 %v4189, %v4261
      %v4329 = vsub.f32 %v4190, %v4265
      %v4330 = vsub.f32 %v4191, %v4261
      %v4331 = vsub.f32 %v4192, %v4265
      %v4333 = vlaneseq
      %v4334 = vshrl.u32 %v4333, 7
      %v4335 = vsub.s32 0, %v4334
      %v4336 = vrot.slane %v4124, %v4335
      %v4337 = vlaneseq
      %v4338 = vshrl.u32 %v4337, 7
      %v4339 = vsub.s32 1, %v4338
      %v4340 = vrot.slane %v4124, %v4339
      %v4343 = vmul.f32 %v4268, %v4336
      %v4344 = vmul.f32 %v4269, %v4340
      %v4345 = vmul.f32 %v4270, %v4336
      %v4346 = vmul.f32 %v4271, %v4340
      %v4347 = vmul.f32 %v4272, %v4336
      %v4348 = vmul.f32 %v4273, %v4340
      %v4349 = vmul.f32 %v4274, %v4336
      %v4350 = vmul.f32 %v4275, %v4340
      %v4351 = vmul.f32 %v4276, %v4336
      %v4352 = vmul.f32 %v4277, %v4340
      %v4353 = vmul.f32 %v4278, %v4336
      %v4354 = vmul.f32 %v4279, %v4340
      %v4355 = vmul.f32 %v4280, %v4336
      %v4356 = vmul.f32 %v4281, %v4340
      %v4357 = vmul.f32 %v4282, %v4336
      %v4358 = vmul.f32 %v4283, %v4340
      %v4359 = vmul.f32 %v4284, %v4336
      %v4360 = vmul.f32 %v4285, %v4340
      %v4361 = vmul.f32 %v4286, %v4336
      %v4362 = vmul.f32 %v4287, %v4340
      %v4363 = vmul.f32 %v4288, %v4336
      %v4364 = vmul.f32 %v4289, %v4340
      %v4365 = vmul.f32 %v4290, %v4336
      %v4366 = vmul.f32 %v4291, %v4340
      %v4367 = vmul.f32 %v4292, %v4336
      %v4368 = vmul.f32 %v4293, %v4340
      %v4369 = vmul.f32 %v4294, %v4336
      %v4370 = vmul.f32 %v4295, %v4340
      %v4371 = vmul.f32 %v4296, %v4336
      %v4372 = vmul.f32 %v4297, %v4340
      %v4373 = vmul.f32 %v4298, %v4336
      %v4374 = vmul.f32 %v4299, %v4340
      %v4375 = vmul.f32 %v4300, %v4336
      %v4376 = vmul.f32 %v4301, %v4340
      %v4377 = vmul.f32 %v4302, %v4336
      %v4378 = vmul.f32 %v4303, %v4340
      %v4379 = vmul.f32 %v4304, %v4336
      %v4380 = vmul.f32 %v4305, %v4340
      %v4381 = vmul.f32 %v4306, %v4336
      %v4382 = vmul.f32 %v4307, %v4340
      %v4383 = vmul.f32 %v4308, %v4336
      %v4384 = vmul.f32 %v4309, %v4340
      %v4385 = vmul.f32 %v4310, %v4336
      %v4386 = vmul.f32 %v4311, %v4340
      %v4387 = vmul.f32 %v4312, %v4336
      %v4388 = vmul.f32 %v4313, %v4340
      %v4389 = vmul.f32 %v4314, %v4336
      %v4390 = vmul.f32 %v4315, %v4340
      %v4391 = vmul.f32 %v4316, %v4336
      %v4392 = vmul.f32 %v4317, %v4340
      %v4393 = vmul.f32 %v4318, %v4336
      %v4394 = vmul.f32 %v4319, %v4340
      %v4395 = vmul.f32 %v4320, %v4336
      %v4396 = vmul.f32 %v4321, %v4340
      %v4397 = vmul.f32 %v4322, %v4336
      %v4398 = vmul.f32 %v4323, %v4340
      %v4399 = vmul.f32 %v4324, %v4336
      %v4400 = vmul.f32 %v4325, %v4340
      %v4401 = vmul.f32 %v4326, %v4336
      %v4402 = vmul.f32 %v4327, %v4340
      %v4403 = vmul.f32 %v4328, %v4336
      %v4404 = vmul.f32 %v4329, %v4340
      %v4405 = vmul.f32 %v4330, %v4336
      %v4406 = vmul.f32 %v4331, %v4340
      %v4407 = vmul.f32 %v4343, %v4193
      %v4408 = vmul.f32 %v4344, %v4194
      %v4409 = vmul.f32 %v4345, %v4195
      %v4410 = vmul.f32 %v4346, %v4196
      %v4411 = vmul.f32 %v4347, %v4197
      %v4412 = vmul.f32 %v4348, %v4198
      %v4413 = vmul.f32 %v4349, %v4199
      %v4414 = vmul.f32 %v4350, %v4200
      %v4415 = vmul.f32 %v4351, %v4201
      %v4416 = vmul.f32 %v4352, %v4202
      %v4417 = vmul.f32 %v4353, %v4203
      %v4418 = vmul.f32 %v4354, %v4204
      %v4419 = vmul.f32 %v4355, %v4205
      %v4420 = vmul.f32 %v4356, %v4206
      %v4421 = vmul.f32 %v4357, %v4207
      %v4422 = vmul.f32 %v4358, %v4208
      %v4423 = vmul.f32 %v4359, %v4209
      %v4424 = vmul.f32 %v4360, %v4210
      %v4425 = vmul.f32 %v4361, %v4211
      %v4426 = vmul.f32 %v4362, %v4212
      %v4427 = vmul.f32 %v4363, %v4213
      %v4428 = vmul.f32 %v4364, %v4214
      %v4429 = vmul.f32 %v4365, %v4215
      %v4430 = vmul.f32 %v4366, %v4216
      %v4431 = vmul.f32 %v4367, %v4217
      %v4432 = vmul.f32 %v4368, %v4218
      %v4433 = vmul.f32 %v4369, %v4219
      %v4434 = vmul.f32 %v4370, %v4220
      %v4435 = vmul.f32 %v4371, %v4221
      %v4436 = vmul.f32 %v4372, %v4222
      %v4437 = vmul.f32 %v4373, %v4223
      %v4438 = vmul.f32 %v4374, %v4224
      %v4439 = vmul.f32 %v4375, %v4225
      %v4440 = vmul.f32 %v4376, %v4226
      %v4441 = vmul.f32 %v4377, %v4227
      %v4442 = vmul.f32 %v4378, %v4228
      %v4443 = vmul.f32 %v4379, %v4229
      %v4444 = vmul.f32 %v4380, %v4230
      %v4445 = vmul.f32 %v4381, %v4231
      %v4446 = vmul.f32 %v4382, %v4232
      %v4447 = vmul.f32 %v4383, %v4233
      %v4448 = vmul.f32 %v4384, %v4234
      %v4449 = vmul.f32 %v4385, %v4235
      %v4450 = vmul.f32 %v4386, %v4236
      %v4451 = vmul.f32 %v4387, %v4237
      %v4452 = vmul.f32 %v4388, %v4238
      %v4453 = vmul.f32 %v4389, %v4239
      %v4454 = vmul.f32 %v4390, %v4240
      %v4455 = vmul.f32 %v4391, %v4241
      %v4456 = vmul.f32 %v4392, %v4242
      %v4457 = vmul.f32 %v4393, %v4243
      %v4458 = vmul.f32 %v4394, %v4244
      %v4459 = vmul.f32 %v4395, %v4245
      %v4460 = vmul.f32 %v4396, %v4246
      %v4461 = vmul.f32 %v4397, %v4247
      %v4462 = vmul.f32 %v4398, %v4248
      %v4463 = vmul.f32 %v4399, %v4249
      %v4464 = vmul.f32 %v4400, %v4250
      %v4465 = vmul.f32 %v4401, %v4251
      %v4466 = vmul.f32 %v4402, %v4252
      %v4467 = vmul.f32 %v4403, %v4253
      %v4468 = vmul.f32 %v4404, %v4254
      %v4469 = vmul.f32 %v4405, %v4255
      %v4470 = vmul.f32 %v4406, %v4256
      %v4472 = vlaneseq
      %v4473 = vshrl.u32 %v4472, 7
      %v4474 = vsub.s32 0, %v4473
      %v4475 = vrot.slane %v4126, %v4474
      %v4476 = vlaneseq
      %v4477 = vshrl.u32 %v4476, 7
      %v4478 = vsub.s32 1, %v4477
      %v4479 = vrot.slane %v4126, %v4478
      %v4482 = vsub.f32 %v4475, %v4129
      %v4483 = vsub.f32 %v4479, %v4130
      %v4484 = vsub.f32 %v4475, %v4131
      %v4485 = vsub.f32 %v4479, %v4132
      %v4486 = vsub.f32 %v4475, %v4133
      %v4487 = vsub.f32 %v4479, %v4134
      %v4488 = vsub.f32 %v4475, %v4135
      %v4489 = vsub.f32 %v4479, %v4136
      %v4490 = vsub.f32 %v4475, %v4137
      %v4491 = vsub.f32 %v4479, %v4138
      %v4492 = vsub.f32 %v4475, %v4139
      %v4493 = vsub.f32 %v4479, %v4140
      %v4494 = vsub.f32 %v4475, %v4141
      %v4495 = vsub.f32 %v4479, %v4142
      %v4496 = vsub.f32 %v4475, %v4143
      %v4497 = vsub.f32 %v4479, %v4144
      %v4498 = vsub.f32 %v4475, %v4145
      %v4499 = vsub.f32 %v4479, %v4146
      %v4500 = vsub.f32 %v4475, %v4147
      %v4501 = vsub.f32 %v4479, %v4148
      %v4502 = vsub.f32 %v4475, %v4149
      %v4503 = vsub.f32 %v4479, %v4150
      %v4504 = vsub.f32 %v4475, %v4151
      %v4505 = vsub.f32 %v4479, %v4152
      %v4506 = vsub.f32 %v4475, %v4153
      %v4507 = vsub.f32 %v4479, %v4154
      %v4508 = vsub.f32 %v4475, %v4155
      %v4509 = vsub.f32 %v4479, %v4156
      %v4510 = vsub.f32 %v4475, %v4157
      %v4511 = vsub.f32 %v4479, %v4158
      %v4512 = vsub.f32 %v4475, %v4159
      %v4513 = vsub.f32 %v4479, %v4160
      %v4514 = vsub.f32 %v4475, %v4161
      %v4515 = vsub.f32 %v4479, %v4162
      %v4516 = vsub.f32 %v4475, %v4163
      %v4517 = vsub.f32 %v4479, %v4164
      %v4518 = vsub.f32 %v4475, %v4165
      %v4519 = vsub.f32 %v4479, %v4166
      %v4520 = vsub.f32 %v4475, %v4167
      %v4521 = vsub.f32 %v4479, %v4168
      %v4522 = vsub.f32 %v4475, %v4169
      %v4523 = vsub.f32 %v4479, %v4170
      %v4524 = vsub.f32 %v4475, %v4171
      %v4525 = vsub.f32 %v4479, %v4172
      %v4526 = vsub.f32 %v4475, %v4173
      %v4527 = vsub.f32 %v4479, %v4174
      %v4528 = vsub.f32 %v4475, %v4175
      %v4529 = vsub.f32 %v4479, %v4176
      %v4530 = vsub.f32 %v4475, %v4177
      %v4531 = vsub.f32 %v4479, %v4178
      %v4532 = vsub.f32 %v4475, %v4179
      %v4533 = vsub.f32 %v4479, %v4180
      %v4534 = vsub.f32 %v4475, %v4181
      %v4535 = vsub.f32 %v4479, %v4182
      %v4536 = vsub.f32 %v4475, %v4183
      %v4537 = vsub.f32 %v4479, %v4184
      %v4538 = vsub.f32 %v4475, %v4185
      %v4539 = vsub.f32 %v4479, %v4186
      %v4540 = vsub.f32 %v4475, %v4187
      %v4541 = vsub.f32 %v4479, %v4188
      %v4542 = vsub.f32 %v4475, %v4189
      %v4543 = vsub.f32 %v4479, %v4190
      %v4544 = vsub.f32 %v4475, %v4191
      %v4545 = vsub.f32 %v4479, %v4192
      %v4547 = vlaneseq
      %v4548 = vshrl.u32 %v4547, 7
      %v4549 = vsub.s32 0, %v4548
      %v4550 = vrot.slane %v4128, %v4549
      %v4551 = vlaneseq
      %v4552 = vshrl.u32 %v4551, 7
      %v4553 = vsub.s32 1, %v4552
      %v4554 = vrot.slane %v4128, %v4553
      %v4557 = vmul.f32 %v4482, %v4550
      %v4558 = vmul.f32 %v4483, %v4554
      %v4559 = vmul.f32 %v4484, %v4550
      %v4560 = vmul.f32 %v4485, %v4554
      %v4561 = vmul.f32 %v4486, %v4550
      %v4562 = vmul.f32 %v4487, %v4554
      %v4563 = vmul.f32 %v4488, %v4550
      %v4564 = vmul.f32 %v4489, %v4554
      %v4565 = vmul.f32 %v4490, %v4550
      %v4566 = vmul.f32 %v4491, %v4554
      %v4567 = vmul.f32 %v4492, %v4550
      %v4568 = vmul.f32 %v4493, %v4554
      %v4569 = vmul.f32 %v4494, %v4550
      %v4570 = vmul.f32 %v4495, %v4554
      %v4571 = vmul.f32 %v4496, %v4550
      %v4572 = vmul.f32 %v4497, %v4554
      %v4573 = vmul.f32 %v4498, %v4550
      %v4574 = vmul.f32 %v4499, %v4554
      %v4575 = vmul.f32 %v4500, %v4550
      %v4576 = vmul.f32 %v4501, %v4554
      %v4577 = vmul.f32 %v4502, %v4550
      %v4578 = vmul.f32 %v4503, %v4554
      %v4579 = vmul.f32 %v4504, %v4550
      %v4580 = vmul.f32 %v4505, %v4554
      %v4581 = vmul.f32 %v4506, %v4550
      %v4582 = vmul.f32 %v4507, %v4554
      %v4583 = vmul.f32 %v4508, %v4550
      %v4584 = vmul.f32 %v4509, %v4554
      %v4585 = vmul.f32 %v4510, %v4550
      %v4586 = vmul.f32 %v4511, %v4554
      %v4587 = vmul.f32 %v4512, %v4550
      %v4588 = vmul.f32 %v4513, %v4554
      %v4589 = vmul.f32 %v4514, %v4550
      %v4590 = vmul.f32 %v4515, %v4554
      %v4591 = vmul.f32 %v4516, %v4550
      %v4592 = vmul.f32 %v4517, %v4554
      %v4593 = vmul.f32 %v4518, %v4550
      %v4594 = vmul.f32 %v4519, %v4554
      %v4595 = vmul.f32 %v4520, %v4550
      %v4596 = vmul.f32 %v4521, %v4554
      %v4597 = vmul.f32 %v4522, %v4550
      %v4598 = vmul.f32 %v4523, %v4554
      %v4599 = vmul.f32 %v4524, %v4550
      %v4600 = vmul.f32 %v4525, %v4554
      %v4601 = vmul.f32 %v4526, %v4550
      %v4602 = vmul.f32 %v4527, %v4554
      %v4603 = vmul.f32 %v4528, %v4550
      %v4604 = vmul.f32 %v4529, %v4554
      %v4605 = vmul.f32 %v4530, %v4550
      %v4606 = vmul.f32 %v4531, %v4554
      %v4607 = vmul.f32 %v4532, %v4550
      %v4608 = vmul.f32 %v4533, %v4554
      %v4609 = vmul.f32 %v4534, %v4550
      %v4610 = vmul.f32 %v4535, %v4554
      %v4611 = vmul.f32 %v4536, %v4550
      %v4612 = vmul.f32 %v4537, %v4554
      %v4613 = vmul.f32 %v4538, %v4550
      %v4614 = vmul.f32 %v4539, %v4554
      %v4615 = vmul.f32 %v4540, %v4550
      %v4616 = vmul.f32 %v4541, %v4554
      %v4617 = vmul.f32 %v4542, %v4550
      %v4618 = vmul.f32 %v4543, %v4554
      %v4619 = vmul.f32 %v4544, %v4550
      %v4620 = vmul.f32 %v4545, %v4554
      %4685 = vrot.lane.b32.xlu0 %v4193, 112
      %v4686 = vpop.permute.xlu0 %4685
      %4687 = vrot.lane.b32.xlu0 %v4194, 112
      %v4688 = vpop.permute.xlu0 %4687
      %4689 = vrot.lane.b32.xlu0 %v4195, 112
      %v4690 = vpop.permute.xlu0 %4689
      %4691 = vrot.lane.b32.xlu0 %v4196, 112
      %v4692 = vpop.permute.xlu0 %4691
      %4693 = vrot.lane.b32.xlu0 %v4197, 112
      %v4694 = vpop.permute.xlu0 %4693
      %4695 = vrot.lane.b32.xlu0 %v4198, 112
      %v4696 = vpop.permute.xlu0 %4695
      %4697 = vrot.lane.b32.xlu0 %v4199, 112
      %v4698 = vpop.permute.xlu0 %4697
      %4699 = vrot.lane.b32.xlu0 %v4200, 112
      %v4700 = vpop.permute.xlu0 %4699
      %4701 = vrot.lane.b32.xlu0 %v4201, 112
      %v4702 = vpop.permute.xlu0 %4701
      %4703 = vrot.lane.b32.xlu0 %v4202, 112
      %v4704 = vpop.permute.xlu0 %4703
      %4705 = vrot.lane.b32.xlu0 %v4203, 112
      %v4706 = vpop.permute.xlu0 %4705
      %4707 = vrot.lane.b32.xlu0 %v4204, 112
      %v4708 = vpop.permute.xlu0 %4707
      %4709 = vrot.lane.b32.xlu0 %v4205, 112
      %v4710 = vpop.permute.xlu0 %4709
      %4711 = vrot.lane.b32.xlu0 %v4206, 112
      %v4712 = vpop.permute.xlu0 %4711
      %4713 = vrot.lane.b32.xlu0 %v4207, 112
      %v4714 = vpop.permute.xlu0 %4713
      %4715 = vrot.lane.b32.xlu0 %v4208, 112
      %v4716 = vpop.permute.xlu0 %4715
      %4717 = vrot.lane.b32.xlu0 %v4209, 112
      %v4718 = vpop.permute.xlu0 %4717
      %4719 = vrot.lane.b32.xlu0 %v4210, 112
      %v4720 = vpop.permute.xlu0 %4719
      %4721 = vrot.lane.b32.xlu0 %v4211, 112
      %v4722 = vpop.permute.xlu0 %4721
      %4723 = vrot.lane.b32.xlu0 %v4212, 112
      %v4724 = vpop.permute.xlu0 %4723
      %4725 = vrot.lane.b32.xlu0 %v4213, 112
      %v4726 = vpop.permute.xlu0 %4725
      %4727 = vrot.lane.b32.xlu0 %v4214, 112
      %v4728 = vpop.permute.xlu0 %4727
      %4729 = vrot.lane.b32.xlu0 %v4215, 112
      %v4730 = vpop.permute.xlu0 %4729
      %4731 = vrot.lane.b32.xlu0 %v4216, 112
      %v4732 = vpop.permute.xlu0 %4731
      %4733 = vrot.lane.b32.xlu0 %v4217, 112
      %v4734 = vpop.permute.xlu0 %4733
      %4735 = vrot.lane.b32.xlu0 %v4218, 112
      %v4736 = vpop.permute.xlu0 %4735
      %4737 = vrot.lane.b32.xlu0 %v4219, 112
      %v4738 = vpop.permute.xlu0 %4737
      %4739 = vrot.lane.b32.xlu0 %v4220, 112
      %v4740 = vpop.permute.xlu0 %4739
      %4741 = vrot.lane.b32.xlu0 %v4221, 112
      %v4742 = vpop.permute.xlu0 %4741
      %4743 = vrot.lane.b32.xlu0 %v4222, 112
      %v4744 = vpop.permute.xlu0 %4743
      %4745 = vrot.lane.b32.xlu0 %v4223, 112
      %v4746 = vpop.permute.xlu0 %4745
      %4747 = vrot.lane.b32.xlu0 %v4224, 112
      %v4748 = vpop.permute.xlu0 %4747
      %4749 = vrot.lane.b32.xlu0 %v4225, 112
      %v4750 = vpop.permute.xlu0 %4749
      %4751 = vrot.lane.b32.xlu0 %v4226, 112
      %v4752 = vpop.permute.xlu0 %4751
      %4753 = vrot.lane.b32.xlu0 %v4227, 112
      %v4754 = vpop.permute.xlu0 %4753
      %4755 = vrot.lane.b32.xlu0 %v4228, 112
      %v4756 = vpop.permute.xlu0 %4755
      %4757 = vrot.lane.b32.xlu0 %v4229, 112
      %v4758 = vpop.permute.xlu0 %4757
      %4759 = vrot.lane.b32.xlu0 %v4230, 112
      %v4760 = vpop.permute.xlu0 %4759
      %4761 = vrot.lane.b32.xlu0 %v4231, 112
      %v4762 = vpop.permute.xlu0 %4761
      %4763 = vrot.lane.b32.xlu0 %v4232, 112
      %v4764 = vpop.permute.xlu0 %4763
      %4765 = vrot.lane.b32.xlu0 %v4233, 112
      %v4766 = vpop.permute.xlu0 %4765
      %4767 = vrot.lane.b32.xlu0 %v4234, 112
      %v4768 = vpop.permute.xlu0 %4767
      %4769 = vrot.lane.b32.xlu0 %v4235, 112
      %v4770 = vpop.permute.xlu0 %4769
      %4771 = vrot.lane.b32.xlu0 %v4236, 112
      %v4772 = vpop.permute.xlu0 %4771
      %4773 = vrot.lane.b32.xlu0 %v4237, 112
      %v4774 = vpop.permute.xlu0 %4773
      %4775 = vrot.lane.b32.xlu0 %v4238, 112
      %v4776 = vpop.permute.xlu0 %4775
      %4777 = vrot.lane.b32.xlu0 %v4239, 112
      %v4778 = vpop.permute.xlu0 %4777
      %4779 = vrot.lane.b32.xlu0 %v4240, 112
      %v4780 = vpop.permute.xlu0 %4779
      %4781 = vrot.lane.b32.xlu0 %v4241, 112
      %v4782 = vpop.permute.xlu0 %4781
      %4783 = vrot.lane.b32.xlu0 %v4242, 112
      %v4784 = vpop.permute.xlu0 %4783
      %4785 = vrot.lane.b32.xlu0 %v4243, 112
      %v4786 = vpop.permute.xlu0 %4785
      %4787 = vrot.lane.b32.xlu0 %v4244, 112
      %v4788 = vpop.permute.xlu0 %4787
      %4789 = vrot.lane.b32.xlu0 %v4245, 112
      %v4790 = vpop.permute.xlu0 %4789
      %4791 = vrot.lane.b32.xlu0 %v4246, 112
      %v4792 = vpop.permute.xlu0 %4791
      %4793 = vrot.lane.b32.xlu0 %v4247, 112
      %v4794 = vpop.permute.xlu0 %4793
      %4795 = vrot.lane.b32.xlu0 %v4248, 112
      %v4796 = vpop.permute.xlu0 %4795
      %4797 = vrot.lane.b32.xlu0 %v4249, 112
      %v4798 = vpop.permute.xlu0 %4797
      %4799 = vrot.lane.b32.xlu0 %v4250, 112
      %v4800 = vpop.permute.xlu0 %4799
      %4801 = vrot.lane.b32.xlu0 %v4251, 112
      %v4802 = vpop.permute.xlu0 %4801
      %4803 = vrot.lane.b32.xlu0 %v4252, 112
      %v4804 = vpop.permute.xlu0 %4803
      %4805 = vrot.lane.b32.xlu0 %v4253, 112
      %v4806 = vpop.permute.xlu0 %4805
      %4807 = vrot.lane.b32.xlu0 %v4254, 112
      %v4808 = vpop.permute.xlu0 %4807
      %4809 = vrot.lane.b32.xlu0 %v4255, 112
      %v4810 = vpop.permute.xlu0 %4809
      %4811 = vrot.lane.b32.xlu0 %v4256, 112
      %v4812 = vpop.permute.xlu0 %4811
      %v4813 = vsel %vm2852, %v4686, %v4688
      %v4814 = vsel %vm2852, %v4690, %v4692
      %v4815 = vsel %vm2852, %v4694, %v4696
      %v4816 = vsel %vm2852, %v4698, %v4700
      %v4817 = vsel %vm2852, %v4702, %v4704
      %v4818 = vsel %vm2852, %v4706, %v4708
      %v4819 = vsel %vm2852, %v4710, %v4712
      %v4820 = vsel %vm2852, %v4714, %v4716
      %v4821 = vsel %vm2852, %v4718, %v4720
      %v4822 = vsel %vm2852, %v4722, %v4724
      %v4823 = vsel %vm2852, %v4726, %v4728
      %v4824 = vsel %vm2852, %v4730, %v4732
      %v4825 = vsel %vm2852, %v4734, %v4736
      %v4826 = vsel %vm2852, %v4738, %v4740
      %v4827 = vsel %vm2852, %v4742, %v4744
      %v4828 = vsel %vm2852, %v4746, %v4748
      %v4829 = vsel %vm2852, %v4750, %v4752
      %v4830 = vsel %vm2852, %v4754, %v4756
      %v4831 = vsel %vm2852, %v4758, %v4760
      %v4832 = vsel %vm2852, %v4762, %v4764
      %v4833 = vsel %vm2852, %v4766, %v4768
      %v4834 = vsel %vm2852, %v4770, %v4772
      %v4835 = vsel %vm2852, %v4774, %v4776
      %v4836 = vsel %vm2852, %v4778, %v4780
      %v4837 = vsel %vm2852, %v4782, %v4784
      %v4838 = vsel %vm2852, %v4786, %v4788
      %v4839 = vsel %vm2852, %v4790, %v4792
      %v4840 = vsel %vm2852, %v4794, %v4796
      %v4841 = vsel %vm2852, %v4798, %v4800
      %v4842 = vsel %vm2852, %v4802, %v4804
      %v4843 = vsel %vm2852, %v4806, %v4808
      %v4844 = vsel %vm2852, %v4810, %v4812
      %v4909 = vmul.f32 %v4557, %v4813
      %v4910 = vmul.f32 %v4558, %v4688
      %v4911 = vmul.f32 %v4559, %v4814
      %v4912 = vmul.f32 %v4560, %v4692
      %v4913 = vmul.f32 %v4561, %v4815
      %v4914 = vmul.f32 %v4562, %v4696
      %v4915 = vmul.f32 %v4563, %v4816
      %v4916 = vmul.f32 %v4564, %v4700
      %v4917 = vmul.f32 %v4565, %v4817
      %v4918 = vmul.f32 %v4566, %v4704
      %v4919 = vmul.f32 %v4567, %v4818
      %v4920 = vmul.f32 %v4568, %v4708
      %v4921 = vmul.f32 %v4569, %v4819
      %v4922 = vmul.f32 %v4570, %v4712
      %v4923 = vmul.f32 %v4571, %v4820
      %v4924 = vmul.f32 %v4572, %v4716
      %v4925 = vmul.f32 %v4573, %v4821
      %v4926 = vmul.f32 %v4574, %v4720
      %v4927 = vmul.f32 %v4575, %v4822
      %v4928 = vmul.f32 %v4576, %v4724
      %v4929 = vmul.f32 %v4577, %v4823
      %v4930 = vmul.f32 %v4578, %v4728
      %v4931 = vmul.f32 %v4579, %v4824
      %v4932 = vmul.f32 %v4580, %v4732
      %v4933 = vmul.f32 %v4581, %v4825
      %v4934 = vmul.f32 %v4582, %v4736
      %v4935 = vmul.f32 %v4583, %v4826
      %v4936 = vmul.f32 %v4584, %v4740
      %v4937 = vmul.f32 %v4585, %v4827
      %v4938 = vmul.f32 %v4586, %v4744
      %v4939 = vmul.f32 %v4587, %v4828
      %v4940 = vmul.f32 %v4588, %v4748
      %v4941 = vmul.f32 %v4589, %v4829
      %v4942 = vmul.f32 %v4590, %v4752
      %v4943 = vmul.f32 %v4591, %v4830
      %v4944 = vmul.f32 %v4592, %v4756
      %v4945 = vmul.f32 %v4593, %v4831
      %v4946 = vmul.f32 %v4594, %v4760
      %v4947 = vmul.f32 %v4595, %v4832
      %v4948 = vmul.f32 %v4596, %v4764
      %v4949 = vmul.f32 %v4597, %v4833
      %v4950 = vmul.f32 %v4598, %v4768
      %v4951 = vmul.f32 %v4599, %v4834
      %v4952 = vmul.f32 %v4600, %v4772
      %v4953 = vmul.f32 %v4601, %v4835
      %v4954 = vmul.f32 %v4602, %v4776
      %v4955 = vmul.f32 %v4603, %v4836
      %v4956 = vmul.f32 %v4604, %v4780
      %v4957 = vmul.f32 %v4605, %v4837
      %v4958 = vmul.f32 %v4606, %v4784
      %v4959 = vmul.f32 %v4607, %v4838
      %v4960 = vmul.f32 %v4608, %v4788
      %v4961 = vmul.f32 %v4609, %v4839
      %v4962 = vmul.f32 %v4610, %v4792
      %v4963 = vmul.f32 %v4611, %v4840
      %v4964 = vmul.f32 %v4612, %v4796
      %v4965 = vmul.f32 %v4613, %v4841
      %v4966 = vmul.f32 %v4614, %v4800
      %v4967 = vmul.f32 %v4615, %v4842
      %v4968 = vmul.f32 %v4616, %v4804
      %v4969 = vmul.f32 %v4617, %v4843
      %v4970 = vmul.f32 %v4618, %v4808
      %v4971 = vmul.f32 %v4619, %v4844
      %v4972 = vmul.f32 %v4620, %v4812
      %v4973 = vadd.f32 %v4407, %v4909
      %v4974 = vadd.f32 %v4408, %v4910
      %v4975 = vadd.f32 %v4409, %v4911
      %v4976 = vadd.f32 %v4410, %v4912
      %v4977 = vadd.f32 %v4411, %v4913
      %v4978 = vadd.f32 %v4412, %v4914
      %v4979 = vadd.f32 %v4413, %v4915
      %v4980 = vadd.f32 %v4414, %v4916
      %v4981 = vadd.f32 %v4415, %v4917
      %v4982 = vadd.f32 %v4416, %v4918
      %v4983 = vadd.f32 %v4417, %v4919
      %v4984 = vadd.f32 %v4418, %v4920
      %v4985 = vadd.f32 %v4419, %v4921
      %v4986 = vadd.f32 %v4420, %v4922
      %v4987 = vadd.f32 %v4421, %v4923
      %v4988 = vadd.f32 %v4422, %v4924
      %v4989 = vadd.f32 %v4423, %v4925
      %v4990 = vadd.f32 %v4424, %v4926
      %v4991 = vadd.f32 %v4425, %v4927
      %v4992 = vadd.f32 %v4426, %v4928
      %v4993 = vadd.f32 %v4427, %v4929
      %v4994 = vadd.f32 %v4428, %v4930
      %v4995 = vadd.f32 %v4429, %v4931
      %v4996 = vadd.f32 %v4430, %v4932
      %v4997 = vadd.f32 %v4431, %v4933
      %v4998 = vadd.f32 %v4432, %v4934
      %v4999 = vadd.f32 %v4433, %v4935
      %v5000 = vadd.f32 %v4434, %v4936
      %v5001 = vadd.f32 %v4435, %v4937
      %v5002 = vadd.f32 %v4436, %v4938
      %v5003 = vadd.f32 %v4437, %v4939
      %v5004 = vadd.f32 %v4438, %v4940
      %v5005 = vadd.f32 %v4439, %v4941
      %v5006 = vadd.f32 %v4440, %v4942
      %v5007 = vadd.f32 %v4441, %v4943
      %v5008 = vadd.f32 %v4442, %v4944
      %v5009 = vadd.f32 %v4443, %v4945
      %v5010 = vadd.f32 %v4444, %v4946
      %v5011 = vadd.f32 %v4445, %v4947
      %v5012 = vadd.f32 %v4446, %v4948
      %v5013 = vadd.f32 %v4447, %v4949
      %v5014 = vadd.f32 %v4448, %v4950
      %v5015 = vadd.f32 %v4449, %v4951
      %v5016 = vadd.f32 %v4450, %v4952
      %v5017 = vadd.f32 %v4451, %v4953
      %v5018 = vadd.f32 %v4452, %v4954
      %v5019 = vadd.f32 %v4453, %v4955
      %v5020 = vadd.f32 %v4454, %v4956
      %v5021 = vadd.f32 %v4455, %v4957
      %v5022 = vadd.f32 %v4456, %v4958
      %v5023 = vadd.f32 %v4457, %v4959
      %v5024 = vadd.f32 %v4458, %v4960
      %v5025 = vadd.f32 %v4459, %v4961
      %v5026 = vadd.f32 %v4460, %v4962
      %v5027 = vadd.f32 %v4461, %v4963
      %v5028 = vadd.f32 %v4462, %v4964
      %v5029 = vadd.f32 %v4463, %v4965
      %v5030 = vadd.f32 %v4464, %v4966
      %v5031 = vadd.f32 %v4465, %v4967
      %v5032 = vadd.f32 %v4466, %v4968
      %v5033 = vadd.f32 %v4467, %v4969
      %v5034 = vadd.f32 %v4468, %v4970
      %v5035 = vadd.f32 %v4469, %v4971
      %v5036 = vadd.f32 %v4470, %v4972
      %5037 = vst [vmem:[#allocation2] sm:$0xff] %v4973
      %5038 = vst.msk [vmem:[#allocation2 + $0x8] sm:$0xff] %vm2096, %v4974
      %5039 = vst [vmem:[#allocation2 + $0x10] sm:$0xff] %v4975
      %5040 = vst.msk [vmem:[#allocation2 + $0x18] sm:$0xff] %vm2096, %v4976
      %5041 = vst [vmem:[#allocation2 + $0x20] sm:$0xff] %v4977
      %5042 = vst.msk [vmem:[#allocation2 + $0x28] sm:$0xff] %vm2096, %v4978
      %5043 = vst [vmem:[#allocation2 + $0x30] sm:$0xff] %v4979
      %5044 = vst.msk [vmem:[#allocation2 + $0x38] sm:$0xff] %vm2096, %v4980
      %5045 = vst [vmem:[#allocation2 + $0x40] sm:$0xff] %v4981
      %5046 = vst.msk [vmem:[#allocation2 + $0x48] sm:$0xff] %vm2096, %v4982
      %5047 = vst [vmem:[#allocation2 + $0x50] sm:$0xff] %v4983
      %5048 = vst.msk [vmem:[#allocation2 + $0x58] sm:$0xff] %vm2096, %v4984
      %5049 = vst [vmem:[#allocation2 + $0x60] sm:$0xff] %v4985
      %5050 = vst.msk [vmem:[#allocation2 + $0x68] sm:$0xff] %vm2096, %v4986
      %5051 = vst [vmem:[#allocation2 + $0x70] sm:$0xff] %v4987
      %5052 = vst.msk [vmem:[#allocation2 + $0x78] sm:$0xff] %vm2096, %v4988
      %5053 = vst [vmem:[#allocation2 + $0x80] sm:$0xff] %v4989
      %5054 = vst.msk [vmem:[#allocation2 + $0x88] sm:$0xff] %vm2096, %v4990
      %5055 = vst [vmem:[#allocation2 + $0x90] sm:$0xff] %v4991
      %5056 = vst.msk [vmem:[#allocation2 + $0x98] sm:$0xff] %vm2096, %v4992
      %5057 = vst [vmem:[#allocation2 + $0xa0] sm:$0xff] %v4993
      %5058 = vst.msk [vmem:[#allocation2 + $0xa8] sm:$0xff] %vm2096, %v4994
      %5059 = vst [vmem:[#allocation2 + $0xb0] sm:$0xff] %v4995
      %5060 = vst.msk [vmem:[#allocation2 + $0xb8] sm:$0xff] %vm2096, %v4996
      %5061 = vst [vmem:[#allocation2 + $0xc0] sm:$0xff] %v4997
      %5062 = vst.msk [vmem:[#allocation2 + $0xc8] sm:$0xff] %vm2096, %v4998
      %5063 = vst [vmem:[#allocation2 + $0xd0] sm:$0xff] %v4999
      %5064 = vst.msk [vmem:[#allocation2 + $0xd8] sm:$0xff] %vm2096, %v5000
      %5065 = vst [vmem:[#allocation2 + $0xe0] sm:$0xff] %v5001
      %5066 = vst.msk [vmem:[#allocation2 + $0xe8] sm:$0xff] %vm2096, %v5002
      %5067 = vst [vmem:[#allocation2 + $0xf0] sm:$0xff] %v5003
      %5068 = vst.msk [vmem:[#allocation2 + $0xf8] sm:$0xff] %vm2096, %v5004
      %5069 = vst [vmem:[#allocation2 + $0x100] sm:$0xff] %v5005
      %5070 = vst.msk [vmem:[#allocation2 + $0x108] sm:$0xff] %vm2096, %v5006
      %5071 = vst [vmem:[#allocation2 + $0x110] sm:$0xff] %v5007
      %5072 = vst.msk [vmem:[#allocation2 + $0x118] sm:$0xff] %vm2096, %v5008
      %5073 = vst [vmem:[#allocation2 + $0x120] sm:$0xff] %v5009
      %5074 = vst.msk [vmem:[#allocation2 + $0x128] sm:$0xff] %vm2096, %v5010
      %5075 = vst [vmem:[#allocation2 + $0x130] sm:$0xff] %v5011
      %5076 = vst.msk [vmem:[#allocation2 + $0x138] sm:$0xff] %vm2096, %v5012
      %5077 = vst [vmem:[#allocation2 + $0x140] sm:$0xff] %v5013
      %5078 = vst.msk [vmem:[#allocation2 + $0x148] sm:$0xff] %vm2096, %v5014
      %5079 = vst [vmem:[#allocation2 + $0x150] sm:$0xff] %v5015
      %5080 = vst.msk [vmem:[#allocation2 + $0x158] sm:$0xff] %vm2096, %v5016
      %5081 = vst [vmem:[#allocation2 + $0x160] sm:$0xff] %v5017
      %5082 = vst.msk [vmem:[#allocation2 + $0x168] sm:$0xff] %vm2096, %v5018
      %5083 = vst [vmem:[#allocation2 + $0x170] sm:$0xff] %v5019
      %5084 = vst.msk [vmem:[#allocation2 + $0x178] sm:$0xff] %vm2096, %v5020
      %5085 = vst [vmem:[#allocation2 + $0x180] sm:$0xff] %v5021
      %5086 = vst.msk [vmem:[#allocation2 + $0x188] sm:$0xff] %vm2096, %v5022
      %5087 = vst [vmem:[#allocation2 + $0x190] sm:$0xff] %v5023
      %5088 = vst.msk [vmem:[#allocation2 + $0x198] sm:$0xff] %vm2096, %v5024
      %5089 = vst [vmem:[#allocation2 + $0x1a0] sm:$0xff] %v5025
      %5090 = vst.msk [vmem:[#allocation2 + $0x1a8] sm:$0xff] %vm2096, %v5026
      %5091 = vst [vmem:[#allocation2 + $0x1b0] sm:$0xff] %v5027
      %5092 = vst.msk [vmem:[#allocation2 + $0x1b8] sm:$0xff] %vm2096, %v5028
      %5093 = vst [vmem:[#allocation2 + $0x1c0] sm:$0xff] %v5029
      %5094 = vst.msk [vmem:[#allocation2 + $0x1c8] sm:$0xff] %vm2096, %v5030
      %5095 = vst [vmem:[#allocation2 + $0x1d0] sm:$0xff] %v5031
      %5096 = vst.msk [vmem:[#allocation2 + $0x1d8] sm:$0xff] %vm2096, %v5032
      %5097 = vst [vmem:[#allocation2 + $0x1e0] sm:$0xff] %v5033
      %5098 = vst.msk [vmem:[#allocation2 + $0x1e8] sm:$0xff] %vm2096, %v5034
      %5099 = vst [vmem:[#allocation2 + $0x1f0] sm:$0xff] %v5035
      %5100 = vst.msk [vmem:[#allocation2 + $0x1f8] sm:$0xff] %vm2096, %v5036
      %v5101 = vld [vmem:[#allocation2] sm:$0xff]
      %v5102 = vld [vmem:[#allocation2 + $0x8] sm:$0xff]
      %v5103 = vld [vmem:[#allocation2 + $0x10] sm:$0xff]
      %v5104 = vld [vmem:[#allocation2 + $0x18] sm:$0xff]
      %v5105 = vld [vmem:[#allocation2 + $0x20] sm:$0xff]
      %v5106 = vld [vmem:[#allocation2 + $0x28] sm:$0xff]
      %v5107 = vld [vmem:[#allocation2 + $0x30] sm:$0xff]
      %v5108 = vld [vmem:[#allocation2 + $0x38] sm:$0xff]
      %v5109 = vld [vmem:[#allocation2 + $0x40] sm:$0xff]
      %v5110 = vld [vmem:[#allocation2 + $0x48] sm:$0xff]
      %v5111 = vld [vmem:[#allocation2 + $0x50] sm:$0xff]
      %v5112 = vld [vmem:[#allocation2 + $0x58] sm:$0xff]
      %v5113 = vld [vmem:[#allocation2 + $0x60] sm:$0xff]
      %v5114 = vld [vmem:[#allocation2 + $0x68] sm:$0xff]
      %v5115 = vld [vmem:[#allocation2 + $0x70] sm:$0xff]
      %v5116 = vld [vmem:[#allocation2 + $0x78] sm:$0xff]
      %v5117 = vld [vmem:[#allocation2 + $0x80] sm:$0xff]
      %v5118 = vld [vmem:[#allocation2 + $0x88] sm:$0xff]
      %v5119 = vld [vmem:[#allocation2 + $0x90] sm:$0xff]
      %v5120 = vld [vmem:[#allocation2 + $0x98] sm:$0xff]
      %v5121 = vld [vmem:[#allocation2 + $0xa0] sm:$0xff]
      %v5122 = vld [vmem:[#allocation2 + $0xa8] sm:$0xff]
      %v5123 = vld [vmem:[#allocation2 + $0xb0] sm:$0xff]
      %v5124 = vld [vmem:[#allocation2 + $0xb8] sm:$0xff]
      %v5125 = vld [vmem:[#allocation2 + $0xc0] sm:$0xff]
      %v5126 = vld [vmem:[#allocation2 + $0xc8] sm:$0xff]
      %v5127 = vld [vmem:[#allocation2 + $0xd0] sm:$0xff]
      %v5128 = vld [vmem:[#allocation2 + $0xd8] sm:$0xff]
      %v5129 = vld [vmem:[#allocation2 + $0xe0] sm:$0xff]
      %v5130 = vld [vmem:[#allocation2 + $0xe8] sm:$0xff]
      %v5131 = vld [vmem:[#allocation2 + $0xf0] sm:$0xff]
      %v5132 = vld [vmem:[#allocation2 + $0xf8] sm:$0xff]
      %v5133 = vld [vmem:[#allocation2 + $0x100] sm:$0xff]
      %v5134 = vld [vmem:[#allocation2 + $0x108] sm:$0xff]
      %v5135 = vld [vmem:[#allocation2 + $0x110] sm:$0xff]
      %v5136 = vld [vmem:[#allocation2 + $0x118] sm:$0xff]
      %v5137 = vld [vmem:[#allocation2 + $0x120] sm:$0xff]
      %v5138 = vld [vmem:[#allocation2 + $0x128] sm:$0xff]
      %v5139 = vld [vmem:[#allocation2 + $0x130] sm:$0xff]
      %v5140 = vld [vmem:[#allocation2 + $0x138] sm:$0xff]
      %v5141 = vld [vmem:[#allocation2 + $0x140] sm:$0xff]
      %v5142 = vld [vmem:[#allocation2 + $0x148] sm:$0xff]
      %v5143 = vld [vmem:[#allocation2 + $0x150] sm:$0xff]
      %v5144 = vld [vmem:[#allocation2 + $0x158] sm:$0xff]
      %v5145 = vld [vmem:[#allocation2 + $0x160] sm:$0xff]
      %v5146 = vld [vmem:[#allocation2 + $0x168] sm:$0xff]
      %v5147 = vld [vmem:[#allocation2 + $0x170] sm:$0xff]
      %v5148 = vld [vmem:[#allocation2 + $0x178] sm:$0xff]
      %v5149 = vld [vmem:[#allocation2 + $0x180] sm:$0xff]
      %v5150 = vld [vmem:[#allocation2 + $0x188] sm:$0xff]
      %v5151 = vld [vmem:[#allocation2 + $0x190] sm:$0xff]
      %v5152 = vld [vmem:[#allocation2 + $0x198] sm:$0xff]
      %v5153 = vld [vmem:[#allocation2 + $0x1a0] sm:$0xff]
      %v5154 = vld [vmem:[#allocation2 + $0x1a8] sm:$0xff]
      %v5155 = vld [vmem:[#allocation2 + $0x1b0] sm:$0xff]
      %v5156 = vld [vmem:[#allocation2 + $0x1b8] sm:$0xff]
      %v5157 = vld [vmem:[#allocation2 + $0x1c0] sm:$0xff]
      %v5158 = vld [vmem:[#allocation2 + $0x1c8] sm:$0xff]
      %v5159 = vld [vmem:[#allocation2 + $0x1d0] sm:$0xff]
      %v5160 = vld [vmem:[#allocation2 + $0x1d8] sm:$0xff]
      %v5161 = vld [vmem:[#allocation2 + $0x1e0] sm:$0xff]
      %v5162 = vld [vmem:[#allocation2 + $0x1e8] sm:$0xff]
      %v5163 = vld [vmem:[#allocation2 + $0x1f0] sm:$0xff]
      %v5164 = vld [vmem:[#allocation2 + $0x1f8] sm:$0xff]
      %v5165 = vld [vmem:[%s2] sm:$0xff]
      %v5166 = vld [vmem:[%s2 + $0x8] sm:$0xff]
      %v5167 = vld [vmem:[%s2 + $0x10] sm:$0xff]
      %v5168 = vld [vmem:[%s2 + $0x18] sm:$0xff]
      %v5169 = vld [vmem:[%s2 + $0x20] sm:$0xff]
      %v5170 = vld [vmem:[%s2 + $0x28] sm:$0xff]
      %v5171 = vld [vmem:[%s2 + $0x30] sm:$0xff]
      %v5172 = vld [vmem:[%s2 + $0x38] sm:$0xff]
      %v5173 = vld [vmem:[%s2 + $0x40] sm:$0xff]
      %v5174 = vld [vmem:[%s2 + $0x48] sm:$0xff]
      %v5175 = vld [vmem:[%s2 + $0x50] sm:$0xff]
      %v5176 = vld [vmem:[%s2 + $0x58] sm:$0xff]
      %v5177 = vld [vmem:[%s2 + $0x60] sm:$0xff]
      %v5178 = vld [vmem:[%s2 + $0x68] sm:$0xff]
      %v5179 = vld [vmem:[%s2 + $0x70] sm:$0xff]
      %v5180 = vld [vmem:[%s2 + $0x78] sm:$0xff]
      %v5181 = vld [vmem:[%s2 + $0x80] sm:$0xff]
      %v5182 = vld [vmem:[%s2 + $0x88] sm:$0xff]
      %v5183 = vld [vmem:[%s2 + $0x90] sm:$0xff]
      %v5184 = vld [vmem:[%s2 + $0x98] sm:$0xff]
      %v5185 = vld [vmem:[%s2 + $0xa0] sm:$0xff]
      %v5186 = vld [vmem:[%s2 + $0xa8] sm:$0xff]
      %v5187 = vld [vmem:[%s2 + $0xb0] sm:$0xff]
      %v5188 = vld [vmem:[%s2 + $0xb8] sm:$0xff]
      %v5189 = vld [vmem:[%s2 + $0xc0] sm:$0xff]
      %v5190 = vld [vmem:[%s2 + $0xc8] sm:$0xff]
      %vm5191 = vcmask 654336
      %v5193 = vsel %vm5191, %v5102, 0
      %v5196 = vsel %vm5191, %v5104, 0
      %v5199 = vsel %vm5191, %v5106, 0
      %v5202 = vsel %vm5191, %v5108, 0
      %v5205 = vsel %vm5191, %v5110, 0
      %v5208 = vsel %vm5191, %v5112, 0
      %v5211 = vsel %vm5191, %v5114, 0
      %v5214 = vsel %vm5191, %v5116, 0
      %v5217 = vsel %vm5191, %v5118, 0
      %v5220 = vsel %vm5191, %v5120, 0
      %v5223 = vsel %vm5191, %v5122, 0
      %v5226 = vsel %vm5191, %v5124, 0
      %v5229 = vsel %vm5191, %v5126, 0
      %v5232 = vsel %vm5191, %v5128, 0
      %v5235 = vsel %vm5191, %v5130, 0
      %v5238 = vsel %vm5191, %v5132, 0
      %v5241 = vsel %vm5191, %v5134, 0
      %v5244 = vsel %vm5191, %v5136, 0
      %v5247 = vsel %vm5191, %v5138, 0
      %v5250 = vsel %vm5191, %v5140, 0
      %v5253 = vsel %vm5191, %v5142, 0
      %v5256 = vsel %vm5191, %v5144, 0
      %v5259 = vsel %vm5191, %v5146, 0
      %v5262 = vsel %vm5191, %v5148, 0
      %v5265 = vsel %vm5191, %v5150, 0
      %v5268 = vsel %vm5191, %v5152, 0
      %v5271 = vsel %vm5191, %v5154, 0
      %v5274 = vsel %vm5191, %v5156, 0
      %v5277 = vsel %vm5191, %v5158, 0
      %v5280 = vsel %vm5191, %v5160, 0
      %v5283 = vsel %vm5191, %v5162, 0
      %v5286 = vsel %vm5191, %v5164, 0
      %5288 = vmatprep.subr.mxu0 0.0
      %5289 = vmatpush1.msra.mxu0 %v5165
      %5290 = vmatprep.subr.mxu0 0.0
      %5291 = vmatpush1.msra.mxu0 %v5166
      %5292 = vmatprep.subr.mxu0 0.0
      %5293 = vmatpush1.msra.mxu0 %v5167
      %5294 = vmatprep.subr.mxu0 0.0
      %5295 = vmatpush1.msra.mxu0 %v5168
      %5296 = vmatprep.subr.mxu0 0.0
      %5297 = vmatpush1.msra.mxu0 %v5169
      %5298 = vmatprep.subr.mxu0 0.0
      %5299 = vmatpush1.msra.mxu0 %v5170
      %5300 = vmatprep.subr.mxu0 0.0
      %5301 = vmatpush1.msra.mxu0 %v5171
      %5302 = vmatprep.subr.mxu0 0.0
      %5303 = vmatpush1.msra.mxu0 %v5172
      %5304 = vmatprep.subr.mxu0 0.0
      %5305 = vmatpush1.msra.mxu0 %v5173
      %5306 = vmatprep.subr.mxu0 0.0
      %5307 = vmatpush1.msra.mxu0 %v5174
      %5308 = vmatprep.subr.mxu0 0.0
      %5309 = vmatpush1.msra.mxu0 %v5175
      %5310 = vmatprep.subr.mxu0 0.0
      %5311 = vmatpush1.msra.mxu0 %v5176
      %5312 = vmatprep.subr.mxu0 0.0
      %5313 = vmatpush1.msra.mxu0 %v5177
      %5314 = vmatprep.subr.mxu0 0.0
      %5315 = vmatpush1.msra.mxu0 %v5178
      %5316 = vmatprep.subr.mxu0 0.0
      %5317 = vmatpush1.msra.mxu0 %v5179
      %5318 = vmatprep.subr.mxu0 0.0
      %5319 = vmatpush1.msra.mxu0 %v5180
      %5320 = vmatprep.subr.mxu0 0.0
      %5321 = vmatpush1.msra.mxu0 %v5181
      %5322 = vmatprep.subr.mxu0 0.0
      %5323 = vmatpush1.msra.mxu0 %v5182
      %5324 = vmatprep.subr.mxu0 0.0
      %5325 = vmatpush1.msra.mxu0 %v5183
      %5326 = vmatprep.subr.mxu0 0.0
      %5327 = vmatpush1.msra.mxu0 %v5184
      %5328 = vmatprep.subr.mxu0 0.0
      %5329 = vmatpush1.msra.mxu0 %v5185
      %5330 = vmatprep.subr.mxu0 0.0
      %5331 = vmatpush1.msra.mxu0 %v5186
      %5332 = vmatprep.subr.mxu0 0.0
      %5333 = vmatpush1.msra.mxu0 %v5187
      %5334 = vmatprep.subr.mxu0 0.0
      %5335 = vmatpush1.msra.mxu0 %v5188
      %5336 = vmatprep.subr.mxu0 0.0
      %5337 = vmatpush1.msra.mxu0 %v5189
      %5338 = vmatprep.subr.mxu0 0.0
      %5339 = vmatpush1.msra.mxu0 %v5190
      %5340 = vmatprep.subr.mxu0 0.0
      %5341 = vmatpush1.msra.mxu0 0.0
      %5342 = vmatprep.subr.mxu0 0.0
      %5343 = vmatpush1.msra.mxu0 0.0
      %5344 = vmatprep.subr.mxu0 0.0
      %5345 = vmatpush1.msra.mxu0 0.0
      %5346 = vmatprep.subr.mxu0 0.0
      %5347 = vmatpush1.msra.mxu0 0.0
      %5348 = vmatprep.subr.mxu0 0.0
      %5349 = vmatpush1.msra.mxu0 0.0
      %5350 = vmatprep.subr.mxu0 0.0
      %5351 = vmatpush1.msra.mxu0 0.0
      %5352 = vmatprep.mubr.f32.mxu0 %v5193
      %5353 = vmatmul.mubr.f32.gmra.mrb[0].mxu0 %v5101
      %v5354 = vpop.f32.mrb[0].mxu0
      %v5355 = vadd.f32 0.0, %v5354
      %v5356 = vpop.f32.mrb[0].mxu0
      %5357 = vmatprep.mubr.f32.mxu0 %v5196
      %5358 = vmatmul.mubr.f32.gmra.mrb[0].mxu0 %v5103
      %v5359 = vpop.f32.mrb[0].mxu0
      %v5360 = vadd.f32 0.0, %v5359
      %v5361 = vpop.f32.mrb[0].mxu0
      %5362 = vmatprep.mubr.f32.mxu0 %v5199
      %5363 = vmatmul.mubr.f32.gmra.mrb[0].mxu0 %v5105
      %v5364 = vpop.f32.mrb[0].mxu0
      %v5365 = vadd.f32 0.0, %v5364
      %v5366 = vpop.f32.mrb[0].mxu0
      %5367 = vmatprep.mubr.f32.mxu0 %v5202
      %5368 = vmatmul.mubr.f32.gmra.mrb[0].mxu0 %v5107
      %v5369 = vpop.f32.mrb[0].mxu0
      %v5370 = vadd.f32 0.0, %v5369
      %v5371 = vpop.f32.mrb[0].mxu0
      %5372 = vmatprep.mubr.f32.mxu0 %v5205
      %5373 = vmatmul.mubr.f32.gmra.mrb[0].mxu0 %v5109
      %v5374 = vpop.f32.mrb[0].mxu0
      %v5375 = vadd.f32 0.0, %v5374
      %v5376 = vpop.f32.mrb[0].mxu0
      %5377 = vmatprep.mubr.f32.mxu0 %v5208
      %5378 = vmatmul.mubr.f32.gmra.mrb[0].mxu0 %v5111
      %v5379 = vpop.f32.mrb[0].mxu0
      %v5380 = vadd.f32 0.0, %v5379
      %v5381 = vpop.f32.mrb[0].mxu0
      %5382 = vmatprep.mubr.f32.mxu0 %v5211
      %5383 = vmatmul.mubr.f32.gmra.mrb[0].mxu0 %v5113
      %v5384 = vpop.f32.mrb[0].mxu0
      %v5385 = vadd.f32 0.0, %v5384
      %v5386 = vpop.f32.mrb[0].mxu0
      %5387 = vmatprep.mubr.f32.mxu0 %v5214
      %5388 = vmatmul.mubr.f32.gmra.mrb[0].mxu0 %v5115
      %v5389 = vpop.f32.mrb[0].mxu0
      %v5390 = vadd.f32 0.0, %v5389
      %v5391 = vpop.f32.mrb[0].mxu0
      %5392 = vmatprep.mubr.f32.mxu0 %v5217
      %5393 = vmatmul.mubr.f32.gmra.mrb[0].mxu0 %v5117
      %v5394 = vpop.f32.mrb[0].mxu0
      %v5395 = vadd.f32 0.0, %v5394
      %v5396 = vpop.f32.mrb[0].mxu0
      %5397 = vmatprep.mubr.f32.mxu0 %v5220
      %5398 = vmatmul.mubr.f32.gmra.mrb[0].mxu0 %v5119
      %v5399 = vpop.f32.mrb[0].mxu0
      %v5400 = vadd.f32 0.0, %v5399
      %v5401 = vpop.f32.mrb[0].mxu0
      %5402 = vmatprep.mubr.f32.mxu0 %v5223
      %5403 = vmatmul.mubr.f32.gmra.mrb[0].mxu0 %v5121
      %v5404 = vpop.f32.mrb[0].mxu0
      %v5405 = vadd.f32 0.0, %v5404
      %v5406 = vpop.f32.mrb[0].mxu0
      %5407 = vmatprep.mubr.f32.mxu0 %v5226
      %5408 = vmatmul.mubr.f32.gmra.mrb[0].mxu0 %v5123
      %v5409 = vpop.f32.mrb[0].mxu0
      %v5410 = vadd.f32 0.0, %v5409
      %v5411 = vpop.f32.mrb[0].mxu0
      %5412 = vmatprep.mubr.f32.mxu0 %v5229
      %5413 = vmatmul.mubr.f32.gmra.mrb[0].mxu0 %v5125
      %v5414 = vpop.f32.mrb[0].mxu0
      %v5415 = vadd.f32 0.0, %v5414
      %v5416 = vpop.f32.mrb[0].mxu0
      %5417 = vmatprep.mubr.f32.mxu0 %v5232
      %5418 = vmatmul.mubr.f32.gmra.mrb[0].mxu0 %v5127
      %v5419 = vpop.f32.mrb[0].mxu0
      %v5420 = vadd.f32 0.0, %v5419
      %v5421 = vpop.f32.mrb[0].mxu0
      %5422 = vmatprep.mubr.f32.mxu0 %v5235
      %5423 = vmatmul.mubr.f32.gmra.mrb[0].mxu0 %v5129
      %v5424 = vpop.f32.mrb[0].mxu0
      %v5425 = vadd.f32 0.0, %v5424
      %v5426 = vpop.f32.mrb[0].mxu0
      %5427 = vmatprep.mubr.f32.mxu0 %v5238
      %5428 = vmatmul.mubr.f32.gmra.mrb[0].mxu0 %v5131
      %v5429 = vpop.f32.mrb[0].mxu0
      %v5430 = vadd.f32 0.0, %v5429
      %v5431 = vpop.f32.mrb[0].mxu0
      %5432 = vmatprep.mubr.f32.mxu0 %v5241
      %5433 = vmatmul.mubr.f32.gmra.mrb[0].mxu0 %v5133
      %v5434 = vpop.f32.mrb[0].mxu0
      %v5435 = vadd.f32 0.0, %v5434
      %v5436 = vpop.f32.mrb[0].mxu0
      %5437 = vmatprep.mubr.f32.mxu0 %v5244
      %5438 = vmatmul.mubr.f32.gmra.mrb[0].mxu0 %v5135
      %v5439 = vpop.f32.mrb[0].mxu0
      %v5440 = vadd.f32 0.0, %v5439
      %v5441 = vpop.f32.mrb[0].mxu0
      %5442 = vmatprep.mubr.f32.mxu0 %v5247
      %5443 = vmatmul.mubr.f32.gmra.mrb[0].mxu0 %v5137
      %v5444 = vpop.f32.mrb[0].mxu0
      %v5445 = vadd.f32 0.0, %v5444
      %v5446 = vpop.f32.mrb[0].mxu0
      %5447 = vmatprep.mubr.f32.mxu0 %v5250
      %5448 = vmatmul.mubr.f32.gmra.mrb[0].mxu0 %v5139
      %v5449 = vpop.f32.mrb[0].mxu0
      %v5450 = vadd.f32 0.0, %v5449
      %v5451 = vpop.f32.mrb[0].mxu0
      %5452 = vmatprep.mubr.f32.mxu0 %v5253
      %5453 = vmatmul.mubr.f32.gmra.mrb[0].mxu0 %v5141
      %v5454 = vpop.f32.mrb[0].mxu0
      %v5455 = vadd.f32 0.0, %v5454
      %v5456 = vpop.f32.mrb[0].mxu0
      %5457 = vmatprep.mubr.f32.mxu0 %v5256
      %5458 = vmatmul.mubr.f32.gmra.mrb[0].mxu0 %v5143
      %v5459 = vpop.f32.mrb[0].mxu0
      %v5460 = vadd.f32 0.0, %v5459
      %v5461 = vpop.f32.mrb[0].mxu0
      %5462 = vmatprep.mubr.f32.mxu0 %v5259
      %5463 = vmatmul.mubr.f32.gmra.mrb[0].mxu0 %v5145
      %v5464 = vpop.f32.mrb[0].mxu0
      %v5465 = vadd.f32 0.0, %v5464
      %v5466 = vpop.f32.mrb[0].mxu0
      %5467 = vmatprep.mubr.f32.mxu0 %v5262
      %5468 = vmatmul.mubr.f32.gmra.mrb[0].mxu0 %v5147
      %v5469 = vpop.f32.mrb[0].mxu0
      %v5470 = vadd.f32 0.0, %v5469
      %v5471 = vpop.f32.mrb[0].mxu0
      %5472 = vmatprep.mubr.f32.mxu0 %v5265
      %5473 = vmatmul.mubr.f32.gmra.mrb[0].mxu0 %v5149
      %v5474 = vpop.f32.mrb[0].mxu0
      %v5475 = vadd.f32 0.0, %v5474
      %v5476 = vpop.f32.mrb[0].mxu0
      %5477 = vmatprep.mubr.f32.mxu0 %v5268
      %5478 = vmatmul.mubr.f32.gmra.mrb[0].mxu0 %v5151
      %v5479 = vpop.f32.mrb[0].mxu0
      %v5480 = vadd.f32 0.0, %v5479
      %v5481 = vpop.f32.mrb[0].mxu0
      %5482 = vmatprep.mubr.f32.mxu0 %v5271
      %5483 = vmatmul.mubr.f32.gmra.mrb[0].mxu0 %v5153
      %v5484 = vpop.f32.mrb[0].mxu0
      %v5485 = vadd.f32 0.0, %v5484
      %v5486 = vpop.f32.mrb[0].mxu0
      %5487 = vmatprep.mubr.f32.mxu0 %v5274
      %5488 = vmatmul.mubr.f32.gmra.mrb[0].mxu0 %v5155
      %v5489 = vpop.f32.mrb[0].mxu0
      %v5490 = vadd.f32 0.0, %v5489
      %v5491 = vpop.f32.mrb[0].mxu0
      %5492 = vmatprep.mubr.f32.mxu0 %v5277
      %5493 = vmatmul.mubr.f32.gmra.mrb[0].mxu0 %v5157
      %v5494 = vpop.f32.mrb[0].mxu0
      %v5495 = vadd.f32 0.0, %v5494
      %v5496 = vpop.f32.mrb[0].mxu0
      %5497 = vmatprep.mubr.f32.mxu0 %v5280
      %5498 = vmatmul.mubr.f32.gmra.mrb[0].mxu0 %v5159
      %v5499 = vpop.f32.mrb[0].mxu0
      %v5500 = vadd.f32 0.0, %v5499
      %v5501 = vpop.f32.mrb[0].mxu0
      %5502 = vmatprep.mubr.f32.mxu0 %v5283
      %5503 = vmatmul.mubr.f32.gmra.mrb[0].mxu0 %v5161
      %v5504 = vpop.f32.mrb[0].mxu0
      %v5505 = vadd.f32 0.0, %v5504
      %v5506 = vpop.f32.mrb[0].mxu0
      %5507 = vmatprep.mubr.f32.mxu0 %v5286
      %5508 = vmatmul.mubr.f32.gmra.mrb[0].mxu0 %v5163
      %v5509 = vpop.f32.mrb[0].mxu0
      %v5510 = vadd.f32 0.0, %v5509
      %v5511 = vpop.f32.mrb[0].mxu0
      %5512 = vdwg.mxu0
      %vm5513 = vcmask 261120
      %5514 = vst.msk [vmem:[%s172] sm:$0xff] %vm5513, %v5355
      %5515 = vst.msk [vmem:[%s172 + $0x8] sm:$0xff] %vm5513, %v5360
      %5516 = vst.msk [vmem:[%s172 + $0x10] sm:$0xff] %vm5513, %v5365
      %5517 = vst.msk [vmem:[%s172 + $0x18] sm:$0xff] %vm5513, %v5370
      %5518 = vst.msk [vmem:[%s172 + $0x20] sm:$0xff] %vm5513, %v5375
      %5519 = vst.msk [vmem:[%s172 + $0x28] sm:$0xff] %vm5513, %v5380
      %5520 = vst.msk [vmem:[%s172 + $0x30] sm:$0xff] %vm5513, %v5385
      %5521 = vst.msk [vmem:[%s172 + $0x38] sm:$0xff] %vm5513, %v5390
      %5522 = vst.msk [vmem:[%s172 + $0x40] sm:$0xff] %vm5513, %v5395
      %5523 = vst.msk [vmem:[%s172 + $0x48] sm:$0xff] %vm5513, %v5400
      %5524 = vst.msk [vmem:[%s172 + $0x50] sm:$0xff] %vm5513, %v5405
      %5525 = vst.msk [vmem:[%s172 + $0x58] sm:$0xff] %vm5513, %v5410
      %5526 = vst.msk [vmem:[%s172 + $0x60] sm:$0xff] %vm5513, %v5415
      %5527 = vst.msk [vmem:[%s172 + $0x68] sm:$0xff] %vm5513, %v5420
      %5528 = vst.msk [vmem:[%s172 + $0x70] sm:$0xff] %vm5513, %v5425
      %5529 = vst.msk [vmem:[%s172 + $0x78] sm:$0xff] %vm5513, %v5430
      %5530 = vst.msk [vmem:[%s172 + $0x80] sm:$0xff] %vm5513, %v5435
      %5531 = vst.msk [vmem:[%s172 + $0x88] sm:$0xff] %vm5513, %v5440
      %5532 = vst.msk [vmem:[%s172 + $0x90] sm:$0xff] %vm5513, %v5445
      %5533 = vst.msk [vmem:[%s172 + $0x98] sm:$0xff] %vm5513, %v5450
      %5534 = vst.msk [vmem:[%s172 + $0xa0] sm:$0xff] %vm5513, %v5455
      %5535 = vst.msk [vmem:[%s172 + $0xa8] sm:$0xff] %vm5513, %v5460
      %5536 = vst.msk [vmem:[%s172 + $0xb0] sm:$0xff] %vm5513, %v5465
      %5537 = vst.msk [vmem:[%s172 + $0xb8] sm:$0xff] %vm5513, %v5470
      %5538 = vst.msk [vmem:[%s172 + $0xc0] sm:$0xff] %vm5513, %v5475
      %5539 = vst.msk [vmem:[%s172 + $0xc8] sm:$0xff] %vm5513, %v5480
      %5540 = vst.msk [vmem:[%s172 + $0xd0] sm:$0xff] %vm5513, %v5485
      %5541 = vst.msk [vmem:[%s172 + $0xd8] sm:$0xff] %vm5513, %v5490
      %5542 = vst.msk [vmem:[%s172 + $0xe0] sm:$0xff] %vm5513, %v5495
      %5543 = vst.msk [vmem:[%s172 + $0xe8] sm:$0xff] %vm5513, %v5500
      %5544 = vst.msk [vmem:[%s172 + $0xf0] sm:$0xff] %vm5513, %v5505
      %5545 = vst.msk [vmem:[%s172 + $0xf8] sm:$0xff] %vm5513, %v5510
      %s5546 = smul.u32 32, %s14
      %p5547 = scmp.lt.s32.totalorder %s5546, 63
      %s5548 = scalar_select %p5547, %s5546, 63
      %s5549 = smul.addr %s5548, 8
      %s5550 = scalar_lea.vmem %s3, %s5549
      // Predicated region
      $region33: #{tpu_custom_call.1} parent=31 // pred_check
        %p5551 = pneg %p100
      $region34: #{tpu_custom_call.1} parent=31 // pred_check_branch
        %5553 = sbr.rel (%p5551) target = $region36
      $region35: #{tpu_custom_call.1} parent=31 // pred_region
        %s5554 = smul.u32 32, %s14
      $region36: #{tpu_custom_call.1} parent=31 // pred_fallthru
        _
    $region32: #{tpu_custom_call.1} parent=5 // pred_fallthru
      _
    %p5555 = scmp.le.s32.totalorder 2, %s9
    // Predicated region
    $region37: #{tpu_custom_call.1} parent=5 // pred_check
      %p5556 = pneg %p5555
    $region38: #{tpu_custom_call.1} parent=5 // pred_check_branch
      %5558 = sbr.rel (%p5556) target = $region40
    $region39: #{tpu_custom_call.1} parent=5 // pred_region
      %s5559 = ssub.s32 %s9, 2
      // Predicated region
      $region41: #{tpu_custom_call.1} parent=39 // pred_check
        %p5560 = pneg %p106
      $region42: #{tpu_custom_call.1} parent=39 // pred_check_branch
        %5562 = sbr.rel (%p5560) target = $region44
      $region43: #{tpu_custom_call.1} parent=39 // pred_region
        %s5563 = smul.u32 32, %s15
        %p5564 = scmp.lt.s32.totalorder %s5563, 63
        %s5565 = scalar_select %p5564, %s5563, 63
        %s5566 = smul.addr %s5565, 8
        %s5567 = scalar_lea.vmem %s3, %s5566
      $region44: #{tpu_custom_call.1} parent=39 // pred_fallthru
        _
    $region40: #{tpu_custom_call.1} parent=5 // pred_fallthru
      _
  $region6: #{tpu_custom_call.1} parent=0 // loop_footer
    %s13 = sadd.s32 1, %s9
  $region7: #{tpu_custom_call.1} parent=0 // loop_footer_branch
    %8 = sbr.rel target = $region3
  $region8: #{tpu_custom_call.1} parent=0 // loop_exit
    _

</llo_original>
